<compile_context>
chip_gen: v7x
topology: tpu7x:2x2x1
jax: 0.10.0
libtpu: 0.0.40
codegen_flags: <defaults>
</compile_context>

<pallas_src>
from functools import partial

import jax
import jax.numpy as jnp
from jax.experimental import pallas as pl
from jax.experimental.pallas import tpu as pltpu


# -----------------------------------------------------------------------------
# Helpers
# -----------------------------------------------------------------------------
def _pick_tile(dim, target, align):
    """Largest divisor of `dim` that is <= target and a multiple of `align`.
    Falls back to the full dim (a full-extent block is always layout-legal)."""
    if dim <= target:
        return dim
    for t in range(target, align - 1, -1):
        if dim % t == 0 and t % align == 0:
            return t
    return dim


def _vmem_limit(need_bytes):
    """Actual-need scoped-VMEM request with 2x headroom, clamped so it stays
    comfortable on v7x (64 MiB physical) without starving v5e/v6e pipelining."""
    return int(min(max(2 * need_bytes, 16 * 1024 * 1024), 40 * 1024 * 1024))


# -----------------------------------------------------------------------------
# Kernel 1: tiled y[g] = x @ w[g] + b[g]   (bf16 inputs, f32 accumulate)
# The leading `g` axis lets the qkv projection emit a (3, M, C) result directly
# (q/k/v split, heads interleaved along C) with zero extra HBM traffic.
# -----------------------------------------------------------------------------
def _linear_kernel(x_ref, w_ref, b_ref, o_ref, acc_ref):
    k = pl.program_id(3)

    @pl.when(k == 0)
    def _init():
        acc_ref[...] = jnp.zeros_like(acc_ref)

    acc_ref[...] += jnp.dot(
        x_ref[...], w_ref[...], preferred_element_type=jnp.float32
    )

    @pl.when(k == pl.num_programs(3) - 1)
    def _finalize():
        o_ref[...] = (acc_ref[...] + b_ref[...]).astype(o_ref.dtype)


def linear_split_pallas(x, w3, b3, *, out_dtype=jnp.float32,
                        tm=512, tn=512, tk=512):
    """x: (M, K) bf16, w3: (Gq, K, N) bf16, b3: (Gq, 1, N) f32 -> (Gq, M, N)."""
    M, K = x.shape
    Gq, _, N = w3.shape
    tm = _pick_tile(M, tm, 8)
    tn = _pick_tile(N, tn, 128)
    tk = _pick_tile(K, tk, 128)
    grid = (Gq, M // tm, N // tn, K // tk)

    need = (
        2 * (tm * tk + tk * tn) * 2            # double-buffered bf16 x / w blocks
        + 2 * tm * tn * jnp.dtype(out_dtype).itemsize  # double-buffered out block
        + tm * tn * 4                          # f32 accumulator
        + 2 * tn * 4                           # bias block
    )

    return pl.pallas_call(
        _linear_kernel,
        out_shape=jax.ShapeDtypeStruct((Gq, M, N), out_dtype),
        grid=grid,
        in_specs=[
            pl.BlockSpec((tm, tk), lambda q, i, j, k: (i, k)),
            # TODO(synk): pipeline_mode=pl.Buffered(3) on the weight spec if an
            # xprof trace still shows exposed DMA after the 512-tile bump.
            pl.BlockSpec((None, tk, tn), lambda q, i, j, k: (q, k, j)),
            pl.BlockSpec((None, 1, tn), lambda q, i, j, k: (q, 0, j)),
        ],
        out_specs=pl.BlockSpec((None, tm, tn), lambda q, i, j, k: (q, i, j)),
        scratch_shapes=[pltpu.VMEM((tm, tn), jnp.float32)],
        compiler_params=pltpu.CompilerParams(
            dimension_semantics=("parallel", "parallel", "parallel", "arbitrary"),
            vmem_limit_bytes=_vmem_limit(need),
        ),
    )(x, w3, b3)


# -----------------------------------------------------------------------------
# Kernel 2: per (batch, head-group) attention reading q/k/v straight out of the
# (3, B, S, C) qkv buffer; lane-dense (S, G*hd) output slab in (B, S, C) layout.
# -----------------------------------------------------------------------------
def _attn_kernel(q_ref, k_ref, v_ref, o_ref, acc_ref, *, scale, hd, group):
    for j in range(group):
        lo, hi = j * hd, (j + 1) * hd
        q = q_ref[:, lo:hi] * scale          # bf16, scale folded into q (S*hd muls)
        k = k_ref[:, lo:hi]                  # (S, hd) bf16
        v = v_ref[:, lo:hi]                  # (S, hd) bf16
        # q @ k^T without materializing k.T: contract the head dims directly.
        s = jax.lax.dot_general(
            q, k, (((1,), (1,)), ((), ())), preferred_element_type=jnp.float32
        )  # (S, S) f32
        s = s - jnp.max(s, axis=-1, keepdims=True)
        # TODO(synk): evaluate exp in bf16 on v6e/v7x if a bundle dump shows the
        # EUP slot is binding (keep f32 on v5e: no bf16 EUP).
        p = jnp.exp(s)
        inv = pl.reciprocal(jnp.sum(p, axis=-1, keepdims=True), approx=True)
        o = jnp.dot(p.astype(v.dtype), v, preferred_element_type=jnp.float32)
        # Write-as-you-go into the persistent f32 slab: bounds live ranges.
        acc_ref[:, lo:hi] = o * inv
    # Single lane-dense store of the whole (S, G*hd) slab, already in the
    # (B, S, C) layout the output projection consumes.
    o_ref[...] = acc_ref[...].astype(o_ref.dtype)


def _pick_head_group(batch, nh, hd, S, budget_bytes=6 * 1024 * 1024):
    """Pick how many heads each grid step processes.  A group is legal when its
    (S, G*hd) block is either the full channel width (G == nh) or 128-lane
    aligned.  Among legal, fitting groups prefer >=2 total grid steps (keeps
    both v7x TensorCores busy), then the most heads per step."""
    divisors = [d for d in range(1, nh + 1) if nh % d == 0]
    legal = [g for g in divisors if g == nh or (g * hd) % 128 == 0]

    def fits(g):
        gw = g * hd
        return (2 * S * S * 4            # scores + exp intermediate (f32)
                + S * gw * 4             # f32 output slab scratch
                + 2 * 3 * S * gw * 2     # double-buffered bf16 q/k/v blocks
                + 2 * S * gw * 2         # double-buffered bf16 output block
                ) <= budget_bytes

    fitting = [g for g in legal if fits(g)]
    if fitting:
        multi = [g for g in fitting if batch * (nh // g) >= 2]
        return max(multi) if multi else max(fitting)
    # Nothing fits the budget: smallest legal group (resource hazard only for
    # very large S, where even one head's SxS scores overflow VMEM).
    # TODO(synk): flash-style kv tiling (online softmax over S) for that case.
    return min(legal)


def attention_core_pallas(qkv3, num_heads, head_dim, scale):
    """qkv3: (3, B, S, C) bf16 (heads interleaved along C) -> (B, S, C) bf16."""
    _, B, S, C = qkv3.shape
    G = _pick_head_group(B, num_heads, head_dim, S)
    gw = G * head_dim

    q_spec = pl.BlockSpec((None, None, S, gw), lambda b, g: (0, b, 0, g))
    k_spec = pl.BlockSpec((None, None, S, gw), lambda b, g: (1, b, 0, g))
    v_spec = pl.BlockSpec((None, None, S, gw), lambda b, g: (2, b, 0, g))

    need = (2 * S * S * 4 + S * gw * 4 + 2 * 3 * S * gw * 2 + 2 * S * gw * 2)

    return pl.pallas_call(
        partial(_attn_kernel, scale=scale, hd=head_dim, group=G),
        out_shape=jax.ShapeDtypeStruct((B, S, C), jnp.bfloat16),
        grid=(B, num_heads // G),
        in_specs=[q_spec, k_spec, v_spec],
        out_specs=pl.BlockSpec((None, S, gw), lambda b, g: (b, 0, g)),
        scratch_shapes=[pltpu.VMEM((S, gw), jnp.float32)],
        compiler_params=pltpu.CompilerParams(
            dimension_semantics=("parallel", "parallel"),
            vmem_limit_bytes=_vmem_limit(need),
        ),
    )(qkv3, qkv3, qkv3)


# -----------------------------------------------------------------------------
# Full module forward (layout plumbing in plain JAX, compute in Pallas)
# -----------------------------------------------------------------------------
@partial(jax.jit, static_argnums=(2,))
def attention_forward(x, params, num_heads):
    """x: (B, H, W, C) float32 -> (B, H, W, C) float32."""
    B, H, W, C = x.shape
    head_dim = C // num_heads
    scale = head_dim ** (-0.5)
    S = H * W
    M = B * S

    # bf16 MXU inputs everywhere, f32 accumulation inside the kernels.
    x_flat = x.reshape(M, C).astype(jnp.bfloat16)

    # qkv weight (3C, C) -> (3, K=C, N=C): output columns of each split keep the
    # (head, head_dim) interleaving the PyTorch reshape expects.  Tiny, one-off.
    w_qkv = jnp.transpose(params["qkv_w"].reshape(3, C, C), (0, 2, 1))
    w_qkv = w_qkv.astype(jnp.bfloat16)                       # (3, C, C)
    b_qkv = params["qkv_b"].reshape(3, 1, C).astype(jnp.float32)

    # qkv projection lands directly as (3, M, C) bf16 -> no head-split relayout.
    qkv3 = linear_split_pallas(x_flat, w_qkv, b_qkv, out_dtype=jnp.bfloat16)
    qkv3 = qkv3.reshape(3, B, S, C)                          # free reshape

    # TODO(synk): rel-pos branch (add_decomposed_rel_pos) and cait=True path not
    # exercised by the default forward (use_rel_pos=False, cait=False).

    # Attention result lands directly in the (B, S, C) projection-input layout.
    o = attention_core_pallas(qkv3, num_heads, head_dim, scale)  # (B, S, C) bf16

    w_proj = params["proj_w"].T.reshape(1, C, C).astype(jnp.bfloat16)
    b_proj = params["proj_b"].reshape(1, 1, C).astype(jnp.float32)
    out = linear_split_pallas(
        o.reshape(M, C), w_proj, b_proj, out_dtype=jnp.float32
    )  # (1, M, C)
    return out.reshape(B, H, W, C)


# -----------------------------------------------------------------------------
# Pure-JAX f32 reference (for correctness check)
# -----------------------------------------------------------------------------
def attention_reference(x, params, num_heads):
    B, H, W, C = x.shape
    head_dim = C // num_heads
    scale = head_dim ** (-0.5)
    S = H * W
    qkv = x.reshape(B * S, C) @ params["qkv_w"].T + params["qkv_b"]
    qkv = qkv.reshape(B, S, 3, num_heads, head_dim)
    qkv = jnp.transpose(qkv, (2, 3, 0, 1, 4)).reshape(3, num_heads * B, S, head_dim)
    q, k, v = qkv[0], qkv[1], qkv[2]
    attn = (q * scale) @ jnp.swapaxes(k, -2, -1)
    attn = jax.nn.softmax(attn, axis=-1)
    o = attn @ v
    o = o.reshape(num_heads, B, H, W, head_dim)
    o = jnp.transpose(o, (1, 2, 3, 0, 4)).reshape(B * S, C)
    out = o @ params["proj_w"].T + params["proj_b"]
    return out.reshape(B, H, W, C)


if __name__ == "__main__":
    B, H, W, dim = 2, 8, 8, 32
    num_heads = 4

    key = jax.random.PRNGKey(0)
    kx, kqw, kqb, kpw, kpb = jax.random.split(key, 5)

    x = jax.random.normal(kx, (B, H, W, dim), dtype=jnp.float32)
    params = {
        "qkv_w": 0.02 * jax.random.normal(kqw, (3 * dim, dim), dtype=jnp.float32),
        "qkv_b": 0.02 * jax.random.normal(kqb, (3 * dim,), dtype=jnp.float32),
        "proj_w": 0.02 * jax.random.normal(kpw, (dim, dim), dtype=jnp.float32),
        "proj_b": 0.02 * jax.random.normal(kpb, (dim,), dtype=jnp.float32),
    }

    out = jax.block_until_ready(attention_forward(x, params, num_heads))
    ref = jax.block_until_ready(attention_reference(x, params, num_heads))

    assert out.shape == (B, H, W, dim), out.shape
    err = float(jnp.max(jnp.abs(out - ref)))
    # bf16 MXU inputs + approx reciprocal -> loosened tolerance vs f32 reference.
    assert err < 2e-2, f"max abs error {err}"
    print("KERNEL_OK")
</pallas_src>

<mosaic_0001>
module attributes {stable_mosaic.version = 11 : i64} {
  func.func @_linear_kernel(%arg0: i32, %arg1: i32, %arg2: i32, %arg3: i32, %arg4: memref<128x32xbf16, #tpu.memory_space<vmem>>, %arg5: memref<1x32x32xbf16, #tpu.memory_space<vmem>>, %arg6: memref<1x1x32xf32, #tpu.memory_space<vmem>>, %arg7: memref<1x128x32xbf16, #tpu.memory_space<vmem>>, %arg8: memref<128x32xf32, #tpu.memory_space<vmem>>) attributes {dimension_semantics = [#tpu.dimension_semantics<parallel>, #tpu.dimension_semantics<parallel>, #tpu.dimension_semantics<parallel>, #tpu.dimension_semantics<arbitrary>], iteration_bounds = array<i64: 3, 1, 1, 1>, scalar_prefetch = 0 : i64, scratch_operands = 1 : i64, tpu.core_type = #tpu.core_type<tc>, window_params = [{transform_indices = @transform_0, window_bounds = array<i64: 128, 32>}, {transform_indices = @transform_1, window_bounds = array<i64: 1, 32, 32>}, {transform_indices = @transform_2, window_bounds = array<i64: 1, 1, 32>}, {transform_indices = @transform_3, window_bounds = array<i64: 1, 128, 32>}]} {
    %c0_i32 = arith.constant 0 : i32
    %0 = arith.cmpi eq, %arg3, %c0_i32 : i32
    %1 = arith.extui %0 : i1 to i32
    %c0_i32_0 = arith.constant 0 : i32
    %2 = arith.cmpi ne, %1, %c0_i32_0 : i32
    scf.if %2 {
      %cst_11 = arith.constant 0.000000e+00 : f32
      %13 = vector.broadcast %cst_11 : f32 to vector<128x32xf32>
      %c0_12 = arith.constant 0 : index
      %c0_13 = arith.constant 0 : index
      %14 = vector.load %arg8[%c0_12, %c0_13] : memref<128x32xf32, #tpu.memory_space<vmem>>, vector<128x32xf32>
      tpu.vector_store %arg8[%c0_12, %c0_13], %13 {strides = array<i32>} : memref<128x32xf32, #tpu.memory_space<vmem>>, vector<128x32xf32>,
    } else {
    }
    %c0 = arith.constant 0 : index
    %c0_1 = arith.constant 0 : index
    %3 = vector.load %arg8[%c0, %c0_1] : memref<128x32xf32, #tpu.memory_space<vmem>>, vector<128x32xf32>
    %c0_2 = arith.constant 0 : index
    %c0_3 = arith.constant 0 : index
    %4 = vector.load %arg4[%c0_2, %c0_3] : memref<128x32xbf16, #tpu.memory_space<vmem>>, vector<128x32xbf16>
    %c0_4 = arith.constant 0 : index
    %c0_5 = arith.constant 0 : index
    %c0_6 = arith.constant 0 : index
    %5 = vector.load %arg5[%c0_4, %c0_5, %c0_6] : memref<1x32x32xbf16, #tpu.memory_space<vmem>>, vector<1x32x32xbf16>
    %6 = vector.shape_cast %5 : vector<1x32x32xbf16> to vector<32x32xbf16>
    %cst = arith.constant dense<0.000000e+00> : vector<128x32xf32>
    %7 = tpu.matmul %4, %6, %cst {dimension_numbers = #tpu.dot_dimension_numbers<[1], [0], [0], [1], [0, 0, 1, 1], [], []>} : vector<128x32xbf16>, vector<32x32xbf16>, vector<128x32xf32> -> vector<128x32xf32>
    %8 = arith.addf %3, %7 : vector<128x32xf32>
    %c0_7 = arith.constant 0 : index
    %c0_8 = arith.constant 0 : index
    %9 = vector.load %arg8[%c0_7, %c0_8] : memref<128x32xf32, #tpu.memory_space<vmem>>, vector<128x32xf32>
    tpu.vector_store %arg8[%c0_7, %c0_8], %8 {strides = array<i32>} : memref<128x32xf32, #tpu.memory_space<vmem>>, vector<128x32xf32>,
    %c0_i32_9 = arith.constant 0 : i32
    %10 = arith.cmpi eq, %arg3, %c0_i32_9 : i32
    %11 = arith.extui %10 : i1 to i32
    %c0_i32_10 = arith.constant 0 : i32
    %12 = arith.cmpi ne, %11, %c0_i32_10 : i32
    scf.if %12 {
      %c0_11 = arith.constant 0 : index
      %c0_12 = arith.constant 0 : index
      %13 = vector.load %arg8[%c0_11, %c0_12] : memref<128x32xf32, #tpu.memory_space<vmem>>, vector<128x32xf32>
      %c0_13 = arith.constant 0 : index
      %c0_14 = arith.constant 0 : index
      %c0_15 = arith.constant 0 : index
      %14 = vector.load %arg6[%c0_13, %c0_14, %c0_15] : memref<1x1x32xf32, #tpu.memory_space<vmem>>, vector<1x1x32xf32>
      %15 = vector.shape_cast %14 : vector<1x1x32xf32> to vector<1x32xf32>
      %16 = vector.broadcast %15 : vector<1x32xf32> to vector<128x32xf32>
      %17 = arith.addf %13, %16 : vector<128x32xf32>
      %18 = arith.truncf %17 : vector<128x32xf32> to vector<128x32xbf16>
      %c0_16 = arith.constant 0 : index
      %c0_17 = arith.constant 0 : index
      %c0_18 = arith.constant 0 : index
      %19 = vector.load %arg7[%c0_16, %c0_17, %c0_18] : memref<1x128x32xbf16, #tpu.memory_space<vmem>>, vector<1x128x32xbf16>
      %20 = vector.shape_cast %19 : vector<1x128x32xbf16> to vector<128x32xbf16>
      %21 = vector.shape_cast %18 : vector<128x32xbf16> to vector<1x128x32xbf16>
      tpu.vector_store %arg7[%c0_16, %c0_17, %c0_18], %21 {strides = array<i32>} : memref<1x128x32xbf16, #tpu.memory_space<vmem>>, vector<1x128x32xbf16>,
    } else {
    }
    return
  }
  func.func @transform_0(%arg0: i32, %arg1: i32, %arg2: i32, %arg3: i32) -> (i32, i32) {
    %c0_i32 = arith.constant 0 : i32
    return %arg1, %arg3 : i32, i32
  }
  func.func @transform_1(%arg0: i32, %arg1: i32, %arg2: i32, %arg3: i32) -> (i32, i32, i32) {
    %c0_i32 = arith.constant 0 : i32
    return %arg0, %arg3, %arg2 : i32, i32, i32
  }
  func.func @transform_2(%arg0: i32, %arg1: i32, %arg2: i32, %arg3: i32) -> (i32, i32, i32) {
    %c0_i32 = arith.constant 0 : i32
    %c0_i32_0 = arith.constant 0 : i32
    return %arg0, %c0_i32, %arg2 : i32, i32, i32
  }
  func.func @transform_3(%arg0: i32, %arg1: i32, %arg2: i32, %arg3: i32) -> (i32, i32, i32) {
    %c0_i32 = arith.constant 0 : i32
    return %arg0, %arg1, %arg2 : i32, i32, i32
  }
}

module attributes {stable_mosaic.version = 11 : i64} {
  func.func @_attn_kernel(%arg0: i32, %arg1: i32, %arg2: memref<1x1x64x32xbf16, #tpu.memory_space<vmem>>, %arg3: memref<1x1x64x32xbf16, #tpu.memory_space<vmem>>, %arg4: memref<1x1x64x32xbf16, #tpu.memory_space<vmem>>, %arg5: memref<1x64x32xbf16, #tpu.memory_space<vmem>>, %arg6: memref<64x32xf32, #tpu.memory_space<vmem>>) attributes {dimension_semantics = [#tpu.dimension_semantics<parallel>, #tpu.dimension_semantics<parallel>], iteration_bounds = array<i64: 2, 1>, scalar_prefetch = 0 : i64, scratch_operands = 1 : i64, tpu.core_type = #tpu.core_type<tc>, window_params = [{transform_indices = @transform_0, window_bounds = array<i64: 1, 1, 64, 32>}, {transform_indices = @transform_1, window_bounds = array<i64: 1, 1, 64, 32>}, {transform_indices = @transform_2, window_bounds = array<i64: 1, 1, 64, 32>}, {transform_indices = @transform_3, window_bounds = array<i64: 1, 64, 32>}]} {
    %c0 = arith.constant 0 : index
    %c0_0 = arith.constant 0 : index
    %c0_1 = arith.constant 0 : index
    %c0_2 = arith.constant 0 : index
    %0 = vector.load %arg2[%c0, %c0_0, %c0_1, %c0_2] : memref<1x1x64x32xbf16, #tpu.memory_space<vmem>>, vector<1x1x64x8xbf16>
    %1 = vector.shape_cast %0 : vector<1x1x64x8xbf16> to vector<64x8xbf16>
    %cst = arith.constant 3.535160e-01 : bf16
    %2 = vector.broadcast %cst : bf16 to vector<64x8xbf16>
    %3 = arith.mulf %1, %2 : vector<64x8xbf16>
    %c0_3 = arith.constant 0 : index
    %c0_4 = arith.constant 0 : index
    %c0_5 = arith.constant 0 : index
    %c0_6 = arith.constant 0 : index
    %4 = vector.load %arg3[%c0_3, %c0_4, %c0_5, %c0_6] : memref<1x1x64x32xbf16, #tpu.memory_space<vmem>>, vector<1x1x64x8xbf16>
    %5 = vector.shape_cast %4 : vector<1x1x64x8xbf16> to vector<64x8xbf16>
    %c0_7 = arith.constant 0 : index
    %c0_8 = arith.constant 0 : index
    %c0_9 = arith.constant 0 : index
    %c0_10 = arith.constant 0 : index
    %6 = vector.load %arg4[%c0_7, %c0_8, %c0_9, %c0_10] : memref<1x1x64x32xbf16, #tpu.memory_space<vmem>>, vector<1x1x64x8xbf16>
    %7 = vector.shape_cast %6 : vector<1x1x64x8xbf16> to vector<64x8xbf16>
    %cst_11 = arith.constant dense<0.000000e+00> : vector<64x64xf32>
    %8 = tpu.matmul %3, %5, %cst_11 {dimension_numbers = #tpu.dot_dimension_numbers<[1], [1], [0], [0], [0, 0, 1, 0], [], []>} : vector<64x8xbf16>, vector<64x8xbf16>, vector<64x64xf32> -> vector<64x64xf32>
    %cst_12 = arith.constant dense<0xFF800000> : vector<64xf32>
    %9 = vector.multi_reduction <maximumf>, %8, %cst_12 [1] : vector<64x64xf32> to vector<64xf32>
    %10 = vector.shape_cast %9 : vector<64xf32> to vector<64x1xf32>
    %11 = vector.broadcast %10 : vector<64x1xf32> to vector<64x64xf32>
    %12 = arith.subf %8, %11 : vector<64x64xf32>
    %13 = math.exp %12 : vector<64x64xf32>
    %cst_13 = arith.constant dense<0.000000e+00> : vector<64xf32>
    %14 = vector.multi_reduction <add>, %13, %cst_13 [1] : vector<64x64xf32> to vector<64xf32>
    %15 = vector.shape_cast %14 : vector<64xf32> to vector<64x1xf32>
    %16 = tpu.reciprocal %15 {approx = true} : vector<64x1xf32> -> vector<64x1xf32>
    %17 = arith.truncf %13 : vector<64x64xf32> to vector<64x64xbf16>
    %cst_14 = arith.constant dense<0.000000e+00> : vector<64x8xf32>
    %18 = tpu.matmul %17, %7, %cst_14 {dimension_numbers = #tpu.dot_dimension_numbers<[1], [0], [0], [1], [0, 0, 1, 1], [], []>} : vector<64x64xbf16>, vector<64x8xbf16>, vector<64x8xf32> -> vector<64x8xf32>
    %19 = vector.broadcast %16 : vector<64x1xf32> to vector<64x8xf32>
    %20 = arith.mulf %18, %19 : vector<64x8xf32>
    %c0_15 = arith.constant 0 : index
    %c0_16 = arith.constant 0 : index
    %21 = vector.load %arg6[%c0_15, %c0_16] : memref<64x32xf32, #tpu.memory_space<vmem>>, vector<64x8xf32>
    tpu.vector_store %arg6[%c0_15, %c0_16], %20 {strides = array<i32>} : memref<64x32xf32, #tpu.memory_space<vmem>>, vector<64x8xf32>,
    %c0_17 = arith.constant 0 : index
    %c0_18 = arith.constant 0 : index
    %c0_19 = arith.constant 0 : index
    %c8 = arith.constant 8 : index
    %22 = vector.load %arg2[%c0_17, %c0_18, %c0_19, %c8] : memref<1x1x64x32xbf16, #tpu.memory_space<vmem>>, vector<1x1x64x8xbf16>
    %23 = vector.shape_cast %22 : vector<1x1x64x8xbf16> to vector<64x8xbf16>
    %cst_20 = arith.constant 3.535160e-01 : bf16
    %24 = vector.broadcast %cst_20 : bf16 to vector<64x8xbf16>
    %25 = arith.mulf %23, %24 : vector<64x8xbf16>
    %c0_21 = arith.constant 0 : index
    %c0_22 = arith.constant 0 : index
    %c0_23 = arith.constant 0 : index
    %c8_24 = arith.constant 8 : index
    %26 = vector.load %arg3[%c0_21, %c0_22, %c0_23, %c8_24] : memref<1x1x64x32xbf16, #tpu.memory_space<vmem>>, vector<1x1x64x8xbf16>
    %27 = vector.shape_cast %26 : vector<1x1x64x8xbf16> to vector<64x8xbf16>
    %c0_25 = arith.constant 0 : index
    %c0_26 = arith.constant 0 : index
    %c0_27 = arith.constant 0 : index
    %c8_28 = arith.constant 8 : index
    %28 = vector.load %arg4[%c0_25, %c0_26, %c0_27, %c8_28] : memref<1x1x64x32xbf16, #tpu.memory_space<vmem>>, vector<1x1x64x8xbf16>
    %29 = vector.shape_cast %28 : vector<1x1x64x8xbf16> to vector<64x8xbf16>
    %cst_29 = arith.constant dense<0.000000e+00> : vector<64x64xf32>
    %30 = tpu.matmul %25, %27, %cst_29 {dimension_numbers = #tpu.dot_dimension_numbers<[1], [1], [0], [0], [0, 0, 1, 0], [], []>} : vector<64x8xbf16>, vector<64x8xbf16>, vector<64x64xf32> -> vector<64x64xf32>
    %cst_30 = arith.constant dense<0xFF800000> : vector<64xf32>
    %31 = vector.multi_reduction <maximumf>, %30, %cst_30 [1] : vector<64x64xf32> to vector<64xf32>
    %32 = vector.shape_cast %31 : vector<64xf32> to vector<64x1xf32>
    %33 = vector.broadcast %32 : vector<64x1xf32> to vector<64x64xf32>
    %34 = arith.subf %30, %33 : vector<64x64xf32>
    %35 = math.exp %34 : vector<64x64xf32>
    %cst_31 = arith.constant dense<0.000000e+00> : vector<64xf32>
    %36 = vector.multi_reduction <add>, %35, %cst_31 [1] : vector<64x64xf32> to vector<64xf32>
    %37 = vector.shape_cast %36 : vector<64xf32> to vector<64x1xf32>
    %38 = tpu.reciprocal %37 {approx = true} : vector<64x1xf32> -> vector<64x1xf32>
    %39 = arith.truncf %35 : vector<64x64xf32> to vector<64x64xbf16>
    %cst_32 = arith.constant dense<0.000000e+00> : vector<64x8xf32>
    %40 = tpu.matmul %39, %29, %cst_32 {dimension_numbers = #tpu.dot_dimension_numbers<[1], [0], [0], [1], [0, 0, 1, 1], [], []>} : vector<64x64xbf16>, vector<64x8xbf16>, vector<64x8xf32> -> vector<64x8xf32>
    %41 = vector.broadcast %38 : vector<64x1xf32> to vector<64x8xf32>
    %42 = arith.mulf %40, %41 : vector<64x8xf32>
    %c0_33 = arith.constant 0 : index
    %c8_34 = arith.constant 8 : index
    %43 = vector.load %arg6[%c0_33, %c8_34] : memref<64x32xf32, #tpu.memory_space<vmem>>, vector<64x8xf32>
    tpu.vector_store %arg6[%c0_33, %c8_34], %42 {strides = array<i32>} : memref<64x32xf32, #tpu.memory_space<vmem>>, vector<64x8xf32>,
    %c0_35 = arith.constant 0 : index
    %c0_36 = arith.constant 0 : index
    %c0_37 = arith.constant 0 : index
    %c16 = arith.constant 16 : index
    %44 = vector.load %arg2[%c0_35, %c0_36, %c0_37, %c16] : memref<1x1x64x32xbf16, #tpu.memory_space<vmem>>, vector<1x1x64x8xbf16>
    %45 = vector.shape_cast %44 : vector<1x1x64x8xbf16> to vector<64x8xbf16>
    %cst_38 = arith.constant 3.535160e-01 : bf16
    %46 = vector.broadcast %cst_38 : bf16 to vector<64x8xbf16>
    %47 = arith.mulf %45, %46 : vector<64x8xbf16>
    %c0_39 = arith.constant 0 : index
    %c0_40 = arith.constant 0 : index
    %c0_41 = arith.constant 0 : index
    %c16_42 = arith.constant 16 : index
    %48 = vector.load %arg3[%c0_39, %c0_40, %c0_41, %c16_42] : memref<1x1x64x32xbf16, #tpu.memory_space<vmem>>, vector<1x1x64x8xbf16>
    %49 = vector.shape_cast %48 : vector<1x1x64x8xbf16> to vector<64x8xbf16>
    %c0_43 = arith.constant 0 : index
    %c0_44 = arith.constant 0 : index
    %c0_45 = arith.constant 0 : index
    %c16_46 = arith.constant 16 : index
    %50 = vector.load %arg4[%c0_43, %c0_44, %c0_45, %c16_46] : memref<1x1x64x32xbf16, #tpu.memory_space<vmem>>, vector<1x1x64x8xbf16>
    %51 = vector.shape_cast %50 : vector<1x1x64x8xbf16> to vector<64x8xbf16>
    %cst_47 = arith.constant dense<0.000000e+00> : vector<64x64xf32>
    %52 = tpu.matmul %47, %49, %cst_47 {dimension_numbers = #tpu.dot_dimension_numbers<[1], [1], [0], [0], [0, 0, 1, 0], [], []>} : vector<64x8xbf16>, vector<64x8xbf16>, vector<64x64xf32> -> vector<64x64xf32>
    %cst_48 = arith.constant dense<0xFF800000> : vector<64xf32>
    %53 = vector.multi_reduction <maximumf>, %52, %cst_48 [1] : vector<64x64xf32> to vector<64xf32>
    %54 = vector.shape_cast %53 : vector<64xf32> to vector<64x1xf32>
    %55 = vector.broadcast %54 : vector<64x1xf32> to vector<64x64xf32>
    %56 = arith.subf %52, %55 : vector<64x64xf32>
    %57 = math.exp %56 : vector<64x64xf32>
    %cst_49 = arith.constant dense<0.000000e+00> : vector<64xf32>
    %58 = vector.multi_reduction <add>, %57, %cst_49 [1] : vector<64x64xf32> to vector<64xf32>
    %59 = vector.shape_cast %58 : vector<64xf32> to vector<64x1xf32>
    %60 = tpu.reciprocal %59 {approx = true} : vector<64x1xf32> -> vector<64x1xf32>
    %61 = arith.truncf %57 : vector<64x64xf32> to vector<64x64xbf16>
    %cst_50 = arith.constant dense<0.000000e+00> : vector<64x8xf32>
    %62 = tpu.matmul %61, %51, %cst_50 {dimension_numbers = #tpu.dot_dimension_numbers<[1], [0], [0], [1], [0, 0, 1, 1], [], []>} : vector<64x64xbf16>, vector<64x8xbf16>, vector<64x8xf32> -> vector<64x8xf32>
    %63 = vector.broadcast %60 : vector<64x1xf32> to vector<64x8xf32>
    %64 = arith.mulf %62, %63 : vector<64x8xf32>
    %c0_51 = arith.constant 0 : index
    %c16_52 = arith.constant 16 : index
    %65 = vector.load %arg6[%c0_51, %c16_52] : memref<64x32xf32, #tpu.memory_space<vmem>>, vector<64x8xf32>
    tpu.vector_store %arg6[%c0_51, %c16_52], %64 {strides = array<i32>} : memref<64x32xf32, #tpu.memory_space<vmem>>, vector<64x8xf32>,
    %c0_53 = arith.constant 0 : index
    %c0_54 = arith.constant 0 : index
    %c0_55 = arith.constant 0 : index
    %c24 = arith.constant 24 : index
    %66 = vector.load %arg2[%c0_53, %c0_54, %c0_55, %c24] : memref<1x1x64x32xbf16, #tpu.memory_space<vmem>>, vector<1x1x64x8xbf16>
    %67 = vector.shape_cast %66 : vector<1x1x64x8xbf16> to vector<64x8xbf16>
    %cst_56 = arith.constant 3.535160e-01 : bf16
    %68 = vector.broadcast %cst_56 : bf16 to vector<64x8xbf16>
    %69 = arith.mulf %67, %68 : vector<64x8xbf16>
    %c0_57 = arith.constant 0 : index
    %c0_58 = arith.constant 0 : index
    %c0_59 = arith.constant 0 : index
    %c24_60 = arith.constant 24 : index
    %70 = vector.load %arg3[%c0_57, %c0_58, %c0_59, %c24_60] : memref<1x1x64x32xbf16, #tpu.memory_space<vmem>>, vector<1x1x64x8xbf16>
    %71 = vector.shape_cast %70 : vector<1x1x64x8xbf16> to vector<64x8xbf16>
    %c0_61 = arith.constant 0 : index
    %c0_62 = arith.constant 0 : index
    %c0_63 = arith.constant 0 : index
    %c24_64 = arith.constant 24 : index
    %72 = vector.load %arg4[%c0_61, %c0_62, %c0_63, %c24_64] : memref<1x1x64x32xbf16, #tpu.memory_space<vmem>>, vector<1x1x64x8xbf16>
    %73 = vector.shape_cast %72 : vector<1x1x64x8xbf16> to vector<64x8xbf16>
    %cst_65 = arith.constant dense<0.000000e+00> : vector<64x64xf32>
    %74 = tpu.matmul %69, %71, %cst_65 {dimension_numbers = #tpu.dot_dimension_numbers<[1], [1], [0], [0], [0, 0, 1, 0], [], []>} : vector<64x8xbf16>, vector<64x8xbf16>, vector<64x64xf32> -> vector<64x64xf32>
    %cst_66 = arith.constant dense<0xFF800000> : vector<64xf32>
    %75 = vector.multi_reduction <maximumf>, %74, %cst_66 [1] : vector<64x64xf32> to vector<64xf32>
    %76 = vector.shape_cast %75 : vector<64xf32> to vector<64x1xf32>
    %77 = vector.broadcast %76 : vector<64x1xf32> to vector<64x64xf32>
    %78 = arith.subf %74, %77 : vector<64x64xf32>
    %79 = math.exp %78 : vector<64x64xf32>
    %cst_67 = arith.constant dense<0.000000e+00> : vector<64xf32>
    %80 = vector.multi_reduction <add>, %79, %cst_67 [1] : vector<64x64xf32> to vector<64xf32>
    %81 = vector.shape_cast %80 : vector<64xf32> to vector<64x1xf32>
    %82 = tpu.reciprocal %81 {approx = true} : vector<64x1xf32> -> vector<64x1xf32>
    %83 = arith.truncf %79 : vector<64x64xf32> to vector<64x64xbf16>
    %cst_68 = arith.constant dense<0.000000e+00> : vector<64x8xf32>
    %84 = tpu.matmul %83, %73, %cst_68 {dimension_numbers = #tpu.dot_dimension_numbers<[1], [0], [0], [1], [0, 0, 1, 1], [], []>} : vector<64x64xbf16>, vector<64x8xbf16>, vector<64x8xf32> -> vector<64x8xf32>
    %85 = vector.broadcast %82 : vector<64x1xf32> to vector<64x8xf32>
    %86 = arith.mulf %84, %85 : vector<64x8xf32>
    %c0_69 = arith.constant 0 : index
    %c24_70 = arith.constant 24 : index
    %87 = vector.load %arg6[%c0_69, %c24_70] : memref<64x32xf32, #tpu.memory_space<vmem>>, vector<64x8xf32>
    tpu.vector_store %arg6[%c0_69, %c24_70], %86 {strides = array<i32>} : memref<64x32xf32, #tpu.memory_space<vmem>>, vector<64x8xf32>,
    %c0_71 = arith.constant 0 : index
    %c0_72 = arith.constant 0 : index
    %88 = vector.load %arg6[%c0_71, %c0_72] : memref<64x32xf32, #tpu.memory_space<vmem>>, vector<64x32xf32>
    %89 = arith.truncf %88 : vector<64x32xf32> to vector<64x32xbf16>
    %c0_73 = arith.constant 0 : index
    %c0_74 = arith.constant 0 : index
    %c0_75 = arith.constant 0 : index
    %90 = vector.load %arg5[%c0_73, %c0_74, %c0_75] : memref<1x64x32xbf16, #tpu.memory_space<vmem>>, vector<1x64x32xbf16>
    %91 = vector.shape_cast %90 : vector<1x64x32xbf16> to vector<64x32xbf16>
    %92 = vector.shape_cast %89 : vector<64x32xbf16> to vector<1x64x32xbf16>
    tpu.vector_store %arg5[%c0_73, %c0_74, %c0_75], %92 {strides = array<i32>} : memref<1x64x32xbf16, #tpu.memory_space<vmem>>, vector<1x64x32xbf16>,
    return
  }
  func.func @transform_0(%arg0: i32, %arg1: i32) -> (i32, i32, i32, i32) {
    %c0_i32 = arith.constant 0 : i32
    %c0_i32_0 = arith.constant 0 : i32
    %c0_i32_1 = arith.constant 0 : i32
    return %c0_i32, %arg0, %c0_i32_0, %arg1 : i32, i32, i32, i32
  }
  func.func @transform_1(%arg0: i32, %arg1: i32) -> (i32, i32, i32, i32) {
    %c1_i32 = arith.constant 1 : i32
    %c0_i32 = arith.constant 0 : i32
    %c0_i32_0 = arith.constant 0 : i32
    return %c1_i32, %arg0, %c0_i32, %arg1 : i32, i32, i32, i32
  }
  func.func @transform_2(%arg0: i32, %arg1: i32) -> (i32, i32, i32, i32) {
    %c2_i32 = arith.constant 2 : i32
    %c0_i32 = arith.constant 0 : i32
    %c0_i32_0 = arith.constant 0 : i32
    return %c2_i32, %arg0, %c0_i32, %arg1 : i32, i32, i32, i32
  }
  func.func @transform_3(%arg0: i32, %arg1: i32) -> (i32, i32, i32) {
    %c0_i32 = arith.constant 0 : i32
    %c0_i32_0 = arith.constant 0 : i32
    return %arg0, %c0_i32, %arg1 : i32, i32, i32
  }
}

module attributes {stable_mosaic.version = 11 : i64} {
  func.func @_linear_kernel(%arg0: i32, %arg1: i32, %arg2: i32, %arg3: i32, %arg4: memref<128x32xbf16, #tpu.memory_space<vmem>>, %arg5: memref<1x32x32xbf16, #tpu.memory_space<vmem>>, %arg6: memref<1x1x32xf32, #tpu.memory_space<vmem>>, %arg7: memref<1x128x32xf32, #tpu.memory_space<vmem>>, %arg8: memref<128x32xf32, #tpu.memory_space<vmem>>) attributes {dimension_semantics = [#tpu.dimension_semantics<parallel>, #tpu.dimension_semantics<parallel>, #tpu.dimension_semantics<parallel>, #tpu.dimension_semantics<arbitrary>], iteration_bounds = array<i64: 1, 1, 1, 1>, scalar_prefetch = 0 : i64, scratch_operands = 1 : i64, tpu.core_type = #tpu.core_type<tc>, window_params = [{transform_indices = @transform_0, window_bounds = array<i64: 128, 32>}, {transform_indices = @transform_1, window_bounds = array<i64: 1, 32, 32>}, {transform_indices = @transform_2, window_bounds = array<i64: 1, 1, 32>}, {transform_indices = @transform_3, window_bounds = array<i64: 1, 128, 32>}]} {
    %c0_i32 = arith.constant 0 : i32
    %0 = arith.cmpi eq, %arg3, %c0_i32 : i32
    %1 = arith.extui %0 : i1 to i32
    %c0_i32_0 = arith.constant 0 : i32
    %2 = arith.cmpi ne, %1, %c0_i32_0 : i32
    scf.if %2 {
      %cst_11 = arith.constant 0.000000e+00 : f32
      %13 = vector.broadcast %cst_11 : f32 to vector<128x32xf32>
      %c0_12 = arith.constant 0 : index
      %c0_13 = arith.constant 0 : index
      %14 = vector.load %arg8[%c0_12, %c0_13] : memref<128x32xf32, #tpu.memory_space<vmem>>, vector<128x32xf32>
      tpu.vector_store %arg8[%c0_12, %c0_13], %13 {strides = array<i32>} : memref<128x32xf32, #tpu.memory_space<vmem>>, vector<128x32xf32>,
    } else {
    }
    %c0 = arith.constant 0 : index
    %c0_1 = arith.constant 0 : index
    %3 = vector.load %arg8[%c0, %c0_1] : memref<128x32xf32, #tpu.memory_space<vmem>>, vector<128x32xf32>
    %c0_2 = arith.constant 0 : index
    %c0_3 = arith.constant 0 : index
    %4 = vector.load %arg4[%c0_2, %c0_3] : memref<128x32xbf16, #tpu.memory_space<vmem>>, vector<128x32xbf16>
    %c0_4 = arith.constant 0 : index
    %c0_5 = arith.constant 0 : index
    %c0_6 = arith.constant 0 : index
    %5 = vector.load %arg5[%c0_4, %c0_5, %c0_6] : memref<1x32x32xbf16, #tpu.memory_space<vmem>>, vector<1x32x32xbf16>
    %6 = vector.shape_cast %5 : vector<1x32x32xbf16> to vector<32x32xbf16>
    %cst = arith.constant dense<0.000000e+00> : vector<128x32xf32>
    %7 = tpu.matmul %4, %6, %cst {dimension_numbers = #tpu.dot_dimension_numbers<[1], [0], [0], [1], [0, 0, 1, 1], [], []>} : vector<128x32xbf16>, vector<32x32xbf16>, vector<128x32xf32> -> vector<128x32xf32>
    %8 = arith.addf %3, %7 : vector<128x32xf32>
    %c0_7 = arith.constant 0 : index
    %c0_8 = arith.constant 0 : index
    %9 = vector.load %arg8[%c0_7, %c0_8] : memref<128x32xf32, #tpu.memory_space<vmem>>, vector<128x32xf32>
    tpu.vector_store %arg8[%c0_7, %c0_8], %8 {strides = array<i32>} : memref<128x32xf32, #tpu.memory_space<vmem>>, vector<128x32xf32>,
    %c0_i32_9 = arith.constant 0 : i32
    %10 = arith.cmpi eq, %arg3, %c0_i32_9 : i32
    %11 = arith.extui %10 : i1 to i32
    %c0_i32_10 = arith.constant 0 : i32
    %12 = arith.cmpi ne, %11, %c0_i32_10 : i32
    scf.if %12 {
      %c0_11 = arith.constant 0 : index
      %c0_12 = arith.constant 0 : index
      %13 = vector.load %arg8[%c0_11, %c0_12] : memref<128x32xf32, #tpu.memory_space<vmem>>, vector<128x32xf32>
      %c0_13 = arith.constant 0 : index
      %c0_14 = arith.constant 0 : index
      %c0_15 = arith.constant 0 : index
      %14 = vector.load %arg6[%c0_13, %c0_14, %c0_15] : memref<1x1x32xf32, #tpu.memory_space<vmem>>, vector<1x1x32xf32>
      %15 = vector.shape_cast %14 : vector<1x1x32xf32> to vector<1x32xf32>
      %16 = vector.broadcast %15 : vector<1x32xf32> to vector<128x32xf32>
      %17 = arith.addf %13, %16 : vector<128x32xf32>
      %c0_16 = arith.constant 0 : index
      %c0_17 = arith.constant 0 : index
      %c0_18 = arith.constant 0 : index
      %18 = vector.load %arg7[%c0_16, %c0_17, %c0_18] : memref<1x128x32xf32, #tpu.memory_space<vmem>>, vector<1x128x32xf32>
      %19 = vector.shape_cast %18 : vector<1x128x32xf32> to vector<128x32xf32>
      %20 = vector.shape_cast %17 : vector<128x32xf32> to vector<1x128x32xf32>
      tpu.vector_store %arg7[%c0_16, %c0_17, %c0_18], %20 {strides = array<i32>} : memref<1x128x32xf32, #tpu.memory_space<vmem>>, vector<1x128x32xf32>,
    } else {
    }
    return
  }
  func.func @transform_0(%arg0: i32, %arg1: i32, %arg2: i32, %arg3: i32) -> (i32, i32) {
    %c0_i32 = arith.constant 0 : i32
    return %arg1, %arg3 : i32, i32
  }
  func.func @transform_1(%arg0: i32, %arg1: i32, %arg2: i32, %arg3: i32) -> (i32, i32, i32) {
    %c0_i32 = arith.constant 0 : i32
    return %arg0, %arg3, %arg2 : i32, i32, i32
  }
  func.func @transform_2(%arg0: i32, %arg1: i32, %arg2: i32, %arg3: i32) -> (i32, i32, i32) {
    %c0_i32 = arith.constant 0 : i32
    %c0_i32_0 = arith.constant 0 : i32
    return %arg0, %c0_i32, %arg2 : i32, i32, i32
  }
  func.func @transform_3(%arg0: i32, %arg1: i32, %arg2: i32, %arg3: i32) -> (i32, i32, i32) {
    %c0_i32 = arith.constant 0 : i32
    return %arg0, %arg1, %arg2 : i32, i32, i32
  }
}

</mosaic_0001>

<llo_original>
// kernel: attention_forward.5
$region0: #{attention_forward.5}
  #allocation0 [shape = 'u32[]', space=smem, size = 0x4, offset = 0x4, fixed_abs, tag = 'smem constant byte address 0x4 - core index']
  #allocation1 [shape = 'u32[144,128]{1,0:T(1,128)}', space=vmem, size = 0x12000, scoped, tag = 'internal scratch']
  #allocation2 [shape = 'f32[128,32]{1,0:T(8,128)}', space=vmem, size = 0x10000, scoped, tag = 'scratch operand']
  %s0 = inlined_call_operand.vmem [shape: bf16[128,32], index: 0, kind: input, shape index: {}]
  %s1 = inlined_call_operand.vmem [shape: bf16[1,32,32], index: 1, kind: input, shape index: {}]
  %s2 = inlined_call_operand.vmem [shape: f32[1,1,32], index: 2, kind: input, shape index: {}]
  %s3 = inlined_call_operand.hbm [shape: f32[1,128,32], index: 3, kind: output, shape index: {}]
  %s4 = sld [smem:[#allocation0]]
  $region30: #{attention_forward.5} parent=0
    _
  %s6 = ssub.s32 1, %s4
  %s7 = scalar_select 0, %s6, %s4
  $region1: #{attention_forward.5} parent=0
    #allocation3 [shape = 'u8[65536]{0}', space=vmem, size = 0x10000, scoped, tag = 'output window, operand 0, single buffered']
    #allocation4 [shape = 's32[1]{0}', space=sflag, size = 0x4, scoped, tag = 'scoped memory for attention_forward.5']
    %8 = vsyncpa [#allocation4], 0
    // Predicated region
    $region2: #{attention_forward.5} parent=1 // pred_check
      _
    $region3: #{attention_forward.5} parent=1 // pred_check_branch
      %10 = sbr.rel (0) target = $region5
    $region4: #{attention_forward.5} parent=1 // pred_region
      _
    $region5: #{attention_forward.5} parent=1 // pred_fallthru
      _
    // Predicated region
    $region6: #{attention_forward.5} parent=1 // pred_check
      _
    $region7: #{attention_forward.5} parent=1 // pred_check_branch
      %12 = sbr.rel (0) target = $region9
    $region8: #{attention_forward.5} parent=1 // pred_region
      _
    $region9: #{attention_forward.5} parent=1 // pred_fallthru
      _
    // Predicated region
    $region10: #{attention_forward.5} parent=1 // pred_check
      _
    $region11: #{attention_forward.5} parent=1 // pred_check_branch
      %14 = sbr.rel (0) target = $region13
    $region12: #{attention_forward.5} parent=1 // pred_region
      _
    $region13: #{attention_forward.5} parent=1 // pred_fallthru
      _
    %p16 = scmp.eq.s32.totalorder 0, 0
    // Predicated region
    $region14: #{attention_forward.5} parent=1 // pred_check
      %p17 = pneg %p16
    $region15: #{attention_forward.5} parent=1 // pred_check_branch
      %19 = sbr.rel (%p17) target = $region17
    $region16: #{attention_forward.5} parent=1 // pred_region
      %vm20 = vcmask 261120
      %21 = vst.msk [vmem:[#allocation2] sm:$0xff] %vm20, 0.0
      %22 = vst.msk [vmem:[#allocation2 + $0x8] sm:$0xff] %vm20, 0.0
      %23 = vst.msk [vmem:[#allocation2 + $0x10] sm:$0xff] %vm20, 0.0
      %24 = vst.msk [vmem:[#allocation2 + $0x18] sm:$0xff] %vm20, 0.0
      %25 = vst.msk [vmem:[#allocation2 + $0x20] sm:$0xff] %vm20, 0.0
      %26 = vst.msk [vmem:[#allocation2 + $0x28] sm:$0xff] %vm20, 0.0
      %27 = vst.msk [vmem:[#allocation2 + $0x30] sm:$0xff] %vm20, 0.0
      %28 = vst.msk [vmem:[#allocation2 + $0x38] sm:$0xff] %vm20, 0.0
      %29 = vst.msk [vmem:[#allocation2 + $0x40] sm:$0xff] %vm20, 0.0
      %30 = vst.msk [vmem:[#allocation2 + $0x48] sm:$0xff] %vm20, 0.0
      %31 = vst.msk [vmem:[#allocation2 + $0x50] sm:$0xff] %vm20, 0.0
      %32 = vst.msk [vmem:[#allocation2 + $0x58] sm:$0xff] %vm20, 0.0
      %33 = vst.msk [vmem:[#allocation2 + $0x60] sm:$0xff] %vm20, 0.0
      %34 = vst.msk [vmem:[#allocation2 + $0x68] sm:$0xff] %vm20, 0.0
      %35 = vst.msk [vmem:[#allocation2 + $0x70] sm:$0xff] %vm20, 0.0
      %36 = vst.msk [vmem:[#allocation2 + $0x78] sm:$0xff] %vm20, 0.0
    $region17: #{attention_forward.5} parent=1 // pred_fallthru
      _
    %v37 = vld [vmem:[#allocation2] sm:$0xff]
    %v38 = vld [vmem:[#allocation2 + $0x8] sm:$0xff]
    %v39 = vld [vmem:[#allocation2 + $0x10] sm:$0xff]
    %v40 = vld [vmem:[#allocation2 + $0x18] sm:$0xff]
    %v41 = vld [vmem:[#allocation2 + $0x20] sm:$0xff]
    %v42 = vld [vmem:[#allocation2 + $0x28] sm:$0xff]
    %v43 = vld [vmem:[#allocation2 + $0x30] sm:$0xff]
    %v44 = vld [vmem:[#allocation2 + $0x38] sm:$0xff]
    %v45 = vld [vmem:[#allocation2 + $0x40] sm:$0xff]
    %v46 = vld [vmem:[#allocation2 + $0x48] sm:$0xff]
    %v47 = vld [vmem:[#allocation2 + $0x50] sm:$0xff]
    %v48 = vld [vmem:[#allocation2 + $0x58] sm:$0xff]
    %v49 = vld [vmem:[#allocation2 + $0x60] sm:$0xff]
    %v50 = vld [vmem:[#allocation2 + $0x68] sm:$0xff]
    %v51 = vld [vmem:[#allocation2 + $0x70] sm:$0xff]
    %v52 = vld [vmem:[#allocation2 + $0x78] sm:$0xff]
    %v53 = vld [vmem:[%s0] sm:$0xf]
    %v54 = vld [vmem:[%s0 + $0x4] sm:$0xf]
    %v55 = vld [vmem:[%s0 + $0x8] sm:$0xf]
    %v56 = vld [vmem:[%s0 + $0xc] sm:$0xf]
    %v57 = vld [vmem:[%s0 + $0x10] sm:$0xf]
    %v58 = vld [vmem:[%s0 + $0x14] sm:$0xf]
    %v59 = vld [vmem:[%s0 + $0x18] sm:$0xf]
    %v60 = vld [vmem:[%s0 + $0x1c] sm:$0xf]
    %v61 = vld [vmem:[%s0 + $0x20] sm:$0xf]
    %v62 = vld [vmem:[%s0 + $0x24] sm:$0xf]
    %v63 = vld [vmem:[%s0 + $0x28] sm:$0xf]
    %v64 = vld [vmem:[%s0 + $0x2c] sm:$0xf]
    %v65 = vld [vmem:[%s0 + $0x30] sm:$0xf]
    %v66 = vld [vmem:[%s0 + $0x34] sm:$0xf]
    %v67 = vld [vmem:[%s0 + $0x38] sm:$0xf]
    %v68 = vld [vmem:[%s0 + $0x3c] sm:$0xf]
    %v69 = vld [vmem:[%s1] sm:$0xf]
    %v70 = vld [vmem:[%s1 + $0x4] sm:$0xf]
    %v71 = vld [vmem:[%s1 + $0x8] sm:$0xf]
    %v72 = vld [vmem:[%s1 + $0xc] sm:$0xf]
    %v89 = vunpack.c.l.b16 %v53
    %v90 = vunpack.c.l.b16 %v54
    %v91 = vunpack.c.l.b16 %v55
    %v92 = vunpack.c.l.b16 %v56
    %v93 = vunpack.c.l.b16 %v57
    %v94 = vunpack.c.l.b16 %v58
    %v95 = vunpack.c.l.b16 %v59
    %v96 = vunpack.c.l.b16 %v60
    %v97 = vunpack.c.l.b16 %v61
    %v98 = vunpack.c.l.b16 %v62
    %v99 = vunpack.c.l.b16 %v63
    %v100 = vunpack.c.l.b16 %v64
    %v101 = vunpack.c.l.b16 %v65
    %v102 = vunpack.c.l.b16 %v66
    %v103 = vunpack.c.l.b16 %v67
    %v104 = vunpack.c.l.b16 %v68
    %v105 = vpack.c.b16 %v90, %v89
    %v106 = vpack.c.b16 %v92, %v91
    %v107 = vpack.c.b16 %v94, %v93
    %v108 = vpack.c.b16 %v96, %v95
    %v109 = vpack.c.b16 %v98, %v97
    %v110 = vpack.c.b16 %v100, %v99
    %v111 = vpack.c.b16 %v102, %v101
    %v112 = vpack.c.b16 %v104, %v103
    %v117 = vunpack.c.l.b16 %v69
    %v118 = vunpack.c.l.b16 %v70
    %v119 = vunpack.c.l.b16 %v71
    %v120 = vunpack.c.l.b16 %v72
    %v121 = vpack.c.b16 %v118, %v117
    %v122 = vpack.c.b16 %v120, %v119
    %vm125 = vcmask 261120
    %v127 = vsel %vm125, %v105, 0
    %v130 = vsel %vm125, %v106, 0
    %v133 = vsel %vm125, %v107, 0
    %v136 = vsel %vm125, %v108, 0
    %v139 = vsel %vm125, %v109, 0
    %v142 = vsel %vm125, %v110, 0
    %v145 = vsel %vm125, %v111, 0
    %v148 = vsel %vm125, %v112, 0
    %150 = vmatprep.subr.bf16.mxu0 0
    %151 = vmatpush1.bf16.msra.mxu0 %v121
    %152 = vmatprep.subr.bf16.mxu0 0
    %153 = vmatpush1.bf16.msra.mxu0 %v122
    %154 = vmatprep.subr.bf16.mxu0 0
    %155 = vmatpush1.bf16.msra.mxu0 0
    %156 = vmatprep.subr.bf16.mxu0 0
    %157 = vmatpush1.bf16.msra.mxu0 0
    %158 = vmatprep.subr.bf16.mxu0 0
    %159 = vmatpush1.bf16.msra.mxu0 0
    %160 = vmatprep.subr.bf16.mxu0 0
    %161 = vmatpush1.bf16.msra.mxu0 0
    %162 = vmatprep.subr.bf16.mxu0 0
    %163 = vmatpush1.bf16.msra.mxu0 0
    %164 = vmatprep.subr.bf16.mxu0 0
    %165 = vmatpush1.bf16.msra.mxu0 0
    %166 = vmatprep.subr.bf16.mxu0 0
    %167 = vmatpush1.bf16.msra.mxu0 0
    %168 = vmatprep.subr.bf16.mxu0 0
    %169 = vmatpush1.bf16.msra.mxu0 0
    %170 = vmatprep.subr.bf16.mxu0 0
    %171 = vmatpush1.bf16.msra.mxu0 0
    %172 = vmatprep.subr.bf16.mxu0 0
    %173 = vmatpush1.bf16.msra.mxu0 0
    %174 = vmatprep.subr.bf16.mxu0 0
    %175 = vmatpush1.bf16.msra.mxu0 0
    %176 = vmatprep.subr.bf16.mxu0 0
    %177 = vmatpush1.bf16.msra.mxu0 0
    %178 = vmatprep.subr.bf16.mxu0 0
    %179 = vmatpush1.bf16.msra.mxu0 0
    %180 = vmatprep.subr.bf16.mxu0 0
    %181 = vmatpush1.bf16.msra.mxu0 0
    %182 = vmatprep.mubr.bf16.mxu0 0
    %183 = vmatmul.mubr.bf16.gmra.mrb[0].mxu0 %v127
    %v184 = vpop.f32.mrb[0].mxu0
    %v185 = vadd.f32 0.0, %v184
    %v186 = vpop.f32.mrb[0].mxu0
    %v187 = vpop.f32.mrb[0].mxu0
    %v188 = vadd.f32 0.0, %v187
    %v189 = vpop.f32.mrb[0].mxu0
    %190 = vmatprep.mubr.bf16.mxu0 0
    %191 = vmatmul.mubr.bf16.gmra.mrb[0].mxu0 %v130
    %v192 = vpop.f32.mrb[0].mxu0
    %v193 = vadd.f32 0.0, %v192
    %v194 = vpop.f32.mrb[0].mxu0
    %v195 = vpop.f32.mrb[0].mxu0
    %v196 = vadd.f32 0.0, %v195
    %v197 = vpop.f32.mrb[0].mxu0
    %198 = vmatprep.mubr.bf16.mxu0 0
    %199 = vmatmul.mubr.bf16.gmra.mrb[0].mxu0 %v133
    %v200 = vpop.f32.mrb[0].mxu0
    %v201 = vadd.f32 0.0, %v200
    %v202 = vpop.f32.mrb[0].mxu0
    %v203 = vpop.f32.mrb[0].mxu0
    %v204 = vadd.f32 0.0, %v203
    %v205 = vpop.f32.mrb[0].mxu0
    %206 = vmatprep.mubr.bf16.mxu0 0
    %207 = vmatmul.mubr.bf16.gmra.mrb[0].mxu0 %v136
    %v208 = vpop.f32.mrb[0].mxu0
    %v209 = vadd.f32 0.0, %v208
    %v210 = vpop.f32.mrb[0].mxu0
    %v211 = vpop.f32.mrb[0].mxu0
    %v212 = vadd.f32 0.0, %v211
    %v213 = vpop.f32.mrb[0].mxu0
    %214 = vmatprep.mubr.bf16.mxu0 0
    %215 = vmatmul.mubr.bf16.gmra.mrb[0].mxu0 %v139
    %v216 = vpop.f32.mrb[0].mxu0
    %v217 = vadd.f32 0.0, %v216
    %v218 = vpop.f32.mrb[0].mxu0
    %v219 = vpop.f32.mrb[0].mxu0
    %v220 = vadd.f32 0.0, %v219
    %v221 = vpop.f32.mrb[0].mxu0
    %222 = vmatprep.mubr.bf16.mxu0 0
    %223 = vmatmul.mubr.bf16.gmra.mrb[0].mxu0 %v142
    %v224 = vpop.f32.mrb[0].mxu0
    %v225 = vadd.f32 0.0, %v224
    %v226 = vpop.f32.mrb[0].mxu0
    %v227 = vpop.f32.mrb[0].mxu0
    %v228 = vadd.f32 0.0, %v227
    %v229 = vpop.f32.mrb[0].mxu0
    %230 = vmatprep.mubr.bf16.mxu0 0
    %231 = vmatmul.mubr.bf16.gmra.mrb[0].mxu0 %v145
    %v232 = vpop.f32.mrb[0].mxu0
    %v233 = vadd.f32 0.0, %v232
    %v234 = vpop.f32.mrb[0].mxu0
    %v235 = vpop.f32.mrb[0].mxu0
    %v236 = vadd.f32 0.0, %v235
    %v237 = vpop.f32.mrb[0].mxu0
    %238 = vmatprep.mubr.bf16.mxu0 0
    %239 = vmatmul.mubr.bf16.gmra.mrb[0].mxu0 %v148
    %v240 = vpop.f32.mrb[0].mxu0
    %v241 = vadd.f32 0.0, %v240
    %v242 = vpop.f32.mrb[0].mxu0
    %v243 = vpop.f32.mrb[0].mxu0
    %v244 = vadd.f32 0.0, %v243
    %v245 = vpop.f32.mrb[0].mxu0
    %246 = vdwg.mxu0
    %v247 = vadd.f32 %v37, %v185
    %v248 = vadd.f32 %v38, %v188
    %v249 = vadd.f32 %v39, %v193
    %v250 = vadd.f32 %v40, %v196
    %v251 = vadd.f32 %v41, %v201
    %v252 = vadd.f32 %v42, %v204
    %v253 = vadd.f32 %v43, %v209
    %v254 = vadd.f32 %v44, %v212
    %v255 = vadd.f32 %v45, %v217
    %v256 = vadd.f32 %v46, %v220
    %v257 = vadd.f32 %v47, %v225
    %v258 = vadd.f32 %v48, %v228
    %v259 = vadd.f32 %v49, %v233
    %v260 = vadd.f32 %v50, %v236
    %v261 = vadd.f32 %v51, %v241
    %v262 = vadd.f32 %v52, %v244
    %263 = vst.msk [vmem:[#allocation2] sm:$0xff] %vm125, %v247
    %264 = vst.msk [vmem:[#allocation2 + $0x8] sm:$0xff] %vm125, %v248
    %265 = vst.msk [vmem:[#allocation2 + $0x10] sm:$0xff] %vm125, %v249
    %266 = vst.msk [vmem:[#allocation2 + $0x18] sm:$0xff] %vm125, %v250
    %267 = vst.msk [vmem:[#allocation2 + $0x20] sm:$0xff] %vm125, %v251
    %268 = vst.msk [vmem:[#allocation2 + $0x28] sm:$0xff] %vm125, %v252
    %269 = vst.msk [vmem:[#allocation2 + $0x30] sm:$0xff] %vm125, %v253
    %270 = vst.msk [vmem:[#allocation2 + $0x38] sm:$0xff] %vm125, %v254
    %271 = vst.msk [vmem:[#allocation2 + $0x40] sm:$0xff] %vm125, %v255
    %272 = vst.msk [vmem:[#allocation2 + $0x48] sm:$0xff] %vm125, %v256
    %273 = vst.msk [vmem:[#allocation2 + $0x50] sm:$0xff] %vm125, %v257
    %274 = vst.msk [vmem:[#allocation2 + $0x58] sm:$0xff] %vm125, %v258
    %275 = vst.msk [vmem:[#allocation2 + $0x60] sm:$0xff] %vm125, %v259
    %276 = vst.msk [vmem:[#allocation2 + $0x68] sm:$0xff] %vm125, %v260
    %277 = vst.msk [vmem:[#allocation2 + $0x70] sm:$0xff] %vm125, %v261
    %278 = vst.msk [vmem:[#allocation2 + $0x78] sm:$0xff] %vm125, %v262
    // Predicated region
    $region18: #{attention_forward.5} parent=1 // pred_check
      %p279 = pneg %p16
    $region19: #{attention_forward.5} parent=1 // pred_check_branch
      %281 = sbr.rel (%p279) target = $region21
    $region20: #{attention_forward.5} parent=1 // pred_region
      %v282 = vld [vmem:[#allocation2] sm:$0xff]
      %v283 = vld [vmem:[#allocation2 + $0x8] sm:$0xff]
      %v284 = vld [vmem:[#allocation2 + $0x10] sm:$0xff]
      %v285 = vld [vmem:[#allocation2 + $0x18] sm:$0xff]
      %v286 = vld [vmem:[#allocation2 + $0x20] sm:$0xff]
      %v287 = vld [vmem:[#allocation2 + $0x28] sm:$0xff]
      %v288 = vld [vmem:[#allocation2 + $0x30] sm:$0xff]
      %v289 = vld [vmem:[#allocation2 + $0x38] sm:$0xff]
      %v290 = vld [vmem:[#allocation2 + $0x40] sm:$0xff]
      %v291 = vld [vmem:[#allocation2 + $0x48] sm:$0xff]
      %v292 = vld [vmem:[#allocation2 + $0x50] sm:$0xff]
      %v293 = vld [vmem:[#allocation2 + $0x58] sm:$0xff]
      %v294 = vld [vmem:[#allocation2 + $0x60] sm:$0xff]
      %v295 = vld [vmem:[#allocation2 + $0x68] sm:$0xff]
      %v296 = vld [vmem:[#allocation2 + $0x70] sm:$0xff]
      %v297 = vld [vmem:[#allocation2 + $0x78] sm:$0xff]
      %v298 = vld [vmem:[%s2] sm:$0x1]
      %v300 = vlaneseq
      %v301 = vshrl.u32 %v300, 7
      %v302 = vsub.s32 0, %v301
      %v303 = vrot.slane %v298, %v302
      %v305 = vadd.f32 %v282, %v303
      %v306 = vadd.f32 %v283, %v303
      %v307 = vadd.f32 %v284, %v303
      %v308 = vadd.f32 %v285, %v303
      %v309 = vadd.f32 %v286, %v303
      %v310 = vadd.f32 %v287, %v303
      %v311 = vadd.f32 %v288, %v303
      %v312 = vadd.f32 %v289, %v303
      %v313 = vadd.f32 %v290, %v303
      %v314 = vadd.f32 %v291, %v303
      %v315 = vadd.f32 %v292, %v303
      %v316 = vadd.f32 %v293, %v303
      %v317 = vadd.f32 %v294, %v303
      %v318 = vadd.f32 %v295, %v303
      %v319 = vadd.f32 %v296, %v303
      %v320 = vadd.f32 %v297, %v303
      %321 = vst.msk [vmem:[#allocation3] sm:$0xff] %vm125, %v305
      %322 = vst.msk [vmem:[#allocation3 + $0x8] sm:$0xff] %vm125, %v306
      %323 = vst.msk [vmem:[#allocation3 + $0x10] sm:$0xff] %vm125, %v307
      %324 = vst.msk [vmem:[#allocation3 + $0x18] sm:$0xff] %vm125, %v308
      %325 = vst.msk [vmem:[#allocation3 + $0x20] sm:$0xff] %vm125, %v309
      %326 = vst.msk [vmem:[#allocation3 + $0x28] sm:$0xff] %vm125, %v310
      %327 = vst.msk [vmem:[#allocation3 + $0x30] sm:$0xff] %vm125, %v311
      %328 = vst.msk [vmem:[#allocation3 + $0x38] sm:$0xff] %vm125, %v312
      %329 = vst.msk [vmem:[#allocation3 + $0x40] sm:$0xff] %vm125, %v313
      %330 = vst.msk [vmem:[#allocation3 + $0x48] sm:$0xff] %vm125, %v314
      %331 = vst.msk [vmem:[#allocation3 + $0x50] sm:$0xff] %vm125, %v315
      %332 = vst.msk [vmem:[#allocation3 + $0x58] sm:$0xff] %vm125, %v316
      %333 = vst.msk [vmem:[#allocation3 + $0x60] sm:$0xff] %vm125, %v317
      %334 = vst.msk [vmem:[#allocation3 + $0x68] sm:$0xff] %vm125, %v318
      %335 = vst.msk [vmem:[#allocation3 + $0x70] sm:$0xff] %vm125, %v319
      %336 = vst.msk [vmem:[#allocation3 + $0x78] sm:$0xff] %vm125, %v320
    $region21: #{attention_forward.5} parent=1 // pred_fallthru
      _
    // Predicated region
    $region22: #{attention_forward.5} parent=1 // pred_check
      _
    $region23: #{attention_forward.5} parent=1 // pred_check_branch
      %338 = sbr.rel (0) target = $region25
    $region24: #{attention_forward.5} parent=1 // pred_region
      %s340 = ssub.s32 2048, 2048
      %341 = vsyncadd [#allocation4], %s340
      %s342 = sshll.u32 [#allocation3], 4
      %s343 = int_to_ptr.vmem [resolvable:$true] %s342
      %348 = dma.vmem_to_hbm [thread:$0]  %s343, 2048, %s3, [#allocation4], 128, 128, 8
    $region25: #{attention_forward.5} parent=1 // pred_fallthru
      _
    // Predicated region
    $region26: #{attention_forward.5} parent=1 // pred_check
      _
    $region27: #{attention_forward.5} parent=1 // pred_check_branch
      %350 = sbr.rel (0) target = $region29
    $region28: #{attention_forward.5} parent=1 // pred_region
      %351 = dma.done [#allocation4], 2048
    $region29: #{attention_forward.5} parent=1 // pred_fallthru
      _
    %352 = vsyncpa [#allocation4], 1

// kernel: attention_forward.3
$region0: #{attention_forward.3}
  #allocation0 [shape = 'u32[]', space=smem, size = 0x4, offset = 0x4, fixed_abs, tag = 'smem constant byte address 0x4 - core index']
  #allocation1 [shape = 'u32[144,128]{1,0:T(1,128)}', space=vmem, size = 0x12000, scoped, tag = 'internal scratch']
  #allocation2 [shape = 'f32[128,32]{1,0:T(8,128)}', space=vmem, size = 0x10000, scoped, tag = 'scratch operand']
  %s0 = inlined_call_operand.vmem [shape: bf16[128,32], index: 0, kind: input, shape index: {}]
  %s1 = inlined_call_operand.vmem [shape: bf16[3,32,32], index: 1, kind: input, shape index: {}]
  %s2 = inlined_call_operand.vmem [shape: f32[3,1,32], index: 2, kind: input, shape index: {}]
  %s3 = inlined_call_operand.vmem [shape: bf16[3,128,32], index: 3, kind: output, shape index: {}]
  %s4 = sld [smem:[#allocation0]]
  $region53: #{attention_forward.3} parent=0
    _
  %s6 = ssub.s32 1, %s4
  %s7 = scalar_select 0, %s6, %s4
  loop: start=0, step=1, limit=5
  $region2: #{attention_forward.3} parent=0 // loop_pre_header
    _
  $region3: #{attention_forward.3} parent=0 // loop_header
    %s9 = sphi 0, %s13
    %p10 = scmp.ge.s32.totalorder %s9, 5
    %s16 = sphi 0, %s42
    %s17 = sphi 0, %s38
    %s18 = sphi 0, %s34
    %s19 = sphi 0, %s30
    %s20 = sphi 0, %s16
    %s21 = sphi 0, %s17
    %s22 = sphi 0, %s18
    %s23 = sphi 0, %s19
    %s24 = sphi 0, %s20
    %s25 = sphi 0, %s21
    %s26 = sphi 0, %s22
    %s27 = sphi 0, %s23
    %s47 = sphi 0, %s49
    %s50 = sphi 0, %s47
    %s51 = sphi 0, %s50
    %s67 = sphi 0, %s51
    %s77 = sphi 0, %s79
    %s80 = sphi 0, %s77
    %s81 = sphi 0, %s80
    %s97 = sphi 0, %s81
    %s105 = sphi 0, %s107
    %s108 = sphi 0, %s105
    %s109 = sphi 0, %s108
    %s125 = sphi 0, %s109
    %s135 = sphi 0, %s137
    %s138 = sphi 0, %s135
    %s139 = sphi 0, %s138
    %s155 = sphi 0, %s139
  $region4: #{attention_forward.3} parent=0 // loop_header_branch
    %12 = sbr.rel (%p10) target = $region8
  $region5: #{attention_forward.3} parent=0 // loop_body
    %s14 = ssub.s32 %s9, 1
    %s15 = ssub.s32 %s9, 2
    %s28 = sadd.s32 1, %s19
    %p29 = scmp.ge.s32.totalorder %s28, 1
    %s30 = scalar_select %p29, 0, %s28
    %s31 = sadd.s32 1, %s18
    %s32 = scalar_select %p29, %s31, %s18
    %p33 = scmp.ge.s32.totalorder %s32, 1
    %s34 = scalar_select %p33, 0, %s32
    %s35 = sadd.s32 1, %s17
    %s36 = scalar_select %p33, %s35, %s17
    %p37 = scmp.ge.s32.totalorder %s36, 1
    %s38 = scalar_select %p37, 0, %s36
    %s39 = sadd.s32 1, %s16
    %s40 = scalar_select %p37, %s39, %s16
    %p41 = scmp.ge.s32.totalorder %s40, 3
    %s42 = scalar_select %p41, 0, %s40
    %s43 = ssub.s32 %s17, %s38
    %s44 = ssub.s32 %s19, %s30
    %s45 = sor.u32 %s43, %s44
    %p46 = scmp.eq.s32.totalorder %s45, 0
    %s48 = sadd.s32 %s47, 1
    %s49 = scalar_select %p46, %s47, %s48
    %p52 = pneg %p46
    %p53 = scmp.eq.s32.totalorder %s9, 2
    %p54 = por %p52, %p53
    %p55 = scmp.ne.s32.totalorder %s47, %s50
    %p56 = scmp.eq.s32.totalorder %s9, 0
    %p57 = por %p55, %p56
    %p58 = scmp.ne.s32.totalorder %s47, %s50
    %p59 = scmp.eq.s32.totalorder %s14, 2
    %p60 = por %p58, %p59
    %p61 = scmp.ne.s32.totalorder %s50, %s51
    %p62 = scmp.eq.s32.totalorder %s14, 0
    %p63 = por %p61, %p62
    %p64 = scmp.ne.s32.totalorder %s50, %s51
    %p65 = scmp.eq.s32.totalorder %s15, 2
    %p66 = por %p64, %p65
    %p68 = scmp.ne.s32.totalorder %s51, %s67
    %p69 = scmp.eq.s32.totalorder %s15, 0
    %p70 = por %p68, %p69
    %s71 = ssub.s32 %s16, %s42
    %s72 = ssub.s32 %s19, %s30
    %s73 = sor.u32 %s71, %s72
    %s74 = ssub.s32 %s18, %s34
    %s75 = sor.u32 %s73, %s74
    %p76 = scmp.eq.s32.totalorder %s75, 0
    %s78 = sadd.s32 %s77, 1
    %s79 = scalar_select %p76, %s77, %s78
    %p82 = pneg %p76
    %p83 = scmp.eq.s32.totalorder %s9, 2
    %p84 = por %p82, %p83
    %p85 = scmp.ne.s32.totalorder %s77, %s80
    %p86 = scmp.eq.s32.totalorder %s9, 0
    %p87 = por %p85, %p86
    %p88 = scmp.ne.s32.totalorder %s77, %s80
    %p89 = scmp.eq.s32.totalorder %s14, 2
    %p90 = por %p88, %p89
    %p91 = scmp.ne.s32.totalorder %s80, %s81
    %p92 = scmp.eq.s32.totalorder %s14, 0
    %p93 = por %p91, %p92
    %p94 = scmp.ne.s32.totalorder %s80, %s81
    %p95 = scmp.eq.s32.totalorder %s15, 2
    %p96 = por %p94, %p95
    %p98 = scmp.ne.s32.totalorder %s81, %s97
    %p99 = scmp.eq.s32.totalorder %s15, 0
    %p100 = por %p98, %p99
    %s101 = ssub.s32 %s16, %s42
    %s102 = ssub.s32 %s18, %s34
    %s103 = sor.u32 %s101, %s102
    %p104 = scmp.eq.s32.totalorder %s103, 0
    %s106 = sadd.s32 %s105, 1
    %s107 = scalar_select %p104, %s105, %s106
    %p110 = pneg %p104
    %p111 = scmp.eq.s32.totalorder %s9, 2
    %p112 = por %p110, %p111
    %p113 = scmp.ne.s32.totalorder %s105, %s108
    %p114 = scmp.eq.s32.totalorder %s9, 0
    %p115 = por %p113, %p114
    %p116 = scmp.ne.s32.totalorder %s105, %s108
    %p117 = scmp.eq.s32.totalorder %s14, 2
    %p118 = por %p116, %p117
    %p119 = scmp.ne.s32.totalorder %s108, %s109
    %p120 = scmp.eq.s32.totalorder %s14, 0
    %p121 = por %p119, %p120
    %p122 = scmp.ne.s32.totalorder %s108, %s109
    %p123 = scmp.eq.s32.totalorder %s15, 2
    %p124 = por %p122, %p123
    %p126 = scmp.ne.s32.totalorder %s109, %s125
    %p127 = scmp.eq.s32.totalorder %s15, 0
    %p128 = por %p126, %p127
    %s129 = ssub.s32 %s16, %s42
    %s130 = ssub.s32 %s17, %s38
    %s131 = sor.u32 %s129, %s130
    %s132 = ssub.s32 %s18, %s34
    %s133 = sor.u32 %s131, %s132
    %p134 = scmp.eq.s32.totalorder %s133, 0
    %s136 = sadd.s32 %s135, 1
    %s137 = scalar_select %p134, %s135, %s136
    %p140 = pneg %p134
    %p141 = scmp.eq.s32.totalorder %s9, 2
    %p142 = por %p140, %p141
    %p143 = scmp.ne.s32.totalorder %s135, %s138
    %p144 = scmp.eq.s32.totalorder %s9, 0
    %p145 = por %p143, %p144
    %p146 = scmp.ne.s32.totalorder %s135, %s138
    %p147 = scmp.eq.s32.totalorder %s14, 2
    %p148 = por %p146, %p147
    %p149 = scmp.ne.s32.totalorder %s138, %s139
    %p150 = scmp.eq.s32.totalorder %s14, 0
    %p151 = por %p149, %p150
    %p152 = scmp.ne.s32.totalorder %s138, %s139
    %p153 = scmp.eq.s32.totalorder %s15, 2
    %p154 = por %p152, %p153
    %p156 = scmp.ne.s32.totalorder %s139, %s155
    %p157 = scmp.eq.s32.totalorder %s15, 0
    %p158 = por %p156, %p157
    %p159 = scmp.le.s32.totalorder 1, %s9
    %p160 = scmp.lt.s32.totalorder %s9, 4
    %p161 = pnand %p159, %p160
    %p162 = pneg %p161
    // Predicated region
    $region9: #{attention_forward.3} parent=5 // pred_check
      _
    $region10: #{attention_forward.3} parent=5 // pred_check_branch
      %164 = sbr.rel (%p161) target = $region12
    $region11: #{attention_forward.3} parent=5 // pred_region
      %s165 = ssub.s32 %s9, 1
      // Predicated region
      $region13: #{attention_forward.3} parent=11 // pred_check
        %p166 = pneg %p63
      $region14: #{attention_forward.3} parent=11 // pred_check_branch
        %168 = sbr.rel (%p166) target = $region16
      $region15: #{attention_forward.3} parent=11 // pred_region
        %s169 = smul.u32 16, %s21
        %p170 = scmp.lt.s32.totalorder %s169, 15
        %s171 = scalar_select %p170, %s169, 15
        %p172 = scmp.lt.s32.totalorder %s23, 0
        %s173 = scalar_select %p172, %s23, 0
        %s174 = sadd.s32 %s173, %s171
        %s175 = smul.addr %s174, 4
        %s176 = scalar_lea.vmem %s0, %s175
        %s177 = smul.u32 16, %s21
      $region16: #{attention_forward.3} parent=11 // pred_fallthru
        _
    $region12: #{attention_forward.3} parent=5 // pred_fallthru
      _
    %p178 = scmp.lt.s32.totalorder %s9, 3
    // Predicated region
    $region17: #{attention_forward.3} parent=5 // pred_check
      %p179 = pneg %p178
    $region18: #{attention_forward.3} parent=5 // pred_check_branch
      %181 = sbr.rel (%p179) target = $region20
    $region19: #{attention_forward.3} parent=5 // pred_region
      // Predicated region
      $region21: #{attention_forward.3} parent=19 // pred_check
        %p182 = pneg %p87
      $region22: #{attention_forward.3} parent=19 // pred_check_branch
        %184 = sbr.rel (%p182) target = $region24
      $region23: #{attention_forward.3} parent=19 // pred_region
        %s185 = smul.u32 4, %s19
        %p186 = scmp.lt.s32.totalorder %s16, 2
        %s187 = scalar_select %p186, %s16, 2
        %p188 = scmp.lt.s32.totalorder %s185, 3
        %s189 = scalar_select %p188, %s185, 3
        %p190 = scmp.lt.s32.totalorder %s18, 0
        %s191 = scalar_select %p190, %s18, 0
        %s192 = sadd.s32 %s191, %s189
        %s193 = smul.addr %s187, 4
        %s194 = sadd.s32 %s192, %s193
        %s195 = smul.addr %s194, 4
        %s196 = scalar_lea.vmem %s1, %s195
        %s197 = smul.u32 4, %s19
      $region24: #{attention_forward.3} parent=19 // pred_fallthru
        _
      // Predicated region
      $region25: #{attention_forward.3} parent=19 // pred_check
        %p198 = pneg %p115
      $region26: #{attention_forward.3} parent=19 // pred_check_branch
        %200 = sbr.rel (%p198) target = $region28
      $region27: #{attention_forward.3} parent=19 // pred_region
        %p201 = scmp.lt.s32.totalorder %s16, 2
        %s202 = scalar_select %p201, %s16, 2
        %p203 = scmp.lt.s32.totalorder %s18, 0
        %s204 = scalar_select %p203, %s18, 0
        %s205 = sadd.s32 %s204, %s202
        %s206 = scalar_lea.vmem %s2, %s205
      $region28: #{attention_forward.3} parent=19 // pred_fallthru
        _
    $region20: #{attention_forward.3} parent=5 // pred_fallthru
      _
    %p207 = scmp.le.s32.totalorder 1, %s9
    %p208 = scmp.lt.s32.totalorder %s9, 4
    %p209 = pnand %p207, %p208
    %p210 = pneg %p209
    // Predicated region
    $region29: #{attention_forward.3} parent=5 // pred_check
      _
    $region30: #{attention_forward.3} parent=5 // pred_check_branch
      %212 = sbr.rel (%p209) target = $region32
    $region31: #{attention_forward.3} parent=5 // pred_region
      %s213 = ssub.s32 %s9, 1
      %s214 = smul.u32 16, %s21
      %p215 = scmp.lt.s32.totalorder %s214, 15
      %s216 = scalar_select %p215, %s214, 15
      %p217 = scmp.lt.s32.totalorder %s23, 0
      %s218 = scalar_select %p217, %s23, 0
      %s219 = sadd.s32 %s218, %s216
      %s220 = smul.addr %s219, 4
      %s221 = scalar_lea.vmem %s0, %s220
      %p222 = pneg %p63
      %p223 = pneg %p60
      %s224 = smul.u32 4, %s23
      %p225 = scmp.lt.s32.totalorder %s20, 2
      %s226 = scalar_select %p225, %s20, 2
      %p227 = scmp.lt.s32.totalorder %s224, 3
      %s228 = scalar_select %p227, %s224, 3
      %p229 = scmp.lt.s32.totalorder %s22, 0
      %s230 = scalar_select %p229, %s22, 0
      %s231 = sadd.s32 %s230, %s228
      %s232 = smul.addr %s226, 4
      %s233 = sadd.s32 %s231, %s232
      %s234 = smul.addr %s233, 4
      %s235 = scalar_lea.vmem %s1, %s234
      %p236 = pneg %p93
      %p237 = pneg %p90
      %p238 = scmp.lt.s32.totalorder %s20, 2
      %s239 = scalar_select %p238, %s20, 2
      %p240 = scmp.lt.s32.totalorder %s22, 0
      %s241 = scalar_select %p240, %s22, 0
      %s242 = sadd.s32 %s241, %s239
      %s243 = scalar_lea.vmem %s2, %s242
      %p244 = pneg %p121
      %p245 = pneg %p118
      %p246 = pneg %p151
      %p247 = pneg %p148
      %s248 = smul.u32 16, %s21
      %p249 = scmp.lt.s32.totalorder %s20, 2
      %s250 = scalar_select %p249, %s20, 2
      %p251 = scmp.lt.s32.totalorder %s248, 15
      %s252 = scalar_select %p251, %s248, 15
      %p253 = scmp.lt.s32.totalorder %s22, 0
      %s254 = scalar_select %p253, %s22, 0
      %s255 = sadd.s32 %s254, %s252
      %s256 = smul.addr %s250, 16
      %s257 = sadd.s32 %s255, %s256
      %s258 = smul.addr %s257, 4
      %s259 = scalar_lea.vmem %s3, %s258
      %s260 = smul.u32 16, %s21
      %p261 = scmp.lt.s32.totalorder %s260, 15
      %s262 = scalar_select %p261, %s260, 15
      %p263 = scmp.lt.s32.totalorder %s23, 0
      %s264 = scalar_select %p263, %s23, 0
      %s265 = sadd.s32 %s264, %s262
      %s266 = smul.addr %s265, 4
      %s267 = scalar_lea.vmem %s0, %s266
      %s268 = smul.u32 16, %s21
      %s269 = smul.u32 4, %s23
      %p270 = scmp.lt.s32.totalorder %s20, 2
      %s271 = scalar_select %p270, %s20, 2
      %p272 = scmp.lt.s32.totalorder %s269, 3
      %s273 = scalar_select %p272, %s269, 3
      %p274 = scmp.lt.s32.totalorder %s22, 0
      %s275 = scalar_select %p274, %s22, 0
      %s276 = sadd.s32 %s275, %s273
      %s277 = smul.addr %s271, 4
      %s278 = sadd.s32 %s276, %s277
      %s279 = smul.addr %s278, 4
      %s280 = scalar_lea.vmem %s1, %s279
      %s281 = smul.u32 4, %s23
      %p282 = scmp.lt.s32.totalorder %s20, 2
      %s283 = scalar_select %p282, %s20, 2
      %p284 = scmp.lt.s32.totalorder %s22, 0
      %s285 = scalar_select %p284, %s22, 0
      %s286 = sadd.s32 %s285, %s283
      %s287 = scalar_lea.vmem %s2, %s286
      %s288 = smul.u32 16, %s21
      %p289 = scmp.lt.s32.totalorder %s20, 2
      %s290 = scalar_select %p289, %s20, 2
      %p291 = scmp.lt.s32.totalorder %s288, 15
      %s292 = scalar_select %p291, %s288, 15
      %p293 = scmp.lt.s32.totalorder %s22, 0
      %s294 = scalar_select %p293, %s22, 0
      %s295 = sadd.s32 %s294, %s292
      %s296 = smul.addr %s290, 16
      %s297 = sadd.s32 %s295, %s296
      %s298 = smul.addr %s297, 4
      %s299 = scalar_lea.vmem %s3, %s298
      %s300 = smul.u32 16, %s21
      %p302 = scmp.eq.s32.totalorder %s23, 0
      // Predicated region
      $region33: #{attention_forward.3} parent=31 // pred_check
        %p303 = pneg %p302
      $region34: #{attention_forward.3} parent=31 // pred_check_branch
        %305 = sbr.rel (%p303) target = $region36
      $region35: #{attention_forward.3} parent=31 // pred_region
        %vm306 = vcmask 261120
        %307 = vst.msk [vmem:[#allocation2] sm:$0xff] %vm306, 0.0
        %308 = vst.msk [vmem:[#allocation2 + $0x8] sm:$0xff] %vm306, 0.0
        %309 = vst.msk [vmem:[#allocation2 + $0x10] sm:$0xff] %vm306, 0.0
        %310 = vst.msk [vmem:[#allocation2 + $0x18] sm:$0xff] %vm306, 0.0
        %311 = vst.msk [vmem:[#allocation2 + $0x20] sm:$0xff] %vm306, 0.0
        %312 = vst.msk [vmem:[#allocation2 + $0x28] sm:$0xff] %vm306, 0.0
        %313 = vst.msk [vmem:[#allocation2 + $0x30] sm:$0xff] %vm306, 0.0
        %314 = vst.msk [vmem:[#allocation2 + $0x38] sm:$0xff] %vm306, 0.0
        %315 = vst.msk [vmem:[#allocation2 + $0x40] sm:$0xff] %vm306, 0.0
        %316 = vst.msk [vmem:[#allocation2 + $0x48] sm:$0xff] %vm306, 0.0
        %317 = vst.msk [vmem:[#allocation2 + $0x50] sm:$0xff] %vm306, 0.0
        %318 = vst.msk [vmem:[#allocation2 + $0x58] sm:$0xff] %vm306, 0.0
        %319 = vst.msk [vmem:[#allocation2 + $0x60] sm:$0xff] %vm306, 0.0
        %320 = vst.msk [vmem:[#allocation2 + $0x68] sm:$0xff] %vm306, 0.0
        %321 = vst.msk [vmem:[#allocation2 + $0x70] sm:$0xff] %vm306, 0.0
        %322 = vst.msk [vmem:[#allocation2 + $0x78] sm:$0xff] %vm306, 0.0
      $region36: #{attention_forward.3} parent=31 // pred_fallthru
        _
      %v323 = vld [vmem:[#allocation2] sm:$0xff]
      %v324 = vld [vmem:[#allocation2 + $0x8] sm:$0xff]
      %v325 = vld [vmem:[#allocation2 + $0x10] sm:$0xff]
      %v326 = vld [vmem:[#allocation2 + $0x18] sm:$0xff]
      %v327 = vld [vmem:[#allocation2 + $0x20] sm:$0xff]
      %v328 = vld [vmem:[#allocation2 + $0x28] sm:$0xff]
      %v329 = vld [vmem:[#allocation2 + $0x30] sm:$0xff]
      %v330 = vld [vmem:[#allocation2 + $0x38] sm:$0xff]
      %v331 = vld [vmem:[#allocation2 + $0x40] sm:$0xff]
      %v332 = vld [vmem:[#allocation2 + $0x48] sm:$0xff]
      %v333 = vld [vmem:[#allocation2 + $0x50] sm:$0xff]
      %v334 = vld [vmem:[#allocation2 + $0x58] sm:$0xff]
      %v335 = vld [vmem:[#allocation2 + $0x60] sm:$0xff]
      %v336 = vld [vmem:[#allocation2 + $0x68] sm:$0xff]
      %v337 = vld [vmem:[#allocation2 + $0x70] sm:$0xff]
      %v338 = vld [vmem:[#allocation2 + $0x78] sm:$0xff]
      %v339 = vld [vmem:[%s267] sm:$0xf]
      %v340 = vld [vmem:[%s267 + $0x4] sm:$0xf]
      %v341 = vld [vmem:[%s267 + $0x8] sm:$0xf]
      %v342 = vld [vmem:[%s267 + $0xc] sm:$0xf]
      %v343 = vld [vmem:[%s267 + $0x10] sm:$0xf]
      %v344 = vld [vmem:[%s267 + $0x14] sm:$0xf]
      %v345 = vld [vmem:[%s267 + $0x18] sm:$0xf]
      %v346 = vld [vmem:[%s267 + $0x1c] sm:$0xf]
      %v347 = vld [vmem:[%s267 + $0x20] sm:$0xf]
      %v348 = vld [vmem:[%s267 + $0x24] sm:$0xf]
      %v349 = vld [vmem:[%s267 + $0x28] sm:$0xf]
      %v350 = vld [vmem:[%s267 + $0x2c] sm:$0xf]
      %v351 = vld [vmem:[%s267 + $0x30] sm:$0xf]
      %v352 = vld [vmem:[%s267 + $0x34] sm:$0xf]
      %v353 = vld [vmem:[%s267 + $0x38] sm:$0xf]
      %v354 = vld [vmem:[%s267 + $0x3c] sm:$0xf]
      %v355 = vld [vmem:[%s280] sm:$0xf]
      %v356 = vld [vmem:[%s280 + $0x4] sm:$0xf]
      %v357 = vld [vmem:[%s280 + $0x8] sm:$0xf]
      %v358 = vld [vmem:[%s280 + $0xc] sm:$0xf]
      %v375 = vunpack.c.l.b16 %v339
      %v376 = vunpack.c.l.b16 %v340
      %v377 = vunpack.c.l.b16 %v341
      %v378 = vunpack.c.l.b16 %v342
      %v379 = vunpack.c.l.b16 %v343
      %v380 = vunpack.c.l.b16 %v344
      %v381 = vunpack.c.l.b16 %v345
      %v382 = vunpack.c.l.b16 %v346
      %v383 = vunpack.c.l.b16 %v347
      %v384 = vunpack.c.l.b16 %v348
      %v385 = vunpack.c.l.b16 %v349
      %v386 = vunpack.c.l.b16 %v350
      %v387 = vunpack.c.l.b16 %v351
      %v388 = vunpack.c.l.b16 %v352
      %v389 = vunpack.c.l.b16 %v353
      %v390 = vunpack.c.l.b16 %v354
      %v391 = vpack.c.b16 %v376, %v375
      %v392 = vpack.c.b16 %v378, %v377
      %v393 = vpack.c.b16 %v380, %v379
      %v394 = vpack.c.b16 %v382, %v381
      %v395 = vpack.c.b16 %v384, %v383
      %v396 = vpack.c.b16 %v386, %v385
      %v397 = vpack.c.b16 %v388, %v387
      %v398 = vpack.c.b16 %v390, %v389
      %v403 = vunpack.c.l.b16 %v355
      %v404 = vunpack.c.l.b16 %v356
      %v405 = vunpack.c.l.b16 %v357
      %v406 = vunpack.c.l.b16 %v358
      %v407 = vpack.c.b16 %v404, %v403
      %v408 = vpack.c.b16 %v406, %v405
      %vm411 = vcmask 261120
      %v413 = vsel %vm411, %v391, 0
      %v416 = vsel %vm411, %v392, 0
      %v419 = vsel %vm411, %v393, 0
      %v422 = vsel %vm411, %v394, 0
      %v425 = vsel %vm411, %v395, 0
      %v428 = vsel %vm411, %v396, 0
      %v431 = vsel %vm411, %v397, 0
      %v434 = vsel %vm411, %v398, 0
      %436 = vmatprep.subr.bf16.mxu0 0
      %437 = vmatpush1.bf16.msra.mxu0 %v407
      %438 = vmatprep.subr.bf16.mxu0 0
      %439 = vmatpush1.bf16.msra.mxu0 %v408
      %440 = vmatprep.subr.bf16.mxu0 0
      %441 = vmatpush1.bf16.msra.mxu0 0
      %442 = vmatprep.subr.bf16.mxu0 0
      %443 = vmatpush1.bf16.msra.mxu0 0
      %444 = vmatprep.subr.bf16.mxu0 0
      %445 = vmatpush1.bf16.msra.mxu0 0
      %446 = vmatprep.subr.bf16.mxu0 0
      %447 = vmatpush1.bf16.msra.mxu0 0
      %448 = vmatprep.subr.bf16.mxu0 0
      %449 = vmatpush1.bf16.msra.mxu0 0
      %450 = vmatprep.subr.bf16.mxu0 0
      %451 = vmatpush1.bf16.msra.mxu0 0
      %452 = vmatprep.subr.bf16.mxu0 0
      %453 = vmatpush1.bf16.msra.mxu0 0
      %454 = vmatprep.subr.bf16.mxu0 0
      %455 = vmatpush1.bf16.msra.mxu0 0
      %456 = vmatprep.subr.bf16.mxu0 0
      %457 = vmatpush1.bf16.msra.mxu0 0
      %458 = vmatprep.subr.bf16.mxu0 0
      %459 = vmatpush1.bf16.msra.mxu0 0
      %460 = vmatprep.subr.bf16.mxu0 0
      %461 = vmatpush1.bf16.msra.mxu0 0
      %462 = vmatprep.subr.bf16.mxu0 0
      %463 = vmatpush1.bf16.msra.mxu0 0
      %464 = vmatprep.subr.bf16.mxu0 0
      %465 = vmatpush1.bf16.msra.mxu0 0
      %466 = vmatprep.subr.bf16.mxu0 0
      %467 = vmatpush1.bf16.msra.mxu0 0
      %468 = vmatprep.mubr.bf16.mxu0 0
      %469 = vmatmul.mubr.bf16.gmra.mrb[0].mxu0 %v413
      %v470 = vpop.f32.mrb[0].mxu0
      %v471 = vadd.f32 0.0, %v470
      %v472 = vpop.f32.mrb[0].mxu0
      %v473 = vpop.f32.mrb[0].mxu0
      %v474 = vadd.f32 0.0, %v473
      %v475 = vpop.f32.mrb[0].mxu0
      %476 = vmatprep.mubr.bf16.mxu0 0
      %477 = vmatmul.mubr.bf16.gmra.mrb[0].mxu0 %v416
      %v478 = vpop.f32.mrb[0].mxu0
      %v479 = vadd.f32 0.0, %v478
      %v480 = vpop.f32.mrb[0].mxu0
      %v481 = vpop.f32.mrb[0].mxu0
      %v482 = vadd.f32 0.0, %v481
      %v483 = vpop.f32.mrb[0].mxu0
      %484 = vmatprep.mubr.bf16.mxu0 0
      %485 = vmatmul.mubr.bf16.gmra.mrb[0].mxu0 %v419
      %v486 = vpop.f32.mrb[0].mxu0
      %v487 = vadd.f32 0.0, %v486
      %v488 = vpop.f32.mrb[0].mxu0
      %v489 = vpop.f32.mrb[0].mxu0
      %v490 = vadd.f32 0.0, %v489
      %v491 = vpop.f32.mrb[0].mxu0
      %492 = vmatprep.mubr.bf16.mxu0 0
      %493 = vmatmul.mubr.bf16.gmra.mrb[0].mxu0 %v422
      %v494 = vpop.f32.mrb[0].mxu0
      %v495 = vadd.f32 0.0, %v494
      %v496 = vpop.f32.mrb[0].mxu0
      %v497 = vpop.f32.mrb[0].mxu0
      %v498 = vadd.f32 0.0, %v497
      %v499 = vpop.f32.mrb[0].mxu0
      %500 = vmatprep.mubr.bf16.mxu0 0
      %501 = vmatmul.mubr.bf16.gmra.mrb[0].mxu0 %v425
      %v502 = vpop.f32.mrb[0].mxu0
      %v503 = vadd.f32 0.0, %v502
      %v504 = vpop.f32.mrb[0].mxu0
      %v505 = vpop.f32.mrb[0].mxu0
      %v506 = vadd.f32 0.0, %v505
      %v507 = vpop.f32.mrb[0].mxu0
      %508 = vmatprep.mubr.bf16.mxu0 0
      %509 = vmatmul.mubr.bf16.gmra.mrb[0].mxu0 %v428
      %v510 = vpop.f32.mrb[0].mxu0
      %v511 = vadd.f32 0.0, %v510
      %v512 = vpop.f32.mrb[0].mxu0
      %v513 = vpop.f32.mrb[0].mxu0
      %v514 = vadd.f32 0.0, %v513
      %v515 = vpop.f32.mrb[0].mxu0
      %516 = vmatprep.mubr.bf16.mxu0 0
      %517 = vmatmul.mubr.bf16.gmra.mrb[0].mxu0 %v431
      %v518 = vpop.f32.mrb[0].mxu0
      %v519 = vadd.f32 0.0, %v518
      %v520 = vpop.f32.mrb[0].mxu0
      %v521 = vpop.f32.mrb[0].mxu0
      %v522 = vadd.f32 0.0, %v521
      %v523 = vpop.f32.mrb[0].mxu0
      %524 = vmatprep.mubr.bf16.mxu0 0
      %525 = vmatmul.mubr.bf16.gmra.mrb[0].mxu0 %v434
      %v526 = vpop.f32.mrb[0].mxu0
      %v527 = vadd.f32 0.0, %v526
      %v528 = vpop.f32.mrb[0].mxu0
      %v529 = vpop.f32.mrb[0].mxu0
      %v530 = vadd.f32 0.0, %v529
      %v531 = vpop.f32.mrb[0].mxu0
      %532 = vdwg.mxu0
      %v533 = vadd.f32 %v323, %v471
      %v534 = vadd.f32 %v324, %v474
      %v535 = vadd.f32 %v325, %v479
      %v536 = vadd.f32 %v326, %v482
      %v537 = vadd.f32 %v327, %v487
      %v538 = vadd.f32 %v328, %v490
      %v539 = vadd.f32 %v329, %v495
      %v540 = vadd.f32 %v330, %v498
      %v541 = vadd.f32 %v331, %v503
      %v542 = vadd.f32 %v332, %v506
      %v543 = vadd.f32 %v333, %v511
      %v544 = vadd.f32 %v334, %v514
      %v545 = vadd.f32 %v335, %v519
      %v546 = vadd.f32 %v336, %v522
      %v547 = vadd.f32 %v337, %v527
      %v548 = vadd.f32 %v338, %v530
      %549 = vst.msk [vmem:[#allocation2] sm:$0xff] %vm411, %v533
      %550 = vst.msk [vmem:[#allocation2 + $0x8] sm:$0xff] %vm411, %v534
      %551 = vst.msk [vmem:[#allocation2 + $0x10] sm:$0xff] %vm411, %v535
      %552 = vst.msk [vmem:[#allocation2 + $0x18] sm:$0xff] %vm411, %v536
      %553 = vst.msk [vmem:[#allocation2 + $0x20] sm:$0xff] %vm411, %v537
      %554 = vst.msk [vmem:[#allocation2 + $0x28] sm:$0xff] %vm411, %v538
      %555 = vst.msk [vmem:[#allocation2 + $0x30] sm:$0xff] %vm411, %v539
      %556 = vst.msk [vmem:[#allocation2 + $0x38] sm:$0xff] %vm411, %v540
      %557 = vst.msk [vmem:[#allocation2 + $0x40] sm:$0xff] %vm411, %v541
      %558 = vst.msk [vmem:[#allocation2 + $0x48] sm:$0xff] %vm411, %v542
      %559 = vst.msk [vmem:[#allocation2 + $0x50] sm:$0xff] %vm411, %v543
      %560 = vst.msk [vmem:[#allocation2 + $0x58] sm:$0xff] %vm411, %v544
      %561 = vst.msk [vmem:[#allocation2 + $0x60] sm:$0xff] %vm411, %v545
      %562 = vst.msk [vmem:[#allocation2 + $0x68] sm:$0xff] %vm411, %v546
      %563 = vst.msk [vmem:[#allocation2 + $0x70] sm:$0xff] %vm411, %v547
      %564 = vst.msk [vmem:[#allocation2 + $0x78] sm:$0xff] %vm411, %v548
      // Predicated region
      $region37: #{attention_forward.3} parent=31 // pred_check
        %p565 = pneg %p302
      $region38: #{attention_forward.3} parent=31 // pred_check_branch
        %567 = sbr.rel (%p565) target = $region40
      $region39: #{attention_forward.3} parent=31 // pred_region
        %v568 = vld [vmem:[#allocation2] sm:$0xff]
        %v569 = vld [vmem:[#allocation2 + $0x8] sm:$0xff]
        %v570 = vld [vmem:[#allocation2 + $0x10] sm:$0xff]
        %v571 = vld [vmem:[#allocation2 + $0x18] sm:$0xff]
        %v572 = vld [vmem:[#allocation2 + $0x20] sm:$0xff]
        %v573 = vld [vmem:[#allocation2 + $0x28] sm:$0xff]
        %v574 = vld [vmem:[#allocation2 + $0x30] sm:$0xff]
        %v575 = vld [vmem:[#allocation2 + $0x38] sm:$0xff]
        %v576 = vld [vmem:[#allocation2 + $0x40] sm:$0xff]
        %v577 = vld [vmem:[#allocation2 + $0x48] sm:$0xff]
        %v578 = vld [vmem:[#allocation2 + $0x50] sm:$0xff]
        %v579 = vld [vmem:[#allocation2 + $0x58] sm:$0xff]
        %v580 = vld [vmem:[#allocation2 + $0x60] sm:$0xff]
        %v581 = vld [vmem:[#allocation2 + $0x68] sm:$0xff]
        %v582 = vld [vmem:[#allocation2 + $0x70] sm:$0xff]
        %v583 = vld [vmem:[#allocation2 + $0x78] sm:$0xff]
        %v584 = vld [vmem:[%s287] sm:$0x1]
        %v586 = vlaneseq
        %v587 = vshrl.u32 %v586, 7
        %v588 = vsub.s32 0, %v587
        %v589 = vrot.slane %v584, %v588
        %v591 = vadd.f32 %v568, %v589
        %v592 = vadd.f32 %v569, %v589
        %v593 = vadd.f32 %v570, %v589
        %v594 = vadd.f32 %v571, %v589
        %v595 = vadd.f32 %v572, %v589
        %v596 = vadd.f32 %v573, %v589
        %v597 = vadd.f32 %v574, %v589
        %v598 = vadd.f32 %v575, %v589
        %v599 = vadd.f32 %v576, %v589
        %v600 = vadd.f32 %v577, %v589
        %v601 = vadd.f32 %v578, %v589
        %v602 = vadd.f32 %v579, %v589
        %v603 = vadd.f32 %v580, %v589
        %v604 = vadd.f32 %v581, %v589
        %v605 = vadd.f32 %v582, %v589
        %v606 = vadd.f32 %v583, %v589
        %v607 = vpack.c.bf16 %v592, %v591
        %v608 = vpack.c.bf16 %v594, %v593
        %v609 = vpack.c.bf16 %v596, %v595
        %v610 = vpack.c.bf16 %v598, %v597
        %v611 = vpack.c.bf16 %v600, %v599
        %v612 = vpack.c.bf16 %v602, %v601
        %v613 = vpack.c.bf16 %v604, %v603
        %v614 = vpack.c.bf16 %v606, %v605
        %v623 = vunpack.c.l.b16 %v607
        %v624 = vunpack.c.h.b16 %v607
        %v625 = vunpack.c.l.b16 %v608
        %v626 = vunpack.c.h.b16 %v608
        %v627 = vunpack.c.l.b16 %v609
        %v628 = vunpack.c.h.b16 %v609
        %v629 = vunpack.c.l.b16 %v610
        %v630 = vunpack.c.h.b16 %v610
        %v631 = vunpack.c.l.b16 %v611
        %v632 = vunpack.c.h.b16 %v611
        %v633 = vunpack.c.l.b16 %v612
        %v634 = vunpack.c.h.b16 %v612
        %v635 = vunpack.c.l.b16 %v613
        %v636 = vunpack.c.h.b16 %v613
        %v637 = vunpack.c.l.b16 %v614
        %v638 = vunpack.c.h.b16 %v614
        %v639 = vpack.c.b16 %v623, %v623
        %v640 = vpack.c.b16 %v624, %v624
        %v641 = vpack.c.b16 %v625, %v625
        %v642 = vpack.c.b16 %v626, %v626
        %v643 = vpack.c.b16 %v627, %v627
        %v644 = vpack.c.b16 %v628, %v628
        %v645 = vpack.c.b16 %v629, %v629
        %v646 = vpack.c.b16 %v630, %v630
        %v647 = vpack.c.b16 %v631, %v631
        %v648 = vpack.c.b16 %v632, %v632
        %v649 = vpack.c.b16 %v633, %v633
        %v650 = vpack.c.b16 %v634, %v634
        %v651 = vpack.c.b16 %v635, %v635
        %v652 = vpack.c.b16 %v636, %v636
        %v653 = vpack.c.b16 %v637, %v637
        %v654 = vpack.c.b16 %v638, %v638
        %vm671 = vcmask 257024
        %672 = vst.msk [vmem:[%s299] sm:$0xf] %vm671, %v639
        %673 = vst.msk [vmem:[%s299 + $0x4] sm:$0xf] %vm671, %v640
        %674 = vst.msk [vmem:[%s299 + $0x8] sm:$0xf] %vm671, %v641
        %675 = vst.msk [vmem:[%s299 + $0xc] sm:$0xf] %vm671, %v642
        %676 = vst.msk [vmem:[%s299 + $0x10] sm:$0xf] %vm671, %v643
        %677 = vst.msk [vmem:[%s299 + $0x14] sm:$0xf] %vm671, %v644
        %678 = vst.msk [vmem:[%s299 + $0x18] sm:$0xf] %vm671, %v645
        %679 = vst.msk [vmem:[%s299 + $0x1c] sm:$0xf] %vm671, %v646
        %680 = vst.msk [vmem:[%s299 + $0x20] sm:$0xf] %vm671, %v647
        %681 = vst.msk [vmem:[%s299 + $0x24] sm:$0xf] %vm671, %v648
        %682 = vst.msk [vmem:[%s299 + $0x28] sm:$0xf] %vm671, %v649
        %683 = vst.msk [vmem:[%s299 + $0x2c] sm:$0xf] %vm671, %v650
        %684 = vst.msk [vmem:[%s299 + $0x30] sm:$0xf] %vm671, %v651
        %685 = vst.msk [vmem:[%s299 + $0x34] sm:$0xf] %vm671, %v652
        %686 = vst.msk [vmem:[%s299 + $0x38] sm:$0xf] %vm671, %v653
        %687 = vst.msk [vmem:[%s299 + $0x3c] sm:$0xf] %vm671, %v654
      $region40: #{attention_forward.3} parent=31 // pred_fallthru
        _
      %s688 = smul.u32 16, %s21
      %p689 = scmp.lt.s32.totalorder %s20, 2
      %s690 = scalar_select %p689, %s20, 2
      %p691 = scmp.lt.s32.totalorder %s688, 15
      %s692 = scalar_select %p691, %s688, 15
      %p693 = scmp.lt.s32.totalorder %s22, 0
      %s694 = scalar_select %p693, %s22, 0
      %s695 = sadd.s32 %s694, %s692
      %s696 = smul.addr %s690, 16
      %s697 = sadd.s32 %s695, %s696
      %s698 = smul.addr %s697, 4
      %s699 = scalar_lea.vmem %s3, %s698
      // Predicated region
      $region41: #{attention_forward.3} parent=31 // pred_check
        %p700 = pneg %p148
      $region42: #{attention_forward.3} parent=31 // pred_check_branch
        %702 = sbr.rel (%p700) target = $region44
      $region43: #{attention_forward.3} parent=31 // pred_region
        %s703 = smul.u32 16, %s21
      $region44: #{attention_forward.3} parent=31 // pred_fallthru
        _
    $region32: #{attention_forward.3} parent=5 // pred_fallthru
      _
    %p704 = scmp.le.s32.totalorder 2, %s9
    // Predicated region
    $region45: #{attention_forward.3} parent=5 // pred_check
      %p705 = pneg %p704
    $region46: #{attention_forward.3} parent=5 // pred_check_branch
      %707 = sbr.rel (%p705) target = $region48
    $region47: #{attention_forward.3} parent=5 // pred_region
      %s708 = ssub.s32 %s9, 2
      // Predicated region
      $region49: #{attention_forward.3} parent=47 // pred_check
        %p709 = pneg %p154
      $region50: #{attention_forward.3} parent=47 // pred_check_branch
        %711 = sbr.rel (%p709) target = $region52
      $region51: #{attention_forward.3} parent=47 // pred_region
        %s712 = smul.u32 16, %s25
        %p713 = scmp.lt.s32.totalorder %s24, 2
        %s714 = scalar_select %p713, %s24, 2
        %p715 = scmp.lt.s32.totalorder %s712, 15
        %s716 = scalar_select %p715, %s712, 15
        %p717 = scmp.lt.s32.totalorder %s26, 0
        %s718 = scalar_select %p717, %s26, 0
        %s719 = sadd.s32 %s718, %s716
        %s720 = smul.addr %s714, 16
        %s721 = sadd.s32 %s719, %s720
        %s722 = smul.addr %s721, 4
        %s723 = scalar_lea.vmem %s3, %s722
      $region52: #{attention_forward.3} parent=47 // pred_fallthru
        _
    $region48: #{attention_forward.3} parent=5 // pred_fallthru
      _
  $region6: #{attention_forward.3} parent=0 // loop_footer
    %s13 = sadd.s32 1, %s9
  $region7: #{attention_forward.3} parent=0 // loop_footer_branch
    %8 = sbr.rel target = $region3
  $region8: #{attention_forward.3} parent=0 // loop_exit
    _

// kernel: attention_forward.4
$region0: #{attention_forward.4}
  #allocation0 [shape = 'u32[]', space=smem, size = 0x4, offset = 0x4, fixed_abs, tag = 'smem constant byte address 0x4 - core index']
  #allocation1 [shape = 'u32[144,128]{1,0:T(1,128)}', space=vmem, size = 0x12000, scoped, tag = 'internal scratch']
  #allocation2 [shape = 'f32[64,32]{1,0:T(8,128)}', space=vmem, size = 0x8000, scoped, tag = 'scratch operand']
  %s0 = inlined_call_operand.vmem [shape: bf16[3,2,64,32], index: 0, kind: input, shape index: {}, may-alias: {0,1,2}]
  %s1 = inlined_call_operand.vmem [shape: bf16[3,2,64,32], index: 1, kind: input, shape index: {}, may-alias: {0,1,2}]
  %s2 = inlined_call_operand.vmem [shape: bf16[3,2,64,32], index: 2, kind: input, shape index: {}, may-alias: {0,1,2}]
  %s3 = inlined_call_operand.vmem [shape: bf16[2,64,32], index: 3, kind: output, shape index: {}]
  %s4 = sld [smem:[#allocation0]]
  $region45: #{attention_forward.4} parent=0
    _
  %s6 = ssub.s32 1, %s4
  %s7 = scalar_select 0, %s6, %s4
  loop: start=0, step=1, limit=4
  $region2: #{attention_forward.4} parent=0 // loop_pre_header
    _
  $region3: #{attention_forward.4} parent=0 // loop_header
    %s9 = sphi 0, %s13
    %p10 = scmp.ge.s32.totalorder %s9, 4
    %s16 = sphi 0, %s28
    %s17 = sphi 0, %s24
    %s18 = sphi 0, %s16
    %s19 = sphi 0, %s17
    %s20 = sphi 0, %s18
    %s21 = sphi 0, %s19
    %s33 = sphi 0, %s35
    %s36 = sphi 0, %s33
    %s37 = sphi 0, %s36
    %s53 = sphi 0, %s37
    %s61 = sphi 0, %s63
    %s64 = sphi 0, %s61
    %s65 = sphi 0, %s64
    %s81 = sphi 0, %s65
    %s89 = sphi 0, %s91
    %s92 = sphi 0, %s89
    %s93 = sphi 0, %s92
    %s109 = sphi 0, %s93
    %s117 = sphi 0, %s119
    %s120 = sphi 0, %s117
    %s121 = sphi 0, %s120
    %s137 = sphi 0, %s121
  $region4: #{attention_forward.4} parent=0 // loop_header_branch
    %12 = sbr.rel (%p10) target = $region8
  $region5: #{attention_forward.4} parent=0 // loop_body
    %s14 = ssub.s32 %s9, 1
    %s15 = ssub.s32 %s9, 2
    %s22 = sadd.s32 1, %s17
    %p23 = scmp.ge.s32.totalorder %s22, 1
    %s24 = scalar_select %p23, 0, %s22
    %s25 = sadd.s32 1, %s16
    %s26 = scalar_select %p23, %s25, %s16
    %p27 = scmp.ge.s32.totalorder %s26, 2
    %s28 = scalar_select %p27, 0, %s26
    %s29 = ssub.s32 %s16, %s28
    %s30 = ssub.s32 %s17, %s24
    %s31 = sor.u32 %s29, %s30
    %p32 = scmp.eq.s32.totalorder %s31, 0
    %s34 = sadd.s32 %s33, 1
    %s35 = scalar_select %p32, %s33, %s34
    %p38 = pneg %p32
    %p39 = scmp.eq.s32.totalorder %s9, 1
    %p40 = por %p38, %p39
    %p41 = scmp.ne.s32.totalorder %s33, %s36
    %p42 = scmp.eq.s32.totalorder %s9, 0
    %p43 = por %p41, %p42
    %p44 = scmp.ne.s32.totalorder %s33, %s36
    %p45 = scmp.eq.s32.totalorder %s14, 1
    %p46 = por %p44, %p45
    %p47 = scmp.ne.s32.totalorder %s36, %s37
    %p48 = scmp.eq.s32.totalorder %s14, 0
    %p49 = por %p47, %p48
    %p50 = scmp.ne.s32.totalorder %s36, %s37
    %p51 = scmp.eq.s32.totalorder %s15, 1
    %p52 = por %p50, %p51
    %p54 = scmp.ne.s32.totalorder %s37, %s53
    %p55 = scmp.eq.s32.totalorder %s15, 0
    %p56 = por %p54, %p55
    %s57 = ssub.s32 %s16, %s28
    %s58 = ssub.s32 %s17, %s24
    %s59 = sor.u32 %s57, %s58
    %p60 = scmp.eq.s32.totalorder %s59, 0
    %s62 = sadd.s32 %s61, 1
    %s63 = scalar_select %p60, %s61, %s62
    %p66 = pneg %p60
    %p67 = scmp.eq.s32.totalorder %s9, 1
    %p68 = por %p66, %p67
    %p69 = scmp.ne.s32.totalorder %s61, %s64
    %p70 = scmp.eq.s32.totalorder %s9, 0
    %p71 = por %p69, %p70
    %p72 = scmp.ne.s32.totalorder %s61, %s64
    %p73 = scmp.eq.s32.totalorder %s14, 1
    %p74 = por %p72, %p73
    %p75 = scmp.ne.s32.totalorder %s64, %s65
    %p76 = scmp.eq.s32.totalorder %s14, 0
    %p77 = por %p75, %p76
    %p78 = scmp.ne.s32.totalorder %s64, %s65
    %p79 = scmp.eq.s32.totalorder %s15, 1
    %p80 = por %p78, %p79
    %p82 = scmp.ne.s32.totalorder %s65, %s81
    %p83 = scmp.eq.s32.totalorder %s15, 0
    %p84 = por %p82, %p83
    %s85 = ssub.s32 %s16, %s28
    %s86 = ssub.s32 %s17, %s24
    %s87 = sor.u32 %s85, %s86
    %p88 = scmp.eq.s32.totalorder %s87, 0
    %s90 = sadd.s32 %s89, 1
    %s91 = scalar_select %p88, %s89, %s90
    %p94 = pneg %p88
    %p95 = scmp.eq.s32.totalorder %s9, 1
    %p96 = por %p94, %p95
    %p97 = scmp.ne.s32.totalorder %s89, %s92
    %p98 = scmp.eq.s32.totalorder %s9, 0
    %p99 = por %p97, %p98
    %p100 = scmp.ne.s32.totalorder %s89, %s92
    %p101 = scmp.eq.s32.totalorder %s14, 1
    %p102 = por %p100, %p101
    %p103 = scmp.ne.s32.totalorder %s92, %s93
    %p104 = scmp.eq.s32.totalorder %s14, 0
    %p105 = por %p103, %p104
    %p106 = scmp.ne.s32.totalorder %s92, %s93
    %p107 = scmp.eq.s32.totalorder %s15, 1
    %p108 = por %p106, %p107
    %p110 = scmp.ne.s32.totalorder %s93, %s109
    %p111 = scmp.eq.s32.totalorder %s15, 0
    %p112 = por %p110, %p111
    %s113 = ssub.s32 %s16, %s28
    %s114 = ssub.s32 %s17, %s24
    %s115 = sor.u32 %s113, %s114
    %p116 = scmp.eq.s32.totalorder %s115, 0
    %s118 = sadd.s32 %s117, 1
    %s119 = scalar_select %p116, %s117, %s118
    %p122 = pneg %p116
    %p123 = scmp.eq.s32.totalorder %s9, 1
    %p124 = por %p122, %p123
    %p125 = scmp.ne.s32.totalorder %s117, %s120
    %p126 = scmp.eq.s32.totalorder %s9, 0
    %p127 = por %p125, %p126
    %p128 = scmp.ne.s32.totalorder %s117, %s120
    %p129 = scmp.eq.s32.totalorder %s14, 1
    %p130 = por %p128, %p129
    %p131 = scmp.ne.s32.totalorder %s120, %s121
    %p132 = scmp.eq.s32.totalorder %s14, 0
    %p133 = por %p131, %p132
    %p134 = scmp.ne.s32.totalorder %s120, %s121
    %p135 = scmp.eq.s32.totalorder %s15, 1
    %p136 = por %p134, %p135
    %p138 = scmp.ne.s32.totalorder %s121, %s137
    %p139 = scmp.eq.s32.totalorder %s15, 0
    %p140 = por %p138, %p139
    %p141 = scmp.le.s32.totalorder 1, %s9
    %p142 = scmp.lt.s32.totalorder %s9, 3
    %p143 = pnand %p141, %p142
    %p144 = pneg %p143
    // Predicated region
    $region9: #{attention_forward.4} parent=5 // pred_check
      _
    $region10: #{attention_forward.4} parent=5 // pred_check_branch
      %146 = sbr.rel (%p143) target = $region12
    $region11: #{attention_forward.4} parent=5 // pred_region
      %s147 = ssub.s32 %s9, 1
    $region12: #{attention_forward.4} parent=5 // pred_fallthru
      _
    %p148 = scmp.lt.s32.totalorder %s9, 2
    // Predicated region
    $region13: #{attention_forward.4} parent=5 // pred_check
      %p149 = pneg %p148
    $region14: #{attention_forward.4} parent=5 // pred_check_branch
      %151 = sbr.rel (%p149) target = $region16
    $region15: #{attention_forward.4} parent=5 // pred_region
      // Predicated region
      $region17: #{attention_forward.4} parent=15 // pred_check
        %p152 = pneg %p43
      $region18: #{attention_forward.4} parent=15 // pred_check_branch
        %154 = sbr.rel (%p152) target = $region20
      $region19: #{attention_forward.4} parent=15 // pred_region
        %p155 = scmp.lt.s32.totalorder %s16, 1
        %s156 = scalar_select %p155, %s16, 1
        %p157 = scmp.lt.s32.totalorder %s17, 0
        %s158 = scalar_select %p157, %s17, 0
        %s159 = smul.addr %s156, 8
        %s160 = sadd.s32 %s158, %s159
        %s161 = smul.addr %s160, 4
        %s162 = scalar_lea.vmem %s0, %s161
      $region20: #{attention_forward.4} parent=15 // pred_fallthru
        _
      // Predicated region
      $region21: #{attention_forward.4} parent=15 // pred_check
        %p163 = pneg %p71
      $region22: #{attention_forward.4} parent=15 // pred_check_branch
        %165 = sbr.rel (%p163) target = $region24
      $region23: #{attention_forward.4} parent=15 // pred_region
        %p166 = scmp.lt.s32.totalorder %s16, 1
        %s167 = scalar_select %p166, %s16, 1
        %p168 = scmp.lt.s32.totalorder %s17, 0
        %s169 = scalar_select %p168, %s17, 0
        %s170 = smul.addr %s167, 8
        %s171 = sadd.s32 %s169, %s170
        %s172 = sadd.s32 %s171, 16
        %s173 = smul.addr %s172, 4
        %s174 = scalar_lea.vmem %s1, %s173
      $region24: #{attention_forward.4} parent=15 // pred_fallthru
        _
      // Predicated region
      $region25: #{attention_forward.4} parent=15 // pred_check
        %p175 = pneg %p99
      $region26: #{attention_forward.4} parent=15 // pred_check_branch
        %177 = sbr.rel (%p175) target = $region28
      $region27: #{attention_forward.4} parent=15 // pred_region
        %p178 = scmp.lt.s32.totalorder %s16, 1
        %s179 = scalar_select %p178, %s16, 1
        %p180 = scmp.lt.s32.totalorder %s17, 0
        %s181 = scalar_select %p180, %s17, 0
        %s182 = smul.addr %s179, 8
        %s183 = sadd.s32 %s181, %s182
        %s184 = sadd.s32 %s183, 32
        %s185 = smul.addr %s184, 4
        %s186 = scalar_lea.vmem %s2, %s185
      $region28: #{attention_forward.4} parent=15 // pred_fallthru
        _
    $region16: #{attention_forward.4} parent=5 // pred_fallthru
      _
    %p187 = scmp.le.s32.totalorder 1, %s9
    %p188 = scmp.lt.s32.totalorder %s9, 3
    %p189 = pnand %p187, %p188
    %p190 = pneg %p189
    // Predicated region
    $region29: #{attention_forward.4} parent=5 // pred_check
      _
    $region30: #{attention_forward.4} parent=5 // pred_check_branch
      %192 = sbr.rel (%p189) target = $region32
    $region31: #{attention_forward.4} parent=5 // pred_region
      %s193 = ssub.s32 %s9, 1
      %p194 = scmp.lt.s32.totalorder %s18, 1
      %s195 = scalar_select %p194, %s18, 1
      %p196 = scmp.lt.s32.totalorder %s19, 0
      %s197 = scalar_select %p196, %s19, 0
      %s198 = smul.addr %s195, 8
      %s199 = sadd.s32 %s197, %s198
      %s200 = smul.addr %s199, 4
      %s201 = scalar_lea.vmem %s0, %s200
      %p202 = pneg %p49
      %p203 = pneg %p46
      %p204 = scmp.lt.s32.totalorder %s18, 1
      %s205 = scalar_select %p204, %s18, 1
      %p206 = scmp.lt.s32.totalorder %s19, 0
      %s207 = scalar_select %p206, %s19, 0
      %s208 = smul.addr %s205, 8
      %s209 = sadd.s32 %s207, %s208
      %s210 = sadd.s32 %s209, 16
      %s211 = smul.addr %s210, 4
      %s212 = scalar_lea.vmem %s1, %s211
      %p213 = pneg %p77
      %p214 = pneg %p74
      %p215 = scmp.lt.s32.totalorder %s18, 1
      %s216 = scalar_select %p215, %s18, 1
      %p217 = scmp.lt.s32.totalorder %s19, 0
      %s218 = scalar_select %p217, %s19, 0
      %s219 = smul.addr %s216, 8
      %s220 = sadd.s32 %s218, %s219
      %s221 = sadd.s32 %s220, 32
      %s222 = smul.addr %s221, 4
      %s223 = scalar_lea.vmem %s2, %s222
      %p224 = pneg %p105
      %p225 = pneg %p102
      %p226 = pneg %p133
      %p227 = pneg %p130
      %p228 = scmp.lt.s32.totalorder %s18, 1
      %s229 = scalar_select %p228, %s18, 1
      %p230 = scmp.lt.s32.totalorder %s19, 0
      %s231 = scalar_select %p230, %s19, 0
      %s232 = smul.addr %s229, 8
      %s233 = sadd.s32 %s231, %s232
      %s234 = smul.addr %s233, 4
      %s235 = scalar_lea.vmem %s3, %s234
      %p236 = scmp.lt.s32.totalorder %s18, 1
      %s237 = scalar_select %p236, %s18, 1
      %p238 = scmp.lt.s32.totalorder %s19, 0
      %s239 = scalar_select %p238, %s19, 0
      %s240 = smul.addr %s237, 8
      %s241 = sadd.s32 %s239, %s240
      %s242 = smul.addr %s241, 4
      %s243 = scalar_lea.vmem %s0, %s242
      %p244 = scmp.lt.s32.totalorder %s18, 1
      %s245 = scalar_select %p244, %s18, 1
      %p246 = scmp.lt.s32.totalorder %s19, 0
      %s247 = scalar_select %p246, %s19, 0
      %s248 = smul.addr %s245, 8
      %s249 = sadd.s32 %s247, %s248
      %s250 = sadd.s32 %s249, 16
      %s251 = smul.addr %s250, 4
      %s252 = scalar_lea.vmem %s1, %s251
      %p253 = scmp.lt.s32.totalorder %s18, 1
      %s254 = scalar_select %p253, %s18, 1
      %p255 = scmp.lt.s32.totalorder %s19, 0
      %s256 = scalar_select %p255, %s19, 0
      %s257 = smul.addr %s254, 8
      %s258 = sadd.s32 %s256, %s257
      %s259 = sadd.s32 %s258, 32
      %s260 = smul.addr %s259, 4
      %s261 = scalar_lea.vmem %s2, %s260
      %p262 = scmp.lt.s32.totalorder %s18, 1
      %s263 = scalar_select %p262, %s18, 1
      %p264 = scmp.lt.s32.totalorder %s19, 0
      %s265 = scalar_select %p264, %s19, 0
      %s266 = smul.addr %s263, 8
      %s267 = sadd.s32 %s265, %s266
      %s268 = smul.addr %s267, 4
      %s269 = scalar_lea.vmem %s3, %s268
      %v272 = vld [vmem:[%s243] sm:$0xf]
      %v273 = vld [vmem:[%s243 + $0x4] sm:$0xf]
      %v274 = vld [vmem:[%s243 + $0x8] sm:$0xf]
      %v275 = vld [vmem:[%s243 + $0xc] sm:$0xf]
      %v276 = vld [vmem:[%s243 + $0x10] sm:$0xf]
      %v277 = vld [vmem:[%s243 + $0x14] sm:$0xf]
      %v278 = vld [vmem:[%s243 + $0x18] sm:$0xf]
      %v279 = vld [vmem:[%s243 + $0x1c] sm:$0xf]
      %v280 = vmul.bf16 %v272, 1052065461
      %v281 = vmul.bf16 %v273, 1052065461
      %v282 = vmul.bf16 %v274, 1052065461
      %v283 = vmul.bf16 %v275, 1052065461
      %v284 = vmul.bf16 %v276, 1052065461
      %v285 = vmul.bf16 %v277, 1052065461
      %v286 = vmul.bf16 %v278, 1052065461
      %v287 = vmul.bf16 %v279, 1052065461
      %v288 = vld [vmem:[%s252] sm:$0xf]
      %v289 = vld [vmem:[%s252 + $0x4] sm:$0xf]
      %v290 = vld [vmem:[%s252 + $0x8] sm:$0xf]
      %v291 = vld [vmem:[%s252 + $0xc] sm:$0xf]
      %v292 = vld [vmem:[%s252 + $0x10] sm:$0xf]
      %v293 = vld [vmem:[%s252 + $0x14] sm:$0xf]
      %v294 = vld [vmem:[%s252 + $0x18] sm:$0xf]
      %v295 = vld [vmem:[%s252 + $0x1c] sm:$0xf]
      %v296 = vld [vmem:[%s261] sm:$0xf]
      %v297 = vld [vmem:[%s261 + $0x4] sm:$0xf]
      %v298 = vld [vmem:[%s261 + $0x8] sm:$0xf]
      %v299 = vld [vmem:[%s261 + $0xc] sm:$0xf]
      %v300 = vld [vmem:[%s261 + $0x10] sm:$0xf]
      %v301 = vld [vmem:[%s261 + $0x14] sm:$0xf]
      %v302 = vld [vmem:[%s261 + $0x18] sm:$0xf]
      %v303 = vld [vmem:[%s261 + $0x1c] sm:$0xf]
      %v312 = vunpack.c.l.b16 %v280
      %v313 = vunpack.c.l.b16 %v281
      %v314 = vunpack.c.l.b16 %v282
      %v315 = vunpack.c.l.b16 %v283
      %v316 = vunpack.c.l.b16 %v284
      %v317 = vunpack.c.l.b16 %v285
      %v318 = vunpack.c.l.b16 %v286
      %v319 = vunpack.c.l.b16 %v287
      %v320 = vpack.c.b16 %v313, %v312
      %v321 = vpack.c.b16 %v315, %v314
      %v322 = vpack.c.b16 %v317, %v316
      %v323 = vpack.c.b16 %v319, %v318
      %v332 = vunpack.c.l.b16 %v288
      %v333 = vunpack.c.l.b16 %v289
      %v334 = vunpack.c.l.b16 %v290
      %v335 = vunpack.c.l.b16 %v291
      %v336 = vunpack.c.l.b16 %v292
      %v337 = vunpack.c.l.b16 %v293
      %v338 = vunpack.c.l.b16 %v294
      %v339 = vunpack.c.l.b16 %v295
      %v340 = vpack.c.b16 %v333, %v332
      %v341 = vpack.c.b16 %v335, %v334
      %v342 = vpack.c.b16 %v337, %v336
      %v343 = vpack.c.b16 %v339, %v338
      %vm344 = vcmask 64512
      %v346 = vsel %vm344, %v320, 0
      %v349 = vsel %vm344, %v321, 0
      %v352 = vsel %vm344, %v322, 0
      %v355 = vsel %vm344, %v323, 0
      %v358 = vsel %vm344, %v340, 0
      %v361 = vsel %vm344, %v341, 0
      %v364 = vsel %vm344, %v342, 0
      %v367 = vsel %vm344, %v343, 0
      %369 = vmatprep.subr.bf16.mxu0 0
      %370 = vmatpush1.bf16.xpose.msra.mxu0 %v358
      %371 = vmatprep.subr.bf16.mxu0 0
      %372 = vmatpush1.bf16.xpose.msra.mxu0 %v361
      %373 = vmatprep.subr.bf16.mxu0 0
      %374 = vmatpush1.bf16.xpose.msra.mxu0 %v364
      %375 = vmatprep.subr.bf16.mxu0 0
      %376 = vmatpush1.bf16.xpose.msra.mxu0 %v367
      %377 = vmatprep.subr.bf16.mxu0 0
      %378 = vmatpush1.bf16.xpose.msra.mxu0 0
      %379 = vmatprep.subr.bf16.mxu0 0
      %380 = vmatpush1.bf16.xpose.msra.mxu0 0
      %381 = vmatprep.subr.bf16.mxu0 0
      %382 = vmatpush1.bf16.xpose.msra.mxu0 0
      %383 = vmatprep.subr.bf16.mxu0 0
      %384 = vmatpush1.bf16.xpose.msra.mxu0 0
      %385 = vmatprep.subr.bf16.mxu0 0
      %386 = vmatpush1.bf16.xpose.msra.mxu0 0
      %387 = vmatprep.subr.bf16.mxu0 0
      %388 = vmatpush1.bf16.xpose.msra.mxu0 0
      %389 = vmatprep.subr.bf16.mxu0 0
      %390 = vmatpush1.bf16.xpose.msra.mxu0 0
      %391 = vmatprep.subr.bf16.mxu0 0
      %392 = vmatpush1.bf16.xpose.msra.mxu0 0
      %393 = vmatprep.subr.bf16.mxu0 0
      %394 = vmatpush1.bf16.xpose.msra.mxu0 0
      %395 = vmatprep.subr.bf16.mxu0 0
      %396 = vmatpush1.bf16.xpose.msra.mxu0 0
      %397 = vmatprep.subr.bf16.mxu0 0
      %398 = vmatpush1.bf16.xpose.msra.mxu0 0
      %399 = vmatprep.subr.bf16.mxu0 0
      %400 = vmatpush1.bf16.xpose.msra.mxu0 0
      %401 = vmatprep.mubr.bf16.mxu0 0
      %402 = vmatmul.mubr.bf16.gmra.mrb[0].mxu0 %v346
      %v403 = vpop.f32.mrb[0].mxu0
      %v404 = vadd.f32 0.0, %v403
      %v405 = vpop.f32.mrb[0].mxu0
      %v406 = vpop.f32.mrb[0].mxu0
      %v407 = vadd.f32 0.0, %v406
      %v408 = vpop.f32.mrb[0].mxu0
      %409 = vmatprep.mubr.bf16.mxu0 0
      %410 = vmatmul.mubr.bf16.gmra.mrb[0].mxu0 %v349
      %v411 = vpop.f32.mrb[0].mxu0
      %v412 = vadd.f32 0.0, %v411
      %v413 = vpop.f32.mrb[0].mxu0
      %v414 = vpop.f32.mrb[0].mxu0
      %v415 = vadd.f32 0.0, %v414
      %v416 = vpop.f32.mrb[0].mxu0
      %417 = vmatprep.mubr.bf16.mxu0 0
      %418 = vmatmul.mubr.bf16.gmra.mrb[0].mxu0 %v352
      %v419 = vpop.f32.mrb[0].mxu0
      %v420 = vadd.f32 0.0, %v419
      %v421 = vpop.f32.mrb[0].mxu0
      %v422 = vpop.f32.mrb[0].mxu0
      %v423 = vadd.f32 0.0, %v422
      %v424 = vpop.f32.mrb[0].mxu0
      %425 = vmatprep.mubr.bf16.mxu0 0
      %426 = vmatmul.mubr.bf16.gmra.mrb[0].mxu0 %v355
      %v427 = vpop.f32.mrb[0].mxu0
      %v428 = vadd.f32 0.0, %v427
      %v429 = vpop.f32.mrb[0].mxu0
      %v430 = vpop.f32.mrb[0].mxu0
      %v431 = vadd.f32 0.0, %v430
      %v432 = vpop.f32.mrb[0].mxu0
      %433 = vdwg.mxu0
      %vm434 = vcmask 523264
      %v435 = vsel %vm434, %v404, -inf
      %436 = vmax.xlane.f32.xlu0 %v435
      %v437 = vpop.xlane.xlu0 %436
      %v438 = vsel %vm434, %v407, -inf
      %439 = vmax.xlane.f32.xlu0 %v438
      %v440 = vpop.xlane.xlu0 %439
      %v441 = vsel %vm434, %v412, -inf
      %442 = vmax.xlane.f32.xlu0 %v441
      %v443 = vpop.xlane.xlu0 %442
      %v444 = vsel %vm434, %v415, -inf
      %445 = vmax.xlane.f32.xlu0 %v444
      %v446 = vpop.xlane.xlu0 %445
      %v447 = vsel %vm434, %v420, -inf
      %448 = vmax.xlane.f32.xlu0 %v447
      %v449 = vpop.xlane.xlu0 %448
      %v450 = vsel %vm434, %v423, -inf
      %451 = vmax.xlane.f32.xlu0 %v450
      %v452 = vpop.xlane.xlu0 %451
      %v453 = vsel %vm434, %v428, -inf
      %454 = vmax.xlane.f32.xlu0 %v453
      %v455 = vpop.xlane.xlu0 %454
      %v456 = vsel %vm434, %v431, -inf
      %457 = vmax.xlane.f32.xlu0 %v456
      %v458 = vpop.xlane.xlu0 %457
      %v459 = vsub.f32 %v404, %v437
      %v460 = vsub.f32 %v407, %v440
      %v461 = vsub.f32 %v412, %v443
      %v462 = vsub.f32 %v415, %v446
      %v463 = vsub.f32 %v420, %v449
      %v464 = vsub.f32 %v423, %v452
      %v465 = vsub.f32 %v428, %v455
      %v466 = vsub.f32 %v431, %v458
      %v467 = vmul.f32 %v459, 1.442695
      %v468 = vpow.pop %v467
      %v469 = vmul.f32 %v460, 1.442695
      %v470 = vpow.pop %v469
      %v471 = vmul.f32 %v461, 1.442695
      %v472 = vpow.pop %v471
      %v473 = vmul.f32 %v462, 1.442695
      %v474 = vpow.pop %v473
      %v475 = vmul.f32 %v463, 1.442695
      %v476 = vpow.pop %v475
      %v477 = vmul.f32 %v464, 1.442695
      %v478 = vpow.pop %v477
      %v479 = vmul.f32 %v465, 1.442695
      %v480 = vpow.pop %v479
      %v481 = vmul.f32 %v466, 1.442695
      %v482 = vpow.pop %v481
      %v483 = vsel %vm434, %v468, 0.0
      %484 = vadd.xlane.f32.xlu0 %v483
      %v485 = vpop.xlane.xlu0 %484
      %v486 = vsel %vm434, %v470, 0.0
      %487 = vadd.xlane.f32.xlu0 %v486
      %v488 = vpop.xlane.xlu0 %487
      %v489 = vsel %vm434, %v472, 0.0
      %490 = vadd.xlane.f32.xlu0 %v489
      %v491 = vpop.xlane.xlu0 %490
      %v492 = vsel %vm434, %v474, 0.0
      %493 = vadd.xlane.f32.xlu0 %v492
      %v494 = vpop.xlane.xlu0 %493
      %v495 = vsel %vm434, %v476, 0.0
      %496 = vadd.xlane.f32.xlu0 %v495
      %v497 = vpop.xlane.xlu0 %496
      %v498 = vsel %vm434, %v478, 0.0
      %499 = vadd.xlane.f32.xlu0 %v498
      %v500 = vpop.xlane.xlu0 %499
      %v501 = vsel %vm434, %v480, 0.0
      %502 = vadd.xlane.f32.xlu0 %v501
      %v503 = vpop.xlane.xlu0 %502
      %v504 = vsel %vm434, %v482, 0.0
      %505 = vadd.xlane.f32.xlu0 %v504
      %v506 = vpop.xlane.xlu0 %505
      %v507 = vrcp.pop %v485
      %v508 = vrcp.pop %v488
      %v509 = vrcp.pop %v491
      %v510 = vrcp.pop %v494
      %v511 = vrcp.pop %v497
      %v512 = vrcp.pop %v500
      %v513 = vrcp.pop %v503
      %v514 = vrcp.pop %v506
      %v515 = vpack.c.bf16 %v470, %v468
      %v516 = vpack.c.bf16 %v474, %v472
      %v517 = vpack.c.bf16 %v478, %v476
      %v518 = vpack.c.bf16 %v482, %v480
      %v527 = vunpack.c.l.b16 %v296
      %v528 = vunpack.c.l.b16 %v297
      %v529 = vunpack.c.l.b16 %v298
      %v530 = vunpack.c.l.b16 %v299
      %v531 = vunpack.c.l.b16 %v300
      %v532 = vunpack.c.l.b16 %v301
      %v533 = vunpack.c.l.b16 %v302
      %v534 = vunpack.c.l.b16 %v303
      %v535 = vpack.c.b16 %v528, %v527
      %v536 = vpack.c.b16 %v530, %v529
      %v537 = vpack.c.b16 %v532, %v531
      %v538 = vpack.c.b16 %v534, %v533
      %v544 = vsel %vm434, %v515, 0
      %v547 = vsel %vm434, %v516, 0
      %v550 = vsel %vm434, %v517, 0
      %v553 = vsel %vm434, %v518, 0
      %555 = vmatprep.subr.bf16.mxu0 0
      %556 = vmatpush1.bf16.msra.mxu0 %v535
      %557 = vmatprep.subr.bf16.mxu0 0
      %558 = vmatpush1.bf16.msra.mxu0 %v536
      %559 = vmatprep.subr.bf16.mxu0 0
      %560 = vmatpush1.bf16.msra.mxu0 %v537
      %561 = vmatprep.subr.bf16.mxu0 0
      %562 = vmatpush1.bf16.msra.mxu0 %v538
      %563 = vmatprep.subr.bf16.mxu0 0
      %564 = vmatpush1.bf16.msra.mxu0 0
      %565 = vmatprep.subr.bf16.mxu0 0
      %566 = vmatpush1.bf16.msra.mxu0 0
      %567 = vmatprep.subr.bf16.mxu0 0
      %568 = vmatpush1.bf16.msra.mxu0 0
      %569 = vmatprep.subr.bf16.mxu0 0
      %570 = vmatpush1.bf16.msra.mxu0 0
      %571 = vmatprep.subr.bf16.mxu0 0
      %572 = vmatpush1.bf16.msra.mxu0 0
      %573 = vmatprep.subr.bf16.mxu0 0
      %574 = vmatpush1.bf16.msra.mxu0 0
      %575 = vmatprep.subr.bf16.mxu0 0
      %576 = vmatpush1.bf16.msra.mxu0 0
      %577 = vmatprep.subr.bf16.mxu0 0
      %578 = vmatpush1.bf16.msra.mxu0 0
      %579 = vmatprep.subr.bf16.mxu0 0
      %580 = vmatpush1.bf16.msra.mxu0 0
      %581 = vmatprep.subr.bf16.mxu0 0
      %582 = vmatpush1.bf16.msra.mxu0 0
      %583 = vmatprep.subr.bf16.mxu0 0
      %584 = vmatpush1.bf16.msra.mxu0 0
      %585 = vmatprep.subr.bf16.mxu0 0
      %586 = vmatpush1.bf16.msra.mxu0 0
      %587 = vmatprep.mubr.bf16.mxu0 0
      %588 = vmatmul.mubr.bf16.gmra.mrb[0].mxu0 %v544
      %v589 = vpop.f32.mrb[0].mxu0
      %v590 = vadd.f32 0.0, %v589
      %v591 = vpop.f32.mrb[0].mxu0
      %v592 = vpop.f32.mrb[0].mxu0
      %v593 = vadd.f32 0.0, %v592
      %v594 = vpop.f32.mrb[0].mxu0
      %595 = vmatprep.mubr.bf16.mxu0 0
      %596 = vmatmul.mubr.bf16.gmra.mrb[0].mxu0 %v547
      %v597 = vpop.f32.mrb[0].mxu0
      %v598 = vadd.f32 0.0, %v597
      %v599 = vpop.f32.mrb[0].mxu0
      %v600 = vpop.f32.mrb[0].mxu0
      %v601 = vadd.f32 0.0, %v600
      %v602 = vpop.f32.mrb[0].mxu0
      %603 = vmatprep.mubr.bf16.mxu0 0
      %604 = vmatmul.mubr.bf16.gmra.mrb[0].mxu0 %v550
      %v605 = vpop.f32.mrb[0].mxu0
      %v606 = vadd.f32 0.0, %v605
      %v607 = vpop.f32.mrb[0].mxu0
      %v608 = vpop.f32.mrb[0].mxu0
      %v609 = vadd.f32 0.0, %v608
      %v610 = vpop.f32.mrb[0].mxu0
      %611 = vmatprep.mubr.bf16.mxu0 0
      %612 = vmatmul.mubr.bf16.gmra.mrb[0].mxu0 %v553
      %v613 = vpop.f32.mrb[0].mxu0
      %v614 = vadd.f32 0.0, %v613
      %v615 = vpop.f32.mrb[0].mxu0
      %v616 = vpop.f32.mrb[0].mxu0
      %v617 = vadd.f32 0.0, %v616
      %v618 = vpop.f32.mrb[0].mxu0
      %619 = vdwg.mxu0
      %v620 = vmul.f32 %v590, %v507
      %v621 = vmul.f32 %v593, %v508
      %v622 = vmul.f32 %v598, %v509
      %v623 = vmul.f32 %v601, %v510
      %v624 = vmul.f32 %v606, %v511
      %v625 = vmul.f32 %v609, %v512
      %v626 = vmul.f32 %v614, %v513
      %v627 = vmul.f32 %v617, %v514
      %628 = vst.msk [vmem:[#allocation2] sm:$0xff] %vm344, %v620
      %629 = vst.msk [vmem:[#allocation2 + $0x8] sm:$0xff] %vm344, %v621
      %630 = vst.msk [vmem:[#allocation2 + $0x10] sm:$0xff] %vm344, %v622
      %631 = vst.msk [vmem:[#allocation2 + $0x18] sm:$0xff] %vm344, %v623
      %632 = vst.msk [vmem:[#allocation2 + $0x20] sm:$0xff] %vm344, %v624
      %633 = vst.msk [vmem:[#allocation2 + $0x28] sm:$0xff] %vm344, %v625
      %634 = vst.msk [vmem:[#allocation2 + $0x30] sm:$0xff] %vm344, %v626
      %635 = vst.msk [vmem:[#allocation2 + $0x38] sm:$0xff] %vm344, %v627
      %v636 = vld [vmem:[%s243] sm:$0xf]
      %v637 = vld [vmem:[%s243 + $0x4] sm:$0xf]
      %v638 = vld [vmem:[%s243 + $0x8] sm:$0xf]
      %v639 = vld [vmem:[%s243 + $0xc] sm:$0xf]
      %v640 = vld [vmem:[%s243 + $0x10] sm:$0xf]
      %v641 = vld [vmem:[%s243 + $0x14] sm:$0xf]
      %v642 = vld [vmem:[%s243 + $0x18] sm:$0xf]
      %v643 = vld [vmem:[%s243 + $0x1c] sm:$0xf]
      %v644 = vmul.bf16 %v636, 1052065461
      %v645 = vmul.bf16 %v637, 1052065461
      %v646 = vmul.bf16 %v638, 1052065461
      %v647 = vmul.bf16 %v639, 1052065461
      %v648 = vmul.bf16 %v640, 1052065461
      %v649 = vmul.bf16 %v641, 1052065461
      %v650 = vmul.bf16 %v642, 1052065461
      %v651 = vmul.bf16 %v643, 1052065461
      %v652 = vld [vmem:[%s252] sm:$0xf]
      %v653 = vld [vmem:[%s252 + $0x4] sm:$0xf]
      %v654 = vld [vmem:[%s252 + $0x8] sm:$0xf]
      %v655 = vld [vmem:[%s252 + $0xc] sm:$0xf]
      %v656 = vld [vmem:[%s252 + $0x10] sm:$0xf]
      %v657 = vld [vmem:[%s252 + $0x14] sm:$0xf]
      %v658 = vld [vmem:[%s252 + $0x18] sm:$0xf]
      %v659 = vld [vmem:[%s252 + $0x1c] sm:$0xf]
      %v660 = vld [vmem:[%s261] sm:$0xf]
      %v661 = vld [vmem:[%s261 + $0x4] sm:$0xf]
      %v662 = vld [vmem:[%s261 + $0x8] sm:$0xf]
      %v663 = vld [vmem:[%s261 + $0xc] sm:$0xf]
      %v664 = vld [vmem:[%s261 + $0x10] sm:$0xf]
      %v665 = vld [vmem:[%s261 + $0x14] sm:$0xf]
      %v666 = vld [vmem:[%s261 + $0x18] sm:$0xf]
      %v667 = vld [vmem:[%s261 + $0x1c] sm:$0xf]
      %v676 = vunpack.c.l.b16 %v644
      %v677 = vunpack.c.l.b16 %v645
      %v678 = vunpack.c.l.b16 %v646
      %v679 = vunpack.c.l.b16 %v647
      %v680 = vunpack.c.l.b16 %v648
      %v681 = vunpack.c.l.b16 %v649
      %v682 = vunpack.c.l.b16 %v650
      %v683 = vunpack.c.l.b16 %v651
      %v684 = vpack.c.b16 %v677, %v676
      %v685 = vpack.c.b16 %v679, %v678
      %v686 = vpack.c.b16 %v681, %v680
      %v687 = vpack.c.b16 %v683, %v682
      %688 = vrot.lane.b32.xlu0 %v684, 120
      %v689 = vpop.permute.xlu0 %688
      %690 = vrot.lane.b32.xlu0 %v685, 120
      %v691 = vpop.permute.xlu0 %690
      %692 = vrot.lane.b32.xlu0 %v686, 120
      %v693 = vpop.permute.xlu0 %692
      %694 = vrot.lane.b32.xlu0 %v687, 120
      %v695 = vpop.permute.xlu0 %694
      %v704 = vunpack.c.l.b16 %v652
      %v705 = vunpack.c.l.b16 %v653
      %v706 = vunpack.c.l.b16 %v654
      %v707 = vunpack.c.l.b16 %v655
      %v708 = vunpack.c.l.b16 %v656
      %v709 = vunpack.c.l.b16 %v657
      %v710 = vunpack.c.l.b16 %v658
      %v711 = vunpack.c.l.b16 %v659
      %v712 = vpack.c.b16 %v705, %v704
      %v713 = vpack.c.b16 %v707, %v706
      %v714 = vpack.c.b16 %v709, %v708
      %v715 = vpack.c.b16 %v711, %v710
      %716 = vrot.lane.b32.xlu0 %v712, 120
      %v717 = vpop.permute.xlu0 %716
      %718 = vrot.lane.b32.xlu0 %v713, 120
      %v719 = vpop.permute.xlu0 %718
      %720 = vrot.lane.b32.xlu0 %v714, 120
      %v721 = vpop.permute.xlu0 %720
      %722 = vrot.lane.b32.xlu0 %v715, 120
      %v723 = vpop.permute.xlu0 %722
      %v725 = vsel %vm344, %v689, 0
      %v728 = vsel %vm344, %v691, 0
      %v731 = vsel %vm344, %v693, 0
      %v734 = vsel %vm344, %v695, 0
      %v737 = vsel %vm344, %v717, 0
      %v740 = vsel %vm344, %v719, 0
      %v743 = vsel %vm344, %v721, 0
      %v746 = vsel %vm344, %v723, 0
      %748 = vmatprep.subr.bf16.mxu0 0
      %749 = vmatpush1.bf16.xpose.msra.mxu0 %v737
      %750 = vmatprep.subr.bf16.mxu0 0
      %751 = vmatpush1.bf16.xpose.msra.mxu0 %v740
      %752 = vmatprep.subr.bf16.mxu0 0
      %753 = vmatpush1.bf16.xpose.msra.mxu0 %v743
      %754 = vmatprep.subr.bf16.mxu0 0
      %755 = vmatpush1.bf16.xpose.msra.mxu0 %v746
      %756 = vmatprep.subr.bf16.mxu0 0
      %757 = vmatpush1.bf16.xpose.msra.mxu0 0
      %758 = vmatprep.subr.bf16.mxu0 0
      %759 = vmatpush1.bf16.xpose.msra.mxu0 0
      %760 = vmatprep.subr.bf16.mxu0 0
      %761 = vmatpush1.bf16.xpose.msra.mxu0 0
      %762 = vmatprep.subr.bf16.mxu0 0
      %763 = vmatpush1.bf16.xpose.msra.mxu0 0
      %764 = vmatprep.subr.bf16.mxu0 0
      %765 = vmatpush1.bf16.xpose.msra.mxu0 0
      %766 = vmatprep.subr.bf16.mxu0 0
      %767 = vmatpush1.bf16.xpose.msra.mxu0 0
      %768 = vmatprep.subr.bf16.mxu0 0
      %769 = vmatpush1.bf16.xpose.msra.mxu0 0
      %770 = vmatprep.subr.bf16.mxu0 0
      %771 = vmatpush1.bf16.xpose.msra.mxu0 0
      %772 = vmatprep.subr.bf16.mxu0 0
      %773 = vmatpush1.bf16.xpose.msra.mxu0 0
      %774 = vmatprep.subr.bf16.mxu0 0
      %775 = vmatpush1.bf16.xpose.msra.mxu0 0
      %776 = vmatprep.subr.bf16.mxu0 0
      %777 = vmatpush1.bf16.xpose.msra.mxu0 0
      %778 = vmatprep.subr.bf16.mxu0 0
      %779 = vmatpush1.bf16.xpose.msra.mxu0 0
      %780 = vmatprep.mubr.bf16.mxu0 0
      %781 = vmatmul.mubr.bf16.gmra.mrb[0].mxu0 %v725
      %v782 = vpop.f32.mrb[0].mxu0
      %v783 = vadd.f32 0.0, %v782
      %v784 = vpop.f32.mrb[0].mxu0
      %v785 = vpop.f32.mrb[0].mxu0
      %v786 = vadd.f32 0.0, %v785
      %v787 = vpop.f32.mrb[0].mxu0
      %788 = vmatprep.mubr.bf16.mxu0 0
      %789 = vmatmul.mubr.bf16.gmra.mrb[0].mxu0 %v728
      %v790 = vpop.f32.mrb[0].mxu0
      %v791 = vadd.f32 0.0, %v790
      %v792 = vpop.f32.mrb[0].mxu0
      %v793 = vpop.f32.mrb[0].mxu0
      %v794 = vadd.f32 0.0, %v793
      %v795 = vpop.f32.mrb[0].mxu0
      %796 = vmatprep.mubr.bf16.mxu0 0
      %797 = vmatmul.mubr.bf16.gmra.mrb[0].mxu0 %v731
      %v798 = vpop.f32.mrb[0].mxu0
      %v799 = vadd.f32 0.0, %v798
      %v800 = vpop.f32.mrb[0].mxu0
      %v801 = vpop.f32.mrb[0].mxu0
      %v802 = vadd.f32 0.0, %v801
      %v803 = vpop.f32.mrb[0].mxu0
      %804 = vmatprep.mubr.bf16.mxu0 0
      %805 = vmatmul.mubr.bf16.gmra.mrb[0].mxu0 %v734
      %v806 = vpop.f32.mrb[0].mxu0
      %v807 = vadd.f32 0.0, %v806
      %v808 = vpop.f32.mrb[0].mxu0
      %v809 = vpop.f32.mrb[0].mxu0
      %v810 = vadd.f32 0.0, %v809
      %v811 = vpop.f32.mrb[0].mxu0
      %812 = vdwg.mxu0
      %v813 = vsel %vm434, %v783, -inf
      %814 = vmax.xlane.f32.xlu0 %v813
      %v815 = vpop.xlane.xlu0 %814
      %v816 = vsel %vm434, %v786, -inf
      %817 = vmax.xlane.f32.xlu0 %v816
      %v818 = vpop.xlane.xlu0 %817
      %v819 = vsel %vm434, %v791, -inf
      %820 = vmax.xlane.f32.xlu0 %v819
      %v821 = vpop.xlane.xlu0 %820
      %v822 = vsel %vm434, %v794, -inf
      %823 = vmax.xlane.f32.xlu0 %v822
      %v824 = vpop.xlane.xlu0 %823
      %v825 = vsel %vm434, %v799, -inf
      %826 = vmax.xlane.f32.xlu0 %v825
      %v827 = vpop.xlane.xlu0 %826
      %v828 = vsel %vm434, %v802, -inf
      %829 = vmax.xlane.f32.xlu0 %v828
      %v830 = vpop.xlane.xlu0 %829
      %v831 = vsel %vm434, %v807, -inf
      %832 = vmax.xlane.f32.xlu0 %v831
      %v833 = vpop.xlane.xlu0 %832
      %v834 = vsel %vm434, %v810, -inf
      %835 = vmax.xlane.f32.xlu0 %v834
      %v836 = vpop.xlane.xlu0 %835
      %v837 = vsub.f32 %v783, %v815
      %v838 = vsub.f32 %v786, %v818
      %v839 = vsub.f32 %v791, %v821
      %v840 = vsub.f32 %v794, %v824
      %v841 = vsub.f32 %v799, %v827
      %v842 = vsub.f32 %v802, %v830
      %v843 = vsub.f32 %v807, %v833
      %v844 = vsub.f32 %v810, %v836
      %v845 = vmul.f32 %v837, 1.442695
      %v846 = vpow.pop %v845
      %v847 = vmul.f32 %v838, 1.442695
      %v848 = vpow.pop %v847
      %v849 = vmul.f32 %v839, 1.442695
      %v850 = vpow.pop %v849
      %v851 = vmul.f32 %v840, 1.442695
      %v852 = vpow.pop %v851
      %v853 = vmul.f32 %v841, 1.442695
      %v854 = vpow.pop %v853
      %v855 = vmul.f32 %v842, 1.442695
      %v856 = vpow.pop %v855
      %v857 = vmul.f32 %v843, 1.442695
      %v858 = vpow.pop %v857
      %v859 = vmul.f32 %v844, 1.442695
      %v860 = vpow.pop %v859
      %v861 = vsel %vm434, %v846, 0.0
      %862 = vadd.xlane.f32.xlu0 %v861
      %v863 = vpop.xlane.xlu0 %862
      %v864 = vsel %vm434, %v848, 0.0
      %865 = vadd.xlane.f32.xlu0 %v864
      %v866 = vpop.xlane.xlu0 %865
      %v867 = vsel %vm434, %v850, 0.0
      %868 = vadd.xlane.f32.xlu0 %v867
      %v869 = vpop.xlane.xlu0 %868
      %v870 = vsel %vm434, %v852, 0.0
      %871 = vadd.xlane.f32.xlu0 %v870
      %v872 = vpop.xlane.xlu0 %871
      %v873 = vsel %vm434, %v854, 0.0
      %874 = vadd.xlane.f32.xlu0 %v873
      %v875 = vpop.xlane.xlu0 %874
      %v876 = vsel %vm434, %v856, 0.0
      %877 = vadd.xlane.f32.xlu0 %v876
      %v878 = vpop.xlane.xlu0 %877
      %v879 = vsel %vm434, %v858, 0.0
      %880 = vadd.xlane.f32.xlu0 %v879
      %v881 = vpop.xlane.xlu0 %880
      %v882 = vsel %vm434, %v860, 0.0
      %883 = vadd.xlane.f32.xlu0 %v882
      %v884 = vpop.xlane.xlu0 %883
      %v885 = vrcp.pop %v863
      %v886 = vrcp.pop %v866
      %v887 = vrcp.pop %v869
      %v888 = vrcp.pop %v872
      %v889 = vrcp.pop %v875
      %v890 = vrcp.pop %v878
      %v891 = vrcp.pop %v881
      %v892 = vrcp.pop %v884
      %v893 = vpack.c.bf16 %v848, %v846
      %v894 = vpack.c.bf16 %v852, %v850
      %v895 = vpack.c.bf16 %v856, %v854
      %v896 = vpack.c.bf16 %v860, %v858
      %v905 = vunpack.c.l.b16 %v660
      %v906 = vunpack.c.l.b16 %v661
      %v907 = vunpack.c.l.b16 %v662
      %v908 = vunpack.c.l.b16 %v663
      %v909 = vunpack.c.l.b16 %v664
      %v910 = vunpack.c.l.b16 %v665
      %v911 = vunpack.c.l.b16 %v666
      %v912 = vunpack.c.l.b16 %v667
      %v913 = vpack.c.b16 %v906, %v905
      %v914 = vpack.c.b16 %v908, %v907
      %v915 = vpack.c.b16 %v910, %v909
      %v916 = vpack.c.b16 %v912, %v911
      %917 = vrot.lane.b32.xlu0 %v913, 120
      %v918 = vpop.permute.xlu0 %917
      %919 = vrot.lane.b32.xlu0 %v914, 120
      %v920 = vpop.permute.xlu0 %919
      %921 = vrot.lane.b32.xlu0 %v915, 120
      %v922 = vpop.permute.xlu0 %921
      %923 = vrot.lane.b32.xlu0 %v916, 120
      %v924 = vpop.permute.xlu0 %923
      %v930 = vsel %vm434, %v893, 0
      %v933 = vsel %vm434, %v894, 0
      %v936 = vsel %vm434, %v895, 0
      %v939 = vsel %vm434, %v896, 0
      %941 = vmatprep.subr.bf16.mxu0 0
      %942 = vmatpush1.bf16.msra.mxu0 %v918
      %943 = vmatprep.subr.bf16.mxu0 0
      %944 = vmatpush1.bf16.msra.mxu0 %v920
      %945 = vmatprep.subr.bf16.mxu0 0
      %946 = vmatpush1.bf16.msra.mxu0 %v922
      %947 = vmatprep.subr.bf16.mxu0 0
      %948 = vmatpush1.bf16.msra.mxu0 %v924
      %949 = vmatprep.subr.bf16.mxu0 0
      %950 = vmatpush1.bf16.msra.mxu0 0
      %951 = vmatprep.subr.bf16.mxu0 0
      %952 = vmatpush1.bf16.msra.mxu0 0
      %953 = vmatprep.subr.bf16.mxu0 0
      %954 = vmatpush1.bf16.msra.mxu0 0
      %955 = vmatprep.subr.bf16.mxu0 0
      %956 = vmatpush1.bf16.msra.mxu0 0
      %957 = vmatprep.subr.bf16.mxu0 0
      %958 = vmatpush1.bf16.msra.mxu0 0
      %959 = vmatprep.subr.bf16.mxu0 0
      %960 = vmatpush1.bf16.msra.mxu0 0
      %961 = vmatprep.subr.bf16.mxu0 0
      %962 = vmatpush1.bf16.msra.mxu0 0
      %963 = vmatprep.subr.bf16.mxu0 0
      %964 = vmatpush1.bf16.msra.mxu0 0
      %965 = vmatprep.subr.bf16.mxu0 0
      %966 = vmatpush1.bf16.msra.mxu0 0
      %967 = vmatprep.subr.bf16.mxu0 0
      %968 = vmatpush1.bf16.msra.mxu0 0
      %969 = vmatprep.subr.bf16.mxu0 0
      %970 = vmatpush1.bf16.msra.mxu0 0
      %971 = vmatprep.subr.bf16.mxu0 0
      %972 = vmatpush1.bf16.msra.mxu0 0
      %973 = vmatprep.mubr.bf16.mxu0 0
      %974 = vmatmul.mubr.bf16.gmra.mrb[0].mxu0 %v930
      %v975 = vpop.f32.mrb[0].mxu0
      %v976 = vadd.f32 0.0, %v975
      %v977 = vpop.f32.mrb[0].mxu0
      %v978 = vpop.f32.mrb[0].mxu0
      %v979 = vadd.f32 0.0, %v978
      %v980 = vpop.f32.mrb[0].mxu0
      %981 = vmatprep.mubr.bf16.mxu0 0
      %982 = vmatmul.mubr.bf16.gmra.mrb[0].mxu0 %v933
      %v983 = vpop.f32.mrb[0].mxu0
      %v984 = vadd.f32 0.0, %v983
      %v985 = vpop.f32.mrb[0].mxu0
      %v986 = vpop.f32.mrb[0].mxu0
      %v987 = vadd.f32 0.0, %v986
      %v988 = vpop.f32.mrb[0].mxu0
      %989 = vmatprep.mubr.bf16.mxu0 0
      %990 = vmatmul.mubr.bf16.gmra.mrb[0].mxu0 %v936
      %v991 = vpop.f32.mrb[0].mxu0
      %v992 = vadd.f32 0.0, %v991
      %v993 = vpop.f32.mrb[0].mxu0
      %v994 = vpop.f32.mrb[0].mxu0
      %v995 = vadd.f32 0.0, %v994
      %v996 = vpop.f32.mrb[0].mxu0
      %997 = vmatprep.mubr.bf16.mxu0 0
      %998 = vmatmul.mubr.bf16.gmra.mrb[0].mxu0 %v939
      %v999 = vpop.f32.mrb[0].mxu0
      %v1000 = vadd.f32 0.0, %v999
      %v1001 = vpop.f32.mrb[0].mxu0
      %v1002 = vpop.f32.mrb[0].mxu0
      %v1003 = vadd.f32 0.0, %v1002
      %v1004 = vpop.f32.mrb[0].mxu0
      %1005 = vdwg.mxu0
      %v1006 = vmul.f32 %v976, %v885
      %v1007 = vmul.f32 %v979, %v886
      %v1008 = vmul.f32 %v984, %v887
      %v1009 = vmul.f32 %v987, %v888
      %v1010 = vmul.f32 %v992, %v889
      %v1011 = vmul.f32 %v995, %v890
      %v1012 = vmul.f32 %v1000, %v891
      %v1013 = vmul.f32 %v1003, %v892
      %1022 = vrot.lane.b32.xlu0 %v1006, 8
      %v1023 = vpop.permute.xlu0 %1022
      %1024 = vrot.lane.b32.xlu0 %v1007, 8
      %v1025 = vpop.permute.xlu0 %1024
      %1026 = vrot.lane.b32.xlu0 %v1008, 8
      %v1027 = vpop.permute.xlu0 %1026
      %1028 = vrot.lane.b32.xlu0 %v1009, 8
      %v1029 = vpop.permute.xlu0 %1028
      %1030 = vrot.lane.b32.xlu0 %v1010, 8
      %v1031 = vpop.permute.xlu0 %1030
      %1032 = vrot.lane.b32.xlu0 %v1011, 8
      %v1033 = vpop.permute.xlu0 %1032
      %1034 = vrot.lane.b32.xlu0 %v1012, 8
      %v1035 = vpop.permute.xlu0 %1034
      %1036 = vrot.lane.b32.xlu0 %v1013, 8
      %v1037 = vpop.permute.xlu0 %1036
      %vm1046 = vcmask 130112
      %1047 = vst.msk [vmem:[#allocation2] sm:$0xff] %vm1046, %v1023
      %1048 = vst.msk [vmem:[#allocation2 + $0x8] sm:$0xff] %vm1046, %v1025
      %1049 = vst.msk [vmem:[#allocation2 + $0x10] sm:$0xff] %vm1046, %v1027
      %1050 = vst.msk [vmem:[#allocation2 + $0x18] sm:$0xff] %vm1046, %v1029
      %1051 = vst.msk [vmem:[#allocation2 + $0x20] sm:$0xff] %vm1046, %v1031
      %1052 = vst.msk [vmem:[#allocation2 + $0x28] sm:$0xff] %vm1046, %v1033
      %1053 = vst.msk [vmem:[#allocation2 + $0x30] sm:$0xff] %vm1046, %v1035
      %1054 = vst.msk [vmem:[#allocation2 + $0x38] sm:$0xff] %vm1046, %v1037
      %v1055 = vld [vmem:[%s243] sm:$0xf]
      %v1056 = vld [vmem:[%s243 + $0x4] sm:$0xf]
      %v1057 = vld [vmem:[%s243 + $0x8] sm:$0xf]
      %v1058 = vld [vmem:[%s243 + $0xc] sm:$0xf]
      %v1059 = vld [vmem:[%s243 + $0x10] sm:$0xf]
      %v1060 = vld [vmem:[%s243 + $0x14] sm:$0xf]
      %v1061 = vld [vmem:[%s243 + $0x18] sm:$0xf]
      %v1062 = vld [vmem:[%s243 + $0x1c] sm:$0xf]
      %v1063 = vmul.bf16 %v1055, 1052065461
      %v1064 = vmul.bf16 %v1056, 1052065461
      %v1065 = vmul.bf16 %v1057, 1052065461
      %v1066 = vmul.bf16 %v1058, 1052065461
      %v1067 = vmul.bf16 %v1059, 1052065461
      %v1068 = vmul.bf16 %v1060, 1052065461
      %v1069 = vmul.bf16 %v1061, 1052065461
      %v1070 = vmul.bf16 %v1062, 1052065461
      %v1071 = vld [vmem:[%s252] sm:$0xf]
      %v1072 = vld [vmem:[%s252 + $0x4] sm:$0xf]
      %v1073 = vld [vmem:[%s252 + $0x8] sm:$0xf]
      %v1074 = vld [vmem:[%s252 + $0xc] sm:$0xf]
      %v1075 = vld [vmem:[%s252 + $0x10] sm:$0xf]
      %v1076 = vld [vmem:[%s252 + $0x14] sm:$0xf]
      %v1077 = vld [vmem:[%s252 + $0x18] sm:$0xf]
      %v1078 = vld [vmem:[%s252 + $0x1c] sm:$0xf]
      %v1079 = vld [vmem:[%s261] sm:$0xf]
      %v1080 = vld [vmem:[%s261 + $0x4] sm:$0xf]
      %v1081 = vld [vmem:[%s261 + $0x8] sm:$0xf]
      %v1082 = vld [vmem:[%s261 + $0xc] sm:$0xf]
      %v1083 = vld [vmem:[%s261 + $0x10] sm:$0xf]
      %v1084 = vld [vmem:[%s261 + $0x14] sm:$0xf]
      %v1085 = vld [vmem:[%s261 + $0x18] sm:$0xf]
      %v1086 = vld [vmem:[%s261 + $0x1c] sm:$0xf]
      %v1095 = vunpack.c.l.b16 %v1063
      %v1096 = vunpack.c.l.b16 %v1064
      %v1097 = vunpack.c.l.b16 %v1065
      %v1098 = vunpack.c.l.b16 %v1066
      %v1099 = vunpack.c.l.b16 %v1067
      %v1100 = vunpack.c.l.b16 %v1068
      %v1101 = vunpack.c.l.b16 %v1069
      %v1102 = vunpack.c.l.b16 %v1070
      %v1103 = vpack.c.b16 %v1096, %v1095
      %v1104 = vpack.c.b16 %v1098, %v1097
      %v1105 = vpack.c.b16 %v1100, %v1099
      %v1106 = vpack.c.b16 %v1102, %v1101
      %1107 = vrot.lane.b32.xlu0 %v1103, 112
      %v1108 = vpop.permute.xlu0 %1107
      %1109 = vrot.lane.b32.xlu0 %v1104, 112
      %v1110 = vpop.permute.xlu0 %1109
      %1111 = vrot.lane.b32.xlu0 %v1105, 112
      %v1112 = vpop.permute.xlu0 %1111
      %1113 = vrot.lane.b32.xlu0 %v1106, 112
      %v1114 = vpop.permute.xlu0 %1113
      %v1123 = vunpack.c.l.b16 %v1071
      %v1124 = vunpack.c.l.b16 %v1072
      %v1125 = vunpack.c.l.b16 %v1073
      %v1126 = vunpack.c.l.b16 %v1074
      %v1127 = vunpack.c.l.b16 %v1075
      %v1128 = vunpack.c.l.b16 %v1076
      %v1129 = vunpack.c.l.b16 %v1077
      %v1130 = vunpack.c.l.b16 %v1078
      %v1131 = vpack.c.b16 %v1124, %v1123
      %v1132 = vpack.c.b16 %v1126, %v1125
      %v1133 = vpack.c.b16 %v1128, %v1127
      %v1134 = vpack.c.b16 %v1130, %v1129
      %1135 = vrot.lane.b32.xlu0 %v1131, 112
      %v1136 = vpop.permute.xlu0 %1135
      %1137 = vrot.lane.b32.xlu0 %v1132, 112
      %v1138 = vpop.permute.xlu0 %1137
      %1139 = vrot.lane.b32.xlu0 %v1133, 112
      %v1140 = vpop.permute.xlu0 %1139
      %1141 = vrot.lane.b32.xlu0 %v1134, 112
      %v1142 = vpop.permute.xlu0 %1141
      %v1144 = vsel %vm344, %v1108, 0
      %v1147 = vsel %vm344, %v1110, 0
      %v1150 = vsel %vm344, %v1112, 0
      %v1153 = vsel %vm344, %v1114, 0
      %v1156 = vsel %vm344, %v1136, 0
      %v1159 = vsel %vm344, %v1138, 0
      %v1162 = vsel %vm344, %v1140, 0
      %v1165 = vsel %vm344, %v1142, 0
      %1167 = vmatprep.subr.bf16.mxu0 0
      %1168 = vmatpush1.bf16.xpose.msra.mxu0 %v1156
      %1169 = vmatprep.subr.bf16.mxu0 0
      %1170 = vmatpush1.bf16.xpose.msra.mxu0 %v1159
      %1171 = vmatprep.subr.bf16.mxu0 0
      %1172 = vmatpush1.bf16.xpose.msra.mxu0 %v1162
      %1173 = vmatprep.subr.bf16.mxu0 0
      %1174 = vmatpush1.bf16.xpose.msra.mxu0 %v1165
      %1175 = vmatprep.subr.bf16.mxu0 0
      %1176 = vmatpush1.bf16.xpose.msra.mxu0 0
      %1177 = vmatprep.subr.bf16.mxu0 0
      %1178 = vmatpush1.bf16.xpose.msra.mxu0 0
      %1179 = vmatprep.subr.bf16.mxu0 0
      %1180 = vmatpush1.bf16.xpose.msra.mxu0 0
      %1181 = vmatprep.subr.bf16.mxu0 0
      %1182 = vmatpush1.bf16.xpose.msra.mxu0 0
      %1183 = vmatprep.subr.bf16.mxu0 0
      %1184 = vmatpush1.bf16.xpose.msra.mxu0 0
      %1185 = vmatprep.subr.bf16.mxu0 0
      %1186 = vmatpush1.bf16.xpose.msra.mxu0 0
      %1187 = vmatprep.subr.bf16.mxu0 0
      %1188 = vmatpush1.bf16.xpose.msra.mxu0 0
      %1189 = vmatprep.subr.bf16.mxu0 0
      %1190 = vmatpush1.bf16.xpose.msra.mxu0 0
      %1191 = vmatprep.subr.bf16.mxu0 0
      %1192 = vmatpush1.bf16.xpose.msra.mxu0 0
      %1193 = vmatprep.subr.bf16.mxu0 0
      %1194 = vmatpush1.bf16.xpose.msra.mxu0 0
      %1195 = vmatprep.subr.bf16.mxu0 0
      %1196 = vmatpush1.bf16.xpose.msra.mxu0 0
      %1197 = vmatprep.subr.bf16.mxu0 0
      %1198 = vmatpush1.bf16.xpose.msra.mxu0 0
      %1199 = vmatprep.mubr.bf16.mxu0 0
      %1200 = vmatmul.mubr.bf16.gmra.mrb[0].mxu0 %v1144
      %v1201 = vpop.f32.mrb[0].mxu0
      %v1202 = vadd.f32 0.0, %v1201
      %v1203 = vpop.f32.mrb[0].mxu0
      %v1204 = vpop.f32.mrb[0].mxu0
      %v1205 = vadd.f32 0.0, %v1204
      %v1206 = vpop.f32.mrb[0].mxu0
      %1207 = vmatprep.mubr.bf16.mxu0 0
      %1208 = vmatmul.mubr.bf16.gmra.mrb[0].mxu0 %v1147
      %v1209 = vpop.f32.mrb[0].mxu0
      %v1210 = vadd.f32 0.0, %v1209
      %v1211 = vpop.f32.mrb[0].mxu0
      %v1212 = vpop.f32.mrb[0].mxu0
      %v1213 = vadd.f32 0.0, %v1212
      %v1214 = vpop.f32.mrb[0].mxu0
      %1215 = vmatprep.mubr.bf16.mxu0 0
      %1216 = vmatmul.mubr.bf16.gmra.mrb[0].mxu0 %v1150
      %v1217 = vpop.f32.mrb[0].mxu0
      %v1218 = vadd.f32 0.0, %v1217
      %v1219 = vpop.f32.mrb[0].mxu0
      %v1220 = vpop.f32.mrb[0].mxu0
      %v1221 = vadd.f32 0.0, %v1220
      %v1222 = vpop.f32.mrb[0].mxu0
      %1223 = vmatprep.mubr.bf16.mxu0 0
      %1224 = vmatmul.mubr.bf16.gmra.mrb[0].mxu0 %v1153
      %v1225 = vpop.f32.mrb[0].mxu0
      %v1226 = vadd.f32 0.0, %v1225
      %v1227 = vpop.f32.mrb[0].mxu0
      %v1228 = vpop.f32.mrb[0].mxu0
      %v1229 = vadd.f32 0.0, %v1228
      %v1230 = vpop.f32.mrb[0].mxu0
      %1231 = vdwg.mxu0
      %v1232 = vsel %vm434, %v1202, -inf
      %1233 = vmax.xlane.f32.xlu0 %v1232
      %v1234 = vpop.xlane.xlu0 %1233
      %v1235 = vsel %vm434, %v1205, -inf
      %1236 = vmax.xlane.f32.xlu0 %v1235
      %v1237 = vpop.xlane.xlu0 %1236
      %v1238 = vsel %vm434, %v1210, -inf
      %1239 = vmax.xlane.f32.xlu0 %v1238
      %v1240 = vpop.xlane.xlu0 %1239
      %v1241 = vsel %vm434, %v1213, -inf
      %1242 = vmax.xlane.f32.xlu0 %v1241
      %v1243 = vpop.xlane.xlu0 %1242
      %v1244 = vsel %vm434, %v1218, -inf
      %1245 = vmax.xlane.f32.xlu0 %v1244
      %v1246 = vpop.xlane.xlu0 %1245
      %v1247 = vsel %vm434, %v1221, -inf
      %1248 = vmax.xlane.f32.xlu0 %v1247
      %v1249 = vpop.xlane.xlu0 %1248
      %v1250 = vsel %vm434, %v1226, -inf
      %1251 = vmax.xlane.f32.xlu0 %v1250
      %v1252 = vpop.xlane.xlu0 %1251
      %v1253 = vsel %vm434, %v1229, -inf
      %1254 = vmax.xlane.f32.xlu0 %v1253
      %v1255 = vpop.xlane.xlu0 %1254
      %v1256 = vsub.f32 %v1202, %v1234
      %v1257 = vsub.f32 %v1205, %v1237
      %v1258 = vsub.f32 %v1210, %v1240
      %v1259 = vsub.f32 %v1213, %v1243
      %v1260 = vsub.f32 %v1218, %v1246
      %v1261 = vsub.f32 %v1221, %v1249
      %v1262 = vsub.f32 %v1226, %v1252
      %v1263 = vsub.f32 %v1229, %v1255
      %v1264 = vmul.f32 %v1256, 1.442695
      %v1265 = vpow.pop %v1264
      %v1266 = vmul.f32 %v1257, 1.442695
      %v1267 = vpow.pop %v1266
      %v1268 = vmul.f32 %v1258, 1.442695
      %v1269 = vpow.pop %v1268
      %v1270 = vmul.f32 %v1259, 1.442695
      %v1271 = vpow.pop %v1270
      %v1272 = vmul.f32 %v1260, 1.442695
      %v1273 = vpow.pop %v1272
      %v1274 = vmul.f32 %v1261, 1.442695
      %v1275 = vpow.pop %v1274
      %v1276 = vmul.f32 %v1262, 1.442695
      %v1277 = vpow.pop %v1276
      %v1278 = vmul.f32 %v1263, 1.442695
      %v1279 = vpow.pop %v1278
      %v1280 = vsel %vm434, %v1265, 0.0
      %1281 = vadd.xlane.f32.xlu0 %v1280
      %v1282 = vpop.xlane.xlu0 %1281
      %v1283 = vsel %vm434, %v1267, 0.0
      %1284 = vadd.xlane.f32.xlu0 %v1283
      %v1285 = vpop.xlane.xlu0 %1284
      %v1286 = vsel %vm434, %v1269, 0.0
      %1287 = vadd.xlane.f32.xlu0 %v1286
      %v1288 = vpop.xlane.xlu0 %1287
      %v1289 = vsel %vm434, %v1271, 0.0
      %1290 = vadd.xlane.f32.xlu0 %v1289
      %v1291 = vpop.xlane.xlu0 %1290
      %v1292 = vsel %vm434, %v1273, 0.0
      %1293 = vadd.xlane.f32.xlu0 %v1292
      %v1294 = vpop.xlane.xlu0 %1293
      %v1295 = vsel %vm434, %v1275, 0.0
      %1296 = vadd.xlane.f32.xlu0 %v1295
      %v1297 = vpop.xlane.xlu0 %1296
      %v1298 = vsel %vm434, %v1277, 0.0
      %1299 = vadd.xlane.f32.xlu0 %v1298
      %v1300 = vpop.xlane.xlu0 %1299
      %v1301 = vsel %vm434, %v1279, 0.0
      %1302 = vadd.xlane.f32.xlu0 %v1301
      %v1303 = vpop.xlane.xlu0 %1302
      %v1304 = vrcp.pop %v1282
      %v1305 = vrcp.pop %v1285
      %v1306 = vrcp.pop %v1288
      %v1307 = vrcp.pop %v1291
      %v1308 = vrcp.pop %v1294
      %v1309 = vrcp.pop %v1297
      %v1310 = vrcp.pop %v1300
      %v1311 = vrcp.pop %v1303
      %v1312 = vpack.c.bf16 %v1267, %v1265
      %v1313 = vpack.c.bf16 %v1271, %v1269
      %v1314 = vpack.c.bf16 %v1275, %v1273
      %v1315 = vpack.c.bf16 %v1279, %v1277
      %v1324 = vunpack.c.l.b16 %v1079
      %v1325 = vunpack.c.l.b16 %v1080
      %v1326 = vunpack.c.l.b16 %v1081
      %v1327 = vunpack.c.l.b16 %v1082
      %v1328 = vunpack.c.l.b16 %v1083
      %v1329 = vunpack.c.l.b16 %v1084
      %v1330 = vunpack.c.l.b16 %v1085
      %v1331 = vunpack.c.l.b16 %v1086
      %v1332 = vpack.c.b16 %v1325, %v1324
      %v1333 = vpack.c.b16 %v1327, %v1326
      %v1334 = vpack.c.b16 %v1329, %v1328
      %v1335 = vpack.c.b16 %v1331, %v1330
      %1336 = vrot.lane.b32.xlu0 %v1332, 112
      %v1337 = vpop.permute.xlu0 %1336
      %1338 = vrot.lane.b32.xlu0 %v1333, 112
      %v1339 = vpop.permute.xlu0 %1338
      %1340 = vrot.lane.b32.xlu0 %v1334, 112
      %v1341 = vpop.permute.xlu0 %1340
      %1342 = vrot.lane.b32.xlu0 %v1335, 112
      %v1343 = vpop.permute.xlu0 %1342
      %v1349 = vsel %vm434, %v1312, 0
      %v1352 = vsel %vm434, %v1313, 0
      %v1355 = vsel %vm434, %v1314, 0
      %v1358 = vsel %vm434, %v1315, 0
      %1360 = vmatprep.subr.bf16.mxu0 0
      %1361 = vmatpush1.bf16.msra.mxu0 %v1337
      %1362 = vmatprep.subr.bf16.mxu0 0
      %1363 = vmatpush1.bf16.msra.mxu0 %v1339
      %1364 = vmatprep.subr.bf16.mxu0 0
      %1365 = vmatpush1.bf16.msra.mxu0 %v1341
      %1366 = vmatprep.subr.bf16.mxu0 0
      %1367 = vmatpush1.bf16.msra.mxu0 %v1343
      %1368 = vmatprep.subr.bf16.mxu0 0
      %1369 = vmatpush1.bf16.msra.mxu0 0
      %1370 = vmatprep.subr.bf16.mxu0 0
      %1371 = vmatpush1.bf16.msra.mxu0 0
      %1372 = vmatprep.subr.bf16.mxu0 0
      %1373 = vmatpush1.bf16.msra.mxu0 0
      %1374 = vmatprep.subr.bf16.mxu0 0
      %1375 = vmatpush1.bf16.msra.mxu0 0
      %1376 = vmatprep.subr.bf16.mxu0 0
      %1377 = vmatpush1.bf16.msra.mxu0 0
      %1378 = vmatprep.subr.bf16.mxu0 0
      %1379 = vmatpush1.bf16.msra.mxu0 0
      %1380 = vmatprep.subr.bf16.mxu0 0
      %1381 = vmatpush1.bf16.msra.mxu0 0
      %1382 = vmatprep.subr.bf16.mxu0 0
      %1383 = vmatpush1.bf16.msra.mxu0 0
      %1384 = vmatprep.subr.bf16.mxu0 0
      %1385 = vmatpush1.bf16.msra.mxu0 0
      %1386 = vmatprep.subr.bf16.mxu0 0
      %1387 = vmatpush1.bf16.msra.mxu0 0
      %1388 = vmatprep.subr.bf16.mxu0 0
      %1389 = vmatpush1.bf16.msra.mxu0 0
      %1390 = vmatprep.subr.bf16.mxu0 0
      %1391 = vmatpush1.bf16.msra.mxu0 0
      %1392 = vmatprep.mubr.bf16.mxu0 0
      %1393 = vmatmul.mubr.bf16.gmra.mrb[0].mxu0 %v1349
      %v1394 = vpop.f32.mrb[0].mxu0
      %v1395 = vadd.f32 0.0, %v1394
      %v1396 = vpop.f32.mrb[0].mxu0
      %v1397 = vpop.f32.mrb[0].mxu0
      %v1398 = vadd.f32 0.0, %v1397
      %v1399 = vpop.f32.mrb[0].mxu0
      %1400 = vmatprep.mubr.bf16.mxu0 0
      %1401 = vmatmul.mubr.bf16.gmra.mrb[0].mxu0 %v1352
      %v1402 = vpop.f32.mrb[0].mxu0
      %v1403 = vadd.f32 0.0, %v1402
      %v1404 = vpop.f32.mrb[0].mxu0
      %v1405 = vpop.f32.mrb[0].mxu0
      %v1406 = vadd.f32 0.0, %v1405
      %v1407 = vpop.f32.mrb[0].mxu0
      %1408 = vmatprep.mubr.bf16.mxu0 0
      %1409 = vmatmul.mubr.bf16.gmra.mrb[0].mxu0 %v1355
      %v1410 = vpop.f32.mrb[0].mxu0
      %v1411 = vadd.f32 0.0, %v1410
      %v1412 = vpop.f32.mrb[0].mxu0
      %v1413 = vpop.f32.mrb[0].mxu0
      %v1414 = vadd.f32 0.0, %v1413
      %v1415 = vpop.f32.mrb[0].mxu0
      %1416 = vmatprep.mubr.bf16.mxu0 0
      %1417 = vmatmul.mubr.bf16.gmra.mrb[0].mxu0 %v1358
      %v1418 = vpop.f32.mrb[0].mxu0
      %v1419 = vadd.f32 0.0, %v1418
      %v1420 = vpop.f32.mrb[0].mxu0
      %v1421 = vpop.f32.mrb[0].mxu0
      %v1422 = vadd.f32 0.0, %v1421
      %v1423 = vpop.f32.mrb[0].mxu0
      %1424 = vdwg.mxu0
      %v1425 = vmul.f32 %v1395, %v1304
      %v1426 = vmul.f32 %v1398, %v1305
      %v1427 = vmul.f32 %v1403, %v1306
      %v1428 = vmul.f32 %v1406, %v1307
      %v1429 = vmul.f32 %v1411, %v1308
      %v1430 = vmul.f32 %v1414, %v1309
      %v1431 = vmul.f32 %v1419, %v1310
      %v1432 = vmul.f32 %v1422, %v1311
      %1441 = vrot.lane.b32.xlu0 %v1425, 16
      %v1442 = vpop.permute.xlu0 %1441
      %1443 = vrot.lane.b32.xlu0 %v1426, 16
      %v1444 = vpop.permute.xlu0 %1443
      %1445 = vrot.lane.b32.xlu0 %v1427, 16
      %v1446 = vpop.permute.xlu0 %1445
      %1447 = vrot.lane.b32.xlu0 %v1428, 16
      %v1448 = vpop.permute.xlu0 %1447
      %1449 = vrot.lane.b32.xlu0 %v1429, 16
      %v1450 = vpop.permute.xlu0 %1449
      %1451 = vrot.lane.b32.xlu0 %v1430, 16
      %v1452 = vpop.permute.xlu0 %1451
      %1453 = vrot.lane.b32.xlu0 %v1431, 16
      %v1454 = vpop.permute.xlu0 %1453
      %1455 = vrot.lane.b32.xlu0 %v1432, 16
      %v1456 = vpop.permute.xlu0 %1455
      %vm1465 = vcmask 195712
      %1466 = vst.msk [vmem:[#allocation2] sm:$0xff] %vm1465, %v1442
      %1467 = vst.msk [vmem:[#allocation2 + $0x8] sm:$0xff] %vm1465, %v1444
      %1468 = vst.msk [vmem:[#allocation2 + $0x10] sm:$0xff] %vm1465, %v1446
      %1469 = vst.msk [vmem:[#allocation2 + $0x18] sm:$0xff] %vm1465, %v1448
      %1470 = vst.msk [vmem:[#allocation2 + $0x20] sm:$0xff] %vm1465, %v1450
      %1471 = vst.msk [vmem:[#allocation2 + $0x28] sm:$0xff] %vm1465, %v1452
      %1472 = vst.msk [vmem:[#allocation2 + $0x30] sm:$0xff] %vm1465, %v1454
      %1473 = vst.msk [vmem:[#allocation2 + $0x38] sm:$0xff] %vm1465, %v1456
      %v1474 = vld [vmem:[%s243] sm:$0xf]
      %v1475 = vld [vmem:[%s243 + $0x4] sm:$0xf]
      %v1476 = vld [vmem:[%s243 + $0x8] sm:$0xf]
      %v1477 = vld [vmem:[%s243 + $0xc] sm:$0xf]
      %v1478 = vld [vmem:[%s243 + $0x10] sm:$0xf]
      %v1479 = vld [vmem:[%s243 + $0x14] sm:$0xf]
      %v1480 = vld [vmem:[%s243 + $0x18] sm:$0xf]
      %v1481 = vld [vmem:[%s243 + $0x1c] sm:$0xf]
      %v1482 = vmul.bf16 %v1474, 1052065461
      %v1483 = vmul.bf16 %v1475, 1052065461
      %v1484 = vmul.bf16 %v1476, 1052065461
      %v1485 = vmul.bf16 %v1477, 1052065461
      %v1486 = vmul.bf16 %v1478, 1052065461
      %v1487 = vmul.bf16 %v1479, 1052065461
      %v1488 = vmul.bf16 %v1480, 1052065461
      %v1489 = vmul.bf16 %v1481, 1052065461
      %v1490 = vld [vmem:[%s252] sm:$0xf]
      %v1491 = vld [vmem:[%s252 + $0x4] sm:$0xf]
      %v1492 = vld [vmem:[%s252 + $0x8] sm:$0xf]
      %v1493 = vld [vmem:[%s252 + $0xc] sm:$0xf]
      %v1494 = vld [vmem:[%s252 + $0x10] sm:$0xf]
      %v1495 = vld [vmem:[%s252 + $0x14] sm:$0xf]
      %v1496 = vld [vmem:[%s252 + $0x18] sm:$0xf]
      %v1497 = vld [vmem:[%s252 + $0x1c] sm:$0xf]
      %v1498 = vld [vmem:[%s261] sm:$0xf]
      %v1499 = vld [vmem:[%s261 + $0x4] sm:$0xf]
      %v1500 = vld [vmem:[%s261 + $0x8] sm:$0xf]
      %v1501 = vld [vmem:[%s261 + $0xc] sm:$0xf]
      %v1502 = vld [vmem:[%s261 + $0x10] sm:$0xf]
      %v1503 = vld [vmem:[%s261 + $0x14] sm:$0xf]
      %v1504 = vld [vmem:[%s261 + $0x18] sm:$0xf]
      %v1505 = vld [vmem:[%s261 + $0x1c] sm:$0xf]
      %v1514 = vunpack.c.l.b16 %v1482
      %v1515 = vunpack.c.l.b16 %v1483
      %v1516 = vunpack.c.l.b16 %v1484
      %v1517 = vunpack.c.l.b16 %v1485
      %v1518 = vunpack.c.l.b16 %v1486
      %v1519 = vunpack.c.l.b16 %v1487
      %v1520 = vunpack.c.l.b16 %v1488
      %v1521 = vunpack.c.l.b16 %v1489
      %v1522 = vpack.c.b16 %v1515, %v1514
      %v1523 = vpack.c.b16 %v1517, %v1516
      %v1524 = vpack.c.b16 %v1519, %v1518
      %v1525 = vpack.c.b16 %v1521, %v1520
      %1526 = vrot.lane.b32.xlu0 %v1522, 104
      %v1527 = vpop.permute.xlu0 %1526
      %1528 = vrot.lane.b32.xlu0 %v1523, 104
      %v1529 = vpop.permute.xlu0 %1528
      %1530 = vrot.lane.b32.xlu0 %v1524, 104
      %v1531 = vpop.permute.xlu0 %1530
      %1532 = vrot.lane.b32.xlu0 %v1525, 104
      %v1533 = vpop.permute.xlu0 %1532
      %v1542 = vunpack.c.l.b16 %v1490
      %v1543 = vunpack.c.l.b16 %v1491
      %v1544 = vunpack.c.l.b16 %v1492
      %v1545 = vunpack.c.l.b16 %v1493
      %v1546 = vunpack.c.l.b16 %v1494
      %v1547 = vunpack.c.l.b16 %v1495
      %v1548 = vunpack.c.l.b16 %v1496
      %v1549 = vunpack.c.l.b16 %v1497
      %v1550 = vpack.c.b16 %v1543, %v1542
      %v1551 = vpack.c.b16 %v1545, %v1544
      %v1552 = vpack.c.b16 %v1547, %v1546
      %v1553 = vpack.c.b16 %v1549, %v1548
      %1554 = vrot.lane.b32.xlu0 %v1550, 104
      %v1555 = vpop.permute.xlu0 %1554
      %1556 = vrot.lane.b32.xlu0 %v1551, 104
      %v1557 = vpop.permute.xlu0 %1556
      %1558 = vrot.lane.b32.xlu0 %v1552, 104
      %v1559 = vpop.permute.xlu0 %1558
      %1560 = vrot.lane.b32.xlu0 %v1553, 104
      %v1561 = vpop.permute.xlu0 %1560
      %v1563 = vsel %vm344, %v1527, 0
      %v1566 = vsel %vm344, %v1529, 0
      %v1569 = vsel %vm344, %v1531, 0
      %v1572 = vsel %vm344, %v1533, 0
      %v1575 = vsel %vm344, %v1555, 0
      %v1578 = vsel %vm344, %v1557, 0
      %v1581 = vsel %vm344, %v1559, 0
      %v1584 = vsel %vm344, %v1561, 0
      %1586 = vmatprep.subr.bf16.mxu0 0
      %1587 = vmatpush1.bf16.xpose.msra.mxu0 %v1575
      %1588 = vmatprep.subr.bf16.mxu0 0
      %1589 = vmatpush1.bf16.xpose.msra.mxu0 %v1578
      %1590 = vmatprep.subr.bf16.mxu0 0
      %1591 = vmatpush1.bf16.xpose.msra.mxu0 %v1581
      %1592 = vmatprep.subr.bf16.mxu0 0
      %1593 = vmatpush1.bf16.xpose.msra.mxu0 %v1584
      %1594 = vmatprep.subr.bf16.mxu0 0
      %1595 = vmatpush1.bf16.xpose.msra.mxu0 0
      %1596 = vmatprep.subr.bf16.mxu0 0
      %1597 = vmatpush1.bf16.xpose.msra.mxu0 0
      %1598 = vmatprep.subr.bf16.mxu0 0
      %1599 = vmatpush1.bf16.xpose.msra.mxu0 0
      %1600 = vmatprep.subr.bf16.mxu0 0
      %1601 = vmatpush1.bf16.xpose.msra.mxu0 0
      %1602 = vmatprep.subr.bf16.mxu0 0
      %1603 = vmatpush1.bf16.xpose.msra.mxu0 0
      %1604 = vmatprep.subr.bf16.mxu0 0
      %1605 = vmatpush1.bf16.xpose.msra.mxu0 0
      %1606 = vmatprep.subr.bf16.mxu0 0
      %1607 = vmatpush1.bf16.xpose.msra.mxu0 0
      %1608 = vmatprep.subr.bf16.mxu0 0
      %1609 = vmatpush1.bf16.xpose.msra.mxu0 0
      %1610 = vmatprep.subr.bf16.mxu0 0
      %1611 = vmatpush1.bf16.xpose.msra.mxu0 0
      %1612 = vmatprep.subr.bf16.mxu0 0
      %1613 = vmatpush1.bf16.xpose.msra.mxu0 0
      %1614 = vmatprep.subr.bf16.mxu0 0
      %1615 = vmatpush1.bf16.xpose.msra.mxu0 0
      %1616 = vmatprep.subr.bf16.mxu0 0
      %1617 = vmatpush1.bf16.xpose.msra.mxu0 0
      %1618 = vmatprep.mubr.bf16.mxu0 0
      %1619 = vmatmul.mubr.bf16.gmra.mrb[0].mxu0 %v1563
      %v1620 = vpop.f32.mrb[0].mxu0
      %v1621 = vadd.f32 0.0, %v1620
      %v1622 = vpop.f32.mrb[0].mxu0
      %v1623 = vpop.f32.mrb[0].mxu0
      %v1624 = vadd.f32 0.0, %v1623
      %v1625 = vpop.f32.mrb[0].mxu0
      %1626 = vmatprep.mubr.bf16.mxu0 0
      %1627 = vmatmul.mubr.bf16.gmra.mrb[0].mxu0 %v1566
      %v1628 = vpop.f32.mrb[0].mxu0
      %v1629 = vadd.f32 0.0, %v1628
      %v1630 = vpop.f32.mrb[0].mxu0
      %v1631 = vpop.f32.mrb[0].mxu0
      %v1632 = vadd.f32 0.0, %v1631
      %v1633 = vpop.f32.mrb[0].mxu0
      %1634 = vmatprep.mubr.bf16.mxu0 0
      %1635 = vmatmul.mubr.bf16.gmra.mrb[0].mxu0 %v1569
      %v1636 = vpop.f32.mrb[0].mxu0
      %v1637 = vadd.f32 0.0, %v1636
      %v1638 = vpop.f32.mrb[0].mxu0
      %v1639 = vpop.f32.mrb[0].mxu0
      %v1640 = vadd.f32 0.0, %v1639
      %v1641 = vpop.f32.mrb[0].mxu0
      %1642 = vmatprep.mubr.bf16.mxu0 0
      %1643 = vmatmul.mubr.bf16.gmra.mrb[0].mxu0 %v1572
      %v1644 = vpop.f32.mrb[0].mxu0
      %v1645 = vadd.f32 0.0, %v1644
      %v1646 = vpop.f32.mrb[0].mxu0
      %v1647 = vpop.f32.mrb[0].mxu0
      %v1648 = vadd.f32 0.0, %v1647
      %v1649 = vpop.f32.mrb[0].mxu0
      %1650 = vdwg.mxu0
      %v1651 = vsel %vm434, %v1621, -inf
      %1652 = vmax.xlane.f32.xlu0 %v1651
      %v1653 = vpop.xlane.xlu0 %1652
      %v1654 = vsel %vm434, %v1624, -inf
      %1655 = vmax.xlane.f32.xlu0 %v1654
      %v1656 = vpop.xlane.xlu0 %1655
      %v1657 = vsel %vm434, %v1629, -inf
      %1658 = vmax.xlane.f32.xlu0 %v1657
      %v1659 = vpop.xlane.xlu0 %1658
      %v1660 = vsel %vm434, %v1632, -inf
      %1661 = vmax.xlane.f32.xlu0 %v1660
      %v1662 = vpop.xlane.xlu0 %1661
      %v1663 = vsel %vm434, %v1637, -inf
      %1664 = vmax.xlane.f32.xlu0 %v1663
      %v1665 = vpop.xlane.xlu0 %1664
      %v1666 = vsel %vm434, %v1640, -inf
      %1667 = vmax.xlane.f32.xlu0 %v1666
      %v1668 = vpop.xlane.xlu0 %1667
      %v1669 = vsel %vm434, %v1645, -inf
      %1670 = vmax.xlane.f32.xlu0 %v1669
      %v1671 = vpop.xlane.xlu0 %1670
      %v1672 = vsel %vm434, %v1648, -inf
      %1673 = vmax.xlane.f32.xlu0 %v1672
      %v1674 = vpop.xlane.xlu0 %1673
      %v1675 = vsub.f32 %v1621, %v1653
      %v1676 = vsub.f32 %v1624, %v1656
      %v1677 = vsub.f32 %v1629, %v1659
      %v1678 = vsub.f32 %v1632, %v1662
      %v1679 = vsub.f32 %v1637, %v1665
      %v1680 = vsub.f32 %v1640, %v1668
      %v1681 = vsub.f32 %v1645, %v1671
      %v1682 = vsub.f32 %v1648, %v1674
      %v1683 = vmul.f32 %v1675, 1.442695
      %v1684 = vpow.pop %v1683
      %v1685 = vmul.f32 %v1676, 1.442695
      %v1686 = vpow.pop %v1685
      %v1687 = vmul.f32 %v1677, 1.442695
      %v1688 = vpow.pop %v1687
      %v1689 = vmul.f32 %v1678, 1.442695
      %v1690 = vpow.pop %v1689
      %v1691 = vmul.f32 %v1679, 1.442695
      %v1692 = vpow.pop %v1691
      %v1693 = vmul.f32 %v1680, 1.442695
      %v1694 = vpow.pop %v1693
      %v1695 = vmul.f32 %v1681, 1.442695
      %v1696 = vpow.pop %v1695
      %v1697 = vmul.f32 %v1682, 1.442695
      %v1698 = vpow.pop %v1697
      %v1699 = vsel %vm434, %v1684, 0.0
      %1700 = vadd.xlane.f32.xlu0 %v1699
      %v1701 = vpop.xlane.xlu0 %1700
      %v1702 = vsel %vm434, %v1686, 0.0
      %1703 = vadd.xlane.f32.xlu0 %v1702
      %v1704 = vpop.xlane.xlu0 %1703
      %v1705 = vsel %vm434, %v1688, 0.0
      %1706 = vadd.xlane.f32.xlu0 %v1705
      %v1707 = vpop.xlane.xlu0 %1706
      %v1708 = vsel %vm434, %v1690, 0.0
      %1709 = vadd.xlane.f32.xlu0 %v1708
      %v1710 = vpop.xlane.xlu0 %1709
      %v1711 = vsel %vm434, %v1692, 0.0
      %1712 = vadd.xlane.f32.xlu0 %v1711
      %v1713 = vpop.xlane.xlu0 %1712
      %v1714 = vsel %vm434, %v1694, 0.0
      %1715 = vadd.xlane.f32.xlu0 %v1714
      %v1716 = vpop.xlane.xlu0 %1715
      %v1717 = vsel %vm434, %v1696, 0.0
      %1718 = vadd.xlane.f32.xlu0 %v1717
      %v1719 = vpop.xlane.xlu0 %1718
      %v1720 = vsel %vm434, %v1698, 0.0
      %1721 = vadd.xlane.f32.xlu0 %v1720
      %v1722 = vpop.xlane.xlu0 %1721
      %v1723 = vrcp.pop %v1701
      %v1724 = vrcp.pop %v1704
      %v1725 = vrcp.pop %v1707
      %v1726 = vrcp.pop %v1710
      %v1727 = vrcp.pop %v1713
      %v1728 = vrcp.pop %v1716
      %v1729 = vrcp.pop %v1719
      %v1730 = vrcp.pop %v1722
      %v1731 = vpack.c.bf16 %v1686, %v1684
      %v1732 = vpack.c.bf16 %v1690, %v1688
      %v1733 = vpack.c.bf16 %v1694, %v1692
      %v1734 = vpack.c.bf16 %v1698, %v1696
      %v1743 = vunpack.c.l.b16 %v1498
      %v1744 = vunpack.c.l.b16 %v1499
      %v1745 = vunpack.c.l.b16 %v1500
      %v1746 = vunpack.c.l.b16 %v1501
      %v1747 = vunpack.c.l.b16 %v1502
      %v1748 = vunpack.c.l.b16 %v1503
      %v1749 = vunpack.c.l.b16 %v1504
      %v1750 = vunpack.c.l.b16 %v1505
      %v1751 = vpack.c.b16 %v1744, %v1743
      %v1752 = vpack.c.b16 %v1746, %v1745
      %v1753 = vpack.c.b16 %v1748, %v1747
      %v1754 = vpack.c.b16 %v1750, %v1749
      %1755 = vrot.lane.b32.xlu0 %v1751, 104
      %v1756 = vpop.permute.xlu0 %1755
      %1757 = vrot.lane.b32.xlu0 %v1752, 104
      %v1758 = vpop.permute.xlu0 %1757
      %1759 = vrot.lane.b32.xlu0 %v1753, 104
      %v1760 = vpop.permute.xlu0 %1759
      %1761 = vrot.lane.b32.xlu0 %v1754, 104
      %v1762 = vpop.permute.xlu0 %1761
      %v1768 = vsel %vm434, %v1731, 0
      %v1771 = vsel %vm434, %v1732, 0
      %v1774 = vsel %vm434, %v1733, 0
      %v1777 = vsel %vm434, %v1734, 0
      %1779 = vmatprep.subr.bf16.mxu0 0
      %1780 = vmatpush1.bf16.msra.mxu0 %v1756
      %1781 = vmatprep.subr.bf16.mxu0 0
      %1782 = vmatpush1.bf16.msra.mxu0 %v1758
      %1783 = vmatprep.subr.bf16.mxu0 0
      %1784 = vmatpush1.bf16.msra.mxu0 %v1760
      %1785 = vmatprep.subr.bf16.mxu0 0
      %1786 = vmatpush1.bf16.msra.mxu0 %v1762
      %1787 = vmatprep.subr.bf16.mxu0 0
      %1788 = vmatpush1.bf16.msra.mxu0 0
      %1789 = vmatprep.subr.bf16.mxu0 0
      %1790 = vmatpush1.bf16.msra.mxu0 0
      %1791 = vmatprep.subr.bf16.mxu0 0
      %1792 = vmatpush1.bf16.msra.mxu0 0
      %1793 = vmatprep.subr.bf16.mxu0 0
      %1794 = vmatpush1.bf16.msra.mxu0 0
      %1795 = vmatprep.subr.bf16.mxu0 0
      %1796 = vmatpush1.bf16.msra.mxu0 0
      %1797 = vmatprep.subr.bf16.mxu0 0
      %1798 = vmatpush1.bf16.msra.mxu0 0
      %1799 = vmatprep.subr.bf16.mxu0 0
      %1800 = vmatpush1.bf16.msra.mxu0 0
      %1801 = vmatprep.subr.bf16.mxu0 0
      %1802 = vmatpush1.bf16.msra.mxu0 0
      %1803 = vmatprep.subr.bf16.mxu0 0
      %1804 = vmatpush1.bf16.msra.mxu0 0
      %1805 = vmatprep.subr.bf16.mxu0 0
      %1806 = vmatpush1.bf16.msra.mxu0 0
      %1807 = vmatprep.subr.bf16.mxu0 0
      %1808 = vmatpush1.bf16.msra.mxu0 0
      %1809 = vmatprep.subr.bf16.mxu0 0
      %1810 = vmatpush1.bf16.msra.mxu0 0
      %1811 = vmatprep.mubr.bf16.mxu0 0
      %1812 = vmatmul.mubr.bf16.gmra.mrb[0].mxu0 %v1768
      %v1813 = vpop.f32.mrb[0].mxu0
      %v1814 = vadd.f32 0.0, %v1813
      %v1815 = vpop.f32.mrb[0].mxu0
      %v1816 = vpop.f32.mrb[0].mxu0
      %v1817 = vadd.f32 0.0, %v1816
      %v1818 = vpop.f32.mrb[0].mxu0
      %1819 = vmatprep.mubr.bf16.mxu0 0
      %1820 = vmatmul.mubr.bf16.gmra.mrb[0].mxu0 %v1771
      %v1821 = vpop.f32.mrb[0].mxu0
      %v1822 = vadd.f32 0.0, %v1821
      %v1823 = vpop.f32.mrb[0].mxu0
      %v1824 = vpop.f32.mrb[0].mxu0
      %v1825 = vadd.f32 0.0, %v1824
      %v1826 = vpop.f32.mrb[0].mxu0
      %1827 = vmatprep.mubr.bf16.mxu0 0
      %1828 = vmatmul.mubr.bf16.gmra.mrb[0].mxu0 %v1774
      %v1829 = vpop.f32.mrb[0].mxu0
      %v1830 = vadd.f32 0.0, %v1829
      %v1831 = vpop.f32.mrb[0].mxu0
      %v1832 = vpop.f32.mrb[0].mxu0
      %v1833 = vadd.f32 0.0, %v1832
      %v1834 = vpop.f32.mrb[0].mxu0
      %1835 = vmatprep.mubr.bf16.mxu0 0
      %1836 = vmatmul.mubr.bf16.gmra.mrb[0].mxu0 %v1777
      %v1837 = vpop.f32.mrb[0].mxu0
      %v1838 = vadd.f32 0.0, %v1837
      %v1839 = vpop.f32.mrb[0].mxu0
      %v1840 = vpop.f32.mrb[0].mxu0
      %v1841 = vadd.f32 0.0, %v1840
      %v1842 = vpop.f32.mrb[0].mxu0
      %1843 = vdwg.mxu0
      %v1844 = vmul.f32 %v1814, %v1723
      %v1845 = vmul.f32 %v1817, %v1724
      %v1846 = vmul.f32 %v1822, %v1725
      %v1847 = vmul.f32 %v1825, %v1726
      %v1848 = vmul.f32 %v1830, %v1727
      %v1849 = vmul.f32 %v1833, %v1728
      %v1850 = vmul.f32 %v1838, %v1729
      %v1851 = vmul.f32 %v1841, %v1730
      %1860 = vrot.lane.b32.xlu0 %v1844, 24
      %v1861 = vpop.permute.xlu0 %1860
      %1862 = vrot.lane.b32.xlu0 %v1845, 24
      %v1863 = vpop.permute.xlu0 %1862
      %1864 = vrot.lane.b32.xlu0 %v1846, 24
      %v1865 = vpop.permute.xlu0 %1864
      %1866 = vrot.lane.b32.xlu0 %v1847, 24
      %v1867 = vpop.permute.xlu0 %1866
      %1868 = vrot.lane.b32.xlu0 %v1848, 24
      %v1869 = vpop.permute.xlu0 %1868
      %1870 = vrot.lane.b32.xlu0 %v1849, 24
      %v1871 = vpop.permute.xlu0 %1870
      %1872 = vrot.lane.b32.xlu0 %v1850, 24
      %v1873 = vpop.permute.xlu0 %1872
      %1874 = vrot.lane.b32.xlu0 %v1851, 24
      %v1875 = vpop.permute.xlu0 %1874
      %vm1884 = vcmask 261312
      %1885 = vst.msk [vmem:[#allocation2] sm:$0xff] %vm1884, %v1861
      %1886 = vst.msk [vmem:[#allocation2 + $0x8] sm:$0xff] %vm1884, %v1863
      %1887 = vst.msk [vmem:[#allocation2 + $0x10] sm:$0xff] %vm1884, %v1865
      %1888 = vst.msk [vmem:[#allocation2 + $0x18] sm:$0xff] %vm1884, %v1867
      %1889 = vst.msk [vmem:[#allocation2 + $0x20] sm:$0xff] %vm1884, %v1869
      %1890 = vst.msk [vmem:[#allocation2 + $0x28] sm:$0xff] %vm1884, %v1871
      %1891 = vst.msk [vmem:[#allocation2 + $0x30] sm:$0xff] %vm1884, %v1873
      %1892 = vst.msk [vmem:[#allocation2 + $0x38] sm:$0xff] %vm1884, %v1875
      %v1893 = vld [vmem:[#allocation2] sm:$0xff]
      %v1894 = vld [vmem:[#allocation2 + $0x8] sm:$0xff]
      %v1895 = vld [vmem:[#allocation2 + $0x10] sm:$0xff]
      %v1896 = vld [vmem:[#allocation2 + $0x18] sm:$0xff]
      %v1897 = vld [vmem:[#allocation2 + $0x20] sm:$0xff]
      %v1898 = vld [vmem:[#allocation2 + $0x28] sm:$0xff]
      %v1899 = vld [vmem:[#allocation2 + $0x30] sm:$0xff]
      %v1900 = vld [vmem:[#allocation2 + $0x38] sm:$0xff]
      %v1901 = vpack.c.bf16 %v1894, %v1893
      %v1902 = vpack.c.bf16 %v1896, %v1895
      %v1903 = vpack.c.bf16 %v1898, %v1897
      %v1904 = vpack.c.bf16 %v1900, %v1899
      %v1909 = vunpack.c.l.b16 %v1901
      %v1910 = vunpack.c.h.b16 %v1901
      %v1911 = vunpack.c.l.b16 %v1902
      %v1912 = vunpack.c.h.b16 %v1902
      %v1913 = vunpack.c.l.b16 %v1903
      %v1914 = vunpack.c.h.b16 %v1903
      %v1915 = vunpack.c.l.b16 %v1904
      %v1916 = vunpack.c.h.b16 %v1904
      %v1917 = vpack.c.b16 %v1909, %v1909
      %v1918 = vpack.c.b16 %v1910, %v1910
      %v1919 = vpack.c.b16 %v1911, %v1911
      %v1920 = vpack.c.b16 %v1912, %v1912
      %v1921 = vpack.c.b16 %v1913, %v1913
      %v1922 = vpack.c.b16 %v1914, %v1914
      %v1923 = vpack.c.b16 %v1915, %v1915
      %v1924 = vpack.c.b16 %v1916, %v1916
      %vm1933 = vcmask 257024
      %1934 = vst.msk [vmem:[%s269] sm:$0xf] %vm1933, %v1917
      %1935 = vst.msk [vmem:[%s269 + $0x4] sm:$0xf] %vm1933, %v1918
      %1936 = vst.msk [vmem:[%s269 + $0x8] sm:$0xf] %vm1933, %v1919
      %1937 = vst.msk [vmem:[%s269 + $0xc] sm:$0xf] %vm1933, %v1920
      %1938 = vst.msk [vmem:[%s269 + $0x10] sm:$0xf] %vm1933, %v1921
      %1939 = vst.msk [vmem:[%s269 + $0x14] sm:$0xf] %vm1933, %v1922
      %1940 = vst.msk [vmem:[%s269 + $0x18] sm:$0xf] %vm1933, %v1923
      %1941 = vst.msk [vmem:[%s269 + $0x1c] sm:$0xf] %vm1933, %v1924
      %p1942 = scmp.lt.s32.totalorder %s18, 1
      %s1943 = scalar_select %p1942, %s18, 1
      %p1944 = scmp.lt.s32.totalorder %s19, 0
      %s1945 = scalar_select %p1944, %s19, 0
      %s1946 = smul.addr %s1943, 8
      %s1947 = sadd.s32 %s1945, %s1946
      %s1948 = smul.addr %s1947, 4
      %s1949 = scalar_lea.vmem %s3, %s1948
      // Predicated region
      $region33: #{attention_forward.4} parent=31 // pred_check
        %p1950 = pneg %p130
      $region34: #{attention_forward.4} parent=31 // pred_check_branch
        %1952 = sbr.rel (%p1950) target = $region36
      $region35: #{attention_forward.4} parent=31 // pred_region
        _
      $region36: #{attention_forward.4} parent=31 // pred_fallthru
        _
    $region32: #{attention_forward.4} parent=5 // pred_fallthru
      _
    %p1953 = scmp.le.s32.totalorder 2, %s9
    // Predicated region
    $region37: #{attention_forward.4} parent=5 // pred_check
      %p1954 = pneg %p1953
    $region38: #{attention_forward.4} parent=5 // pred_check_branch
      %1956 = sbr.rel (%p1954) target = $region40
    $region39: #{attention_forward.4} parent=5 // pred_region
      %s1957 = ssub.s32 %s9, 2
      // Predicated region
      $region41: #{attention_forward.4} parent=39 // pred_check
        %p1958 = pneg %p136
      $region42: #{attention_forward.4} parent=39 // pred_check_branch
        %1960 = sbr.rel (%p1958) target = $region44
      $region43: #{attention_forward.4} parent=39 // pred_region
        %p1961 = scmp.lt.s32.totalorder %s20, 1
        %s1962 = scalar_select %p1961, %s20, 1
        %p1963 = scmp.lt.s32.totalorder %s21, 0
        %s1964 = scalar_select %p1963, %s21, 0
        %s1965 = smul.addr %s1962, 8
        %s1966 = sadd.s32 %s1964, %s1965
        %s1967 = smul.addr %s1966, 4
        %s1968 = scalar_lea.vmem %s3, %s1967
      $region44: #{attention_forward.4} parent=39 // pred_fallthru
        _
    $region40: #{attention_forward.4} parent=5 // pred_fallthru
      _
  $region6: #{attention_forward.4} parent=0 // loop_footer
    %s13 = sadd.s32 1, %s9
  $region7: #{attention_forward.4} parent=0 // loop_footer_branch
    %8 = sbr.rel target = $region3
  $region8: #{attention_forward.4} parent=0 // loop_exit
    _

</llo_original>
